<compile_context>
chip_gen: v6e
topology: v6e:2x2x1
jax: 0.10.0
libtpu: 0.0.40
codegen_flags: <defaults>
</compile_context>

<pallas_src>
import jax
import jax.numpy as jnp
from jax import lax
from jax.experimental import pallas as pl
from jax.experimental.pallas import tpu as pltpu


def make_pcae_kernel(n_points, n_tile):
    """Build the fused encoder / maxpool / decoder kernel.

    n_points: true number of points per cloud (= x_dim).
    n_tile:   points processed per grid step along the point axis.
    """
    num_n = -(-n_points // n_tile)
    pad_n = num_n * n_tile - n_points

    def kernel(x_ref,
               w1, b1, w2, b2, w3, b3, w4, b4, w5, b5,
               d1, c1, d2, c2, d3, c3, d4, c4,
               out_ref, z_ref):
        bt = x_ref.shape[0]
        x = x_ref[...].reshape(bt * n_tile, 3)          # (M, 3) f32

        # --- Encoder layer 1 (K=3): VPU broadcast MACs instead of an MXU dot ---
        w1v = w1[...]                                   # (3, 64) f32
        h = (x[:, 0:1] * w1v[0:1, :]
             + x[:, 1:2] * w1v[1:2, :]
             + x[:, 2:3] * w1v[2:3, :]) + b1[...]
        h = jnp.maximum(h, 0.0).astype(jnp.bfloat16)    # carry activations bf16

        def layer(a, w_ref, b_ref, relu=True):
            # bf16 MXU operands, f32 accumulation, f32 bias/ReLU epilogue,
            # single cast back to bf16 for the next layer.
            o = jnp.dot(a.astype(jnp.bfloat16), w_ref[...],
                        preferred_element_type=jnp.float32) + b_ref[...]
            if relu:
                return jnp.maximum(o, 0.0).astype(jnp.bfloat16)
            return o

        # --- Remaining pointwise convs on the stacked (M, C) matrix ---
        h = layer(h, w2, b2)                            # (M, 128)
        h = layer(h, w3, b3)                            # (M, 256)
        h = layer(h, w4, b4)                            # (M, 512)
        h = layer(h, w5, b5)                            # (M, z_dim) bf16

        h3 = h.reshape(bt, n_tile, -1)
        if pad_n:
            # Mask zero-padded points of the last N-chunk.  ReLU outputs are
            # >= 0, so masking to 0 never changes the per-channel max.
            n_idx = pl.program_id(1)
            ids = lax.broadcasted_iota(jnp.int32, (1, n_tile, 1), 1)
            valid = n_points - n_idx * n_tile
            h3 = jnp.where(ids < valid, h3, jnp.zeros_like(h3))
        chunk_max = jnp.max(h3, axis=1)                 # (bt, z_dim) bf16

        def decoder(z):
            g = layer(z, d1, c1)
            g = layer(g, d2, c2)
            g = layer(g, d3, c3)
            g = layer(g, d4, c4, relu=False)            # (bt, out_cols) f32
            out_ref[0] = g.astype(out_ref.dtype)

        if num_n == 1:
            # Whole point cloud in one chunk: MaxPool1d(kernel_size=x_dim) is
            # exactly the chunk max; run the decoder directly.
            decoder(chunk_max)
        else:
            # N-tiled running-max accumulator (MaxPool across chunks).
            n_idx = pl.program_id(1)

            @pl.when(n_idx == 0)
            def _():
                z_ref[...] = jnp.full_like(z_ref, -jnp.inf)

            z_ref[...] = jnp.maximum(z_ref[...], chunk_max)

            @pl.when(n_idx == num_n - 1)
            def _():
                decoder(z_ref[...])

    return kernel


def init_params(key, x_dim, z_dim):
    """Synthetic params matching the PyTorch layer shapes.

    Conv1d(k=1) weight (C_out, C_in, 1) is stored as (C_in, C_out), Linear
    weight (out, in) as (in, out); biases are (1, C_out).  All MXU-fed weights
    are stored in bf16; the first (3->64) layer runs on the VPU and stays f32.
    """
    enc = [3, 64, 128, 256, 512, z_dim]
    dec = [z_dim, z_dim, z_dim, z_dim, x_dim * 3]
    dims = list(zip(enc[:-1], enc[1:])) + list(zip(dec[:-1], dec[1:]))
    keys = jax.random.split(key, len(dims))
    params = []
    for i, ((din, dout), k) in enumerate(zip(dims, keys)):
        w = jax.random.normal(k, (din, dout), jnp.float32) / jnp.sqrt(float(din))
        if i > 0:
            w = w.astype(jnp.bfloat16)           # MXU operand
        b = jnp.full((1, dout), 0.01, jnp.float32)
        params += [w, b]
    return tuple(params)


def pcae_forward(x_ncl, params, *, b_tile=None, n_tile=None):
    """x_ncl: (B, 3, N) float32 (PyTorch Conv1d layout).  Returns (B, 3, x_dim)."""
    B, C, N = x_ncl.shape
    assert C == 3
    x_nlc = jnp.transpose(x_ncl, (0, 2, 1)).astype(jnp.float32)   # (B, N, 3)

    z_dim = params[8].shape[1]          # w5 output channels
    x_dim3 = params[-2].shape[1]        # 3 * x_dim

    # Pad the final linear to a multiple of 128 output lanes (lane-dense vst).
    out_cols = -(-x_dim3 // 128) * 128
    d4, c4 = params[-2], params[-1]
    if out_cols != x_dim3:
        d4 = jnp.pad(d4, ((0, 0), (0, out_cols - x_dim3)))
        c4 = jnp.pad(c4, ((0, 0), (0, out_cols - x_dim3)))
    kparams = tuple(params[:-2]) + (d4, c4)

    # ----- hardware-aware tiling --------------------------------------------
    try:
        kind = jax.devices()[0].device_kind.lower()
    except Exception:
        kind = ""
    n_tc = 2 if "v7" in kind else 1          # v7x: 2 TCs/chip; v5e/v6e: 1 TC
    # Per-TC activation budget (headroom under 64 MiB physical on v7x,
    # 128 MiB on v5e/v6e).
    vmem_budget = (40 << 20) if n_tc == 2 else (56 << 20)

    # Peak VMEM bytes per point-row: bf16 input + f32 dot accumulator + bf16
    # output of the widest encoder layer (derived from max(512, z_dim)), plus
    # the lane-padded (.., 3)->(.., 128) input block (double-buffered DMA).
    enc_dims = [(3, 64), (64, 128), (128, 256), (256, 512), (512, z_dim)]
    per_row = max(ci * 2 + co * 6 for ci, co in enc_dims[1:])
    per_row = max(per_row, 3 * 4 + 64 * 6)
    per_row += 2 * 128 * 4

    wbytes = sum(int(p.size) * p.dtype.itemsize for p in kparams)
    big_weights = wbytes > (4 << 20)
    wbuf = 1 if big_weights else 2           # Buffered(1) once weights get big
    per_sample = (z_dim * 2                              # latent scratch (bf16)
                  + 2 * out_cols * 4                     # output block (x2 buf)
                  + z_dim * 2 + max(z_dim, out_cols) * 6)  # decoder live peak

    # Batch tiling: one tile per TensorCore.  Single-TC chips (v5e/v6e) get a
    # single maximal tile; v7x gets exactly two so both cores stay busy.
    if b_tile is None:
        b_tile = -(-B // max(1, min(B, n_tc)))
    num_b_tiles = -(-B // b_tile)
    B_pad = num_b_tiles * b_tile
    if B_pad != B:
        x_nlc = jnp.pad(x_nlc, ((0, B_pad - B), (0, 0), (0, 0)))

    # Point tiling: keep the widest activation under the per-TC VMEM budget;
    # the MaxPool becomes a running-max accumulator across N-chunks.
    fixed = wbuf * wbytes + b_tile * per_sample + (1 << 20)
    if n_tile is None:
        rows = (vmem_budget - fixed) // max(1, per_row * b_tile)
        n_tile = N if rows >= N else min(N, max(8, (int(rows) // 8) * 8))
    num_n_tiles = -(-N // n_tile)
    N_pad = num_n_tiles * n_tile
    if N_pad != N:
        x_nlc = jnp.pad(x_nlc, ((0, 0), (0, N_pad - N), (0, 0)))

    # Explicit scoped-VMEM limit: raises v5e's 16 MiB default for big tiles,
    # stays under v7x's 64 MiB physical.
    est = fixed + b_tile * n_tile * per_row
    phys_cap = (60 << 20) if n_tc == 2 else (110 << 20)
    vmem_limit = int(min(phys_cap, max(32 << 20, 3 * est // 2)))

    x_spec = pl.BlockSpec((b_tile, n_tile, 3), lambda b, n: (b, n, 0))
    if big_weights:
        # Constant block index -> single buffering is safe; halves weight
        # residency (matters at z_dim ~ 1024 on v7x's smaller VMEM).
        w_specs = [pl.BlockSpec(p.shape, lambda b, n: (0, 0),
                                pipeline_mode=pl.Buffered(1)) for p in kparams]
    else:
        w_specs = [pl.BlockSpec(p.shape, lambda b, n: (0, 0)) for p in kparams]

    enc_macs = 3 * 64 + 64 * 128 + 128 * 256 + 256 * 512 + 512 * z_dim
    dec_macs = 3 * z_dim * z_dim + z_dim * out_cols
    cost = pl.CostEstimate(
        flops=int(2 * (B_pad * N_pad * enc_macs + B_pad * dec_macs)),
        transcendentals=0,
        bytes_accessed=int(x_nlc.size * 4 + wbytes + B_pad * out_cols * 4),
    )

    out = pl.pallas_call(
        make_pcae_kernel(N, n_tile),
        out_shape=jax.ShapeDtypeStruct((num_b_tiles, b_tile, out_cols),
                                       jnp.float32),
        grid=(num_b_tiles, num_n_tiles),
        in_specs=[x_spec] + w_specs,
        out_specs=pl.BlockSpec((1, b_tile, out_cols), lambda b, n: (b, 0, 0)),
        scratch_shapes=[pltpu.VMEM((b_tile, z_dim), jnp.bfloat16)],
        compiler_params=pltpu.CompilerParams(
            dimension_semantics=("parallel", "arbitrary"),
            vmem_limit_bytes=vmem_limit),
        cost_estimate=cost,
    )(x_nlc, *kparams)

    out = out.reshape(B_pad, out_cols)[:B, :x_dim3]
    # Matches PyTorch: (B, 3*x_dim).view(-1, 3, x_dim) (row-major reshape).
    return out.reshape(B, 3, x_dim3 // 3)


def pcae_reference(x_ncl, params):
    """Pure-JAX reference with the same bf16-operand / f32-accumulate math."""
    (w1, b1, w2, b2, w3, b3, w4, b4, w5, b5,
     d1, c1, d2, c2, d3, c3, d4, c4) = params
    h = jnp.transpose(x_ncl, (0, 2, 1)).astype(jnp.float32)      # (B, N, 3)
    h = jax.nn.relu(h @ w1 + b1)
    for w, b in [(w2, b2), (w3, b3), (w4, b4), (w5, b5)]:
        h = jax.nn.relu(jnp.dot(h.astype(jnp.bfloat16), w,
                                preferred_element_type=jnp.float32) + b)
    z = jnp.max(h, axis=1)                                       # MaxPool1d
    g = z
    for w, b in [(d1, c1), (d2, c2), (d3, c3)]:
        g = jax.nn.relu(jnp.dot(g.astype(jnp.bfloat16), w,
                                preferred_element_type=jnp.float32) + b)
    g = jnp.dot(g.astype(jnp.bfloat16), d4,
                preferred_element_type=jnp.float32) + c4
    return g.reshape(x_ncl.shape[0], 3, -1)


if __name__ == "__main__":
    key = jax.random.PRNGKey(0)
    k1, k2, k3, k4 = jax.random.split(key, 4)

    # Test 1: small PCAE (x_dim=64 points, z_dim=128), batch 8.  The heuristic
    # picks one maximal tile on v5e/v6e and two tiles on v7x; single N-chunk.
    B, X_DIM, Z_DIM = 8, 64, 128
    x = jax.random.normal(k1, (B, 3, X_DIM), jnp.float32)   # NCL, like PyTorch
    params = init_params(k2, X_DIM, Z_DIM)
    x_hat = jax.block_until_ready(pcae_forward(x, params))
    ref = pcae_reference(x, params)
    assert x_hat.shape == (B, 3, X_DIM), x_hat.shape
    assert jnp.allclose(x_hat, ref, atol=2e-2, rtol=2e-2), \
        float(jnp.max(jnp.abs(x_hat - ref)))

    # Test 2: forced batch + point tiling (B=3 -> batch-padded; N=56 with
    # n_tile=16 -> N-chunked running-max accumulator with last-chunk masking).
    B2, X2, Z2 = 3, 56, 128
    x2 = jax.random.normal(k3, (B2, 3, X2), jnp.float32)
    params2 = init_params(k4, X2, Z2)
    x_hat2 = jax.block_until_ready(
        pcae_forward(x2, params2, b_tile=2, n_tile=16))
    ref2 = pcae_reference(x2, params2)
    assert x_hat2.shape == (B2, 3, X2), x_hat2.shape
    assert jnp.allclose(x_hat2, ref2, atol=2e-2, rtol=2e-2), \
        float(jnp.max(jnp.abs(x_hat2 - ref2)))

    # TODO(synk): chamfer/ELBO/IWAE losses and gaussian sampling utilities are
    # training-time host-side code, not part of the forward pass translated here.
    print("KERNEL_OK")
</pallas_src>

<mosaic_0001>
module attributes {stable_mosaic.version = 11 : i64} {
  func.func @kernel(%arg0: i32, %arg1: i32, %arg2: memref<8x64x3xf32, #tpu.memory_space<vmem>>, %arg3: memref<3x64xf32, #tpu.memory_space<vmem>>, %arg4: memref<1x64xf32, #tpu.memory_space<vmem>>, %arg5: memref<64x128xbf16, #tpu.memory_space<vmem>>, %arg6: memref<1x128xf32, #tpu.memory_space<vmem>>, %arg7: memref<128x256xbf16, #tpu.memory_space<vmem>>, %arg8: memref<1x256xf32, #tpu.memory_space<vmem>>, %arg9: memref<256x512xbf16, #tpu.memory_space<vmem>>, %arg10: memref<1x512xf32, #tpu.memory_space<vmem>>, %arg11: memref<512x128xbf16, #tpu.memory_space<vmem>>, %arg12: memref<1x128xf32, #tpu.memory_space<vmem>>, %arg13: memref<128x128xbf16, #tpu.memory_space<vmem>>, %arg14: memref<1x128xf32, #tpu.memory_space<vmem>>, %arg15: memref<128x128xbf16, #tpu.memory_space<vmem>>, %arg16: memref<1x128xf32, #tpu.memory_space<vmem>>, %arg17: memref<128x128xbf16, #tpu.memory_space<vmem>>, %arg18: memref<1x128xf32, #tpu.memory_space<vmem>>, %arg19: memref<128x256xbf16, #tpu.memory_space<vmem>>, %arg20: memref<1x256xf32, #tpu.memory_space<vmem>>, %arg21: memref<1x8x256xf32, #tpu.memory_space<vmem>>, %arg22: memref<8x128xbf16, #tpu.memory_space<vmem>>) attributes {dimension_semantics = [#tpu.dimension_semantics<parallel>, #tpu.dimension_semantics<arbitrary>], iteration_bounds = array<i64: 1, 1>, scalar_prefetch = 0 : i64, scratch_operands = 1 : i64, tpu.core_type = #tpu.core_type<tc>, window_params = [{transform_indices = @transform_0, window_bounds = array<i64: 8, 64, 3>}, {pipeline_mode = #tpu.pipeline_mode<synchronous>, transform_indices = @transform_1, window_bounds = array<i64: 3, 64>}, {pipeline_mode = #tpu.pipeline_mode<synchronous>, transform_indices = @transform_2, window_bounds = array<i64: 1, 64>}, {pipeline_mode = #tpu.pipeline_mode<synchronous>, transform_indices = @transform_3, window_bounds = array<i64: 64, 128>}, {pipeline_mode = #tpu.pipeline_mode<synchronous>, transform_indices = @transform_4, window_bounds = array<i64: 1, 128>}, {pipeline_mode = #tpu.pipeline_mode<synchronous>, transform_indices = @transform_5, window_bounds = array<i64: 128, 256>}, {pipeline_mode = #tpu.pipeline_mode<synchronous>, transform_indices = @transform_6, window_bounds = array<i64: 1, 256>}, {pipeline_mode = #tpu.pipeline_mode<synchronous>, transform_indices = @transform_7, window_bounds = array<i64: 256, 512>}, {pipeline_mode = #tpu.pipeline_mode<synchronous>, transform_indices = @transform_8, window_bounds = array<i64: 1, 512>}, {pipeline_mode = #tpu.pipeline_mode<synchronous>, transform_indices = @transform_9, window_bounds = array<i64: 512, 128>}, {pipeline_mode = #tpu.pipeline_mode<synchronous>, transform_indices = @transform_10, window_bounds = array<i64: 1, 128>}, {pipeline_mode = #tpu.pipeline_mode<synchronous>, transform_indices = @transform_11, window_bounds = array<i64: 128, 128>}, {pipeline_mode = #tpu.pipeline_mode<synchronous>, transform_indices = @transform_12, window_bounds = array<i64: 1, 128>}, {pipeline_mode = #tpu.pipeline_mode<synchronous>, transform_indices = @transform_13, window_bounds = array<i64: 128, 128>}, {pipeline_mode = #tpu.pipeline_mode<synchronous>, transform_indices = @transform_14, window_bounds = array<i64: 1, 128>}, {pipeline_mode = #tpu.pipeline_mode<synchronous>, transform_indices = @transform_15, window_bounds = array<i64: 128, 128>}, {pipeline_mode = #tpu.pipeline_mode<synchronous>, transform_indices = @transform_16, window_bounds = array<i64: 1, 128>}, {pipeline_mode = #tpu.pipeline_mode<synchronous>, transform_indices = @transform_17, window_bounds = array<i64: 128, 256>}, {pipeline_mode = #tpu.pipeline_mode<synchronous>, transform_indices = @transform_18, window_bounds = array<i64: 1, 256>}, {transform_indices = @transform_19, window_bounds = array<i64: 1, 8, 256>}]} {
    %c0 = arith.constant 0 : index
    %c0_0 = arith.constant 0 : index
    %c0_1 = arith.constant 0 : index
    %0 = vector.load %arg2[%c0, %c0_0, %c0_1] : memref<8x64x3xf32, #tpu.memory_space<vmem>>, vector<8x64x3xf32>
    %1 = vector.shape_cast %0 : vector<8x64x3xf32> to vector<512x3xf32>
    %c0_2 = arith.constant 0 : index
    %c0_3 = arith.constant 0 : index
    %2 = vector.load %arg3[%c0_2, %c0_3] : memref<3x64xf32, #tpu.memory_space<vmem>>, vector<3x64xf32>
    %3 = vector.extract_strided_slice %1 {offsets = [0, 0], sizes = [512, 1], strides = [1, 1]} : vector<512x3xf32> to vector<512x1xf32>
    %4 = vector.extract_strided_slice %2 {offsets = [0, 0], sizes = [1, 64], strides = [1, 1]} : vector<3x64xf32> to vector<1x64xf32>
    %5 = vector.broadcast %3 : vector<512x1xf32> to vector<512x64xf32>
    %6 = vector.broadcast %4 : vector<1x64xf32> to vector<512x64xf32>
    %7 = arith.mulf %5, %6 : vector<512x64xf32>
    %8 = vector.extract_strided_slice %1 {offsets = [0, 1], sizes = [512, 1], strides = [1, 1]} : vector<512x3xf32> to vector<512x1xf32>
    %9 = vector.extract_strided_slice %2 {offsets = [1, 0], sizes = [1, 64], strides = [1, 1]} : vector<3x64xf32> to vector<1x64xf32>
    %10 = vector.broadcast %8 : vector<512x1xf32> to vector<512x64xf32>
    %11 = vector.broadcast %9 : vector<1x64xf32> to vector<512x64xf32>
    %12 = arith.mulf %10, %11 : vector<512x64xf32>
    %13 = arith.addf %7, %12 : vector<512x64xf32>
    %14 = vector.extract_strided_slice %1 {offsets = [0, 2], sizes = [512, 1], strides = [1, 1]} : vector<512x3xf32> to vector<512x1xf32>
    %15 = vector.extract_strided_slice %2 {offsets = [2, 0], sizes = [1, 64], strides = [1, 1]} : vector<3x64xf32> to vector<1x64xf32>
    %16 = vector.broadcast %14 : vector<512x1xf32> to vector<512x64xf32>
    %17 = vector.broadcast %15 : vector<1x64xf32> to vector<512x64xf32>
    %18 = arith.mulf %16, %17 : vector<512x64xf32>
    %19 = arith.addf %13, %18 : vector<512x64xf32>
    %c0_4 = arith.constant 0 : index
    %c0_5 = arith.constant 0 : index
    %20 = vector.load %arg4[%c0_4, %c0_5] : memref<1x64xf32, #tpu.memory_space<vmem>>, vector<1x64xf32>
    %21 = vector.broadcast %20 : vector<1x64xf32> to vector<512x64xf32>
    %22 = arith.addf %19, %21 : vector<512x64xf32>
    %cst = arith.constant 0.000000e+00 : f32
    %23 = vector.broadcast %cst : f32 to vector<512x64xf32>
    %24 = arith.maximumf %22, %23 : vector<512x64xf32>
    %25 = arith.truncf %24 : vector<512x64xf32> to vector<512x64xbf16>
    %c0_6 = arith.constant 0 : index
    %c0_7 = arith.constant 0 : index
    %26 = vector.load %arg5[%c0_6, %c0_7] : memref<64x128xbf16, #tpu.memory_space<vmem>>, vector<64x128xbf16>
    %cst_8 = arith.constant dense<0.000000e+00> : vector<512x128xf32>
    %27 = tpu.matmul %25, %26, %cst_8 {dimension_numbers = #tpu.dot_dimension_numbers<[1], [0], [0], [1], [0, 0, 1, 1], [], []>} : vector<512x64xbf16>, vector<64x128xbf16>, vector<512x128xf32> -> vector<512x128xf32>
    %c0_9 = arith.constant 0 : index
    %c0_10 = arith.constant 0 : index
    %28 = vector.load %arg6[%c0_9, %c0_10] : memref<1x128xf32, #tpu.memory_space<vmem>>, vector<1x128xf32>
    %29 = vector.broadcast %28 : vector<1x128xf32> to vector<512x128xf32>
    %30 = arith.addf %27, %29 : vector<512x128xf32>
    %cst_11 = arith.constant 0.000000e+00 : f32
    %31 = vector.broadcast %cst_11 : f32 to vector<512x128xf32>
    %32 = arith.maximumf %30, %31 : vector<512x128xf32>
    %33 = arith.truncf %32 : vector<512x128xf32> to vector<512x128xbf16>
    %c0_12 = arith.constant 0 : index
    %c0_13 = arith.constant 0 : index
    %34 = vector.load %arg7[%c0_12, %c0_13] : memref<128x256xbf16, #tpu.memory_space<vmem>>, vector<128x256xbf16>
    %cst_14 = arith.constant dense<0.000000e+00> : vector<512x256xf32>
    %35 = tpu.matmul %33, %34, %cst_14 {dimension_numbers = #tpu.dot_dimension_numbers<[1], [0], [0], [1], [0, 0, 1, 1], [], []>} : vector<512x128xbf16>, vector<128x256xbf16>, vector<512x256xf32> -> vector<512x256xf32>
    %c0_15 = arith.constant 0 : index
    %c0_16 = arith.constant 0 : index
    %36 = vector.load %arg8[%c0_15, %c0_16] : memref<1x256xf32, #tpu.memory_space<vmem>>, vector<1x256xf32>
    %37 = vector.broadcast %36 : vector<1x256xf32> to vector<512x256xf32>
    %38 = arith.addf %35, %37 : vector<512x256xf32>
    %cst_17 = arith.constant 0.000000e+00 : f32
    %39 = vector.broadcast %cst_17 : f32 to vector<512x256xf32>
    %40 = arith.maximumf %38, %39 : vector<512x256xf32>
    %41 = arith.truncf %40 : vector<512x256xf32> to vector<512x256xbf16>
    %c0_18 = arith.constant 0 : index
    %c0_19 = arith.constant 0 : index
    %42 = vector.load %arg9[%c0_18, %c0_19] : memref<256x512xbf16, #tpu.memory_space<vmem>>, vector<256x512xbf16>
    %cst_20 = arith.constant dense<0.000000e+00> : vector<512x512xf32>
    %43 = tpu.matmul %41, %42, %cst_20 {dimension_numbers = #tpu.dot_dimension_numbers<[1], [0], [0], [1], [0, 0, 1, 1], [], []>} : vector<512x256xbf16>, vector<256x512xbf16>, vector<512x512xf32> -> vector<512x512xf32>
    %c0_21 = arith.constant 0 : index
    %c0_22 = arith.constant 0 : index
    %44 = vector.load %arg10[%c0_21, %c0_22] : memref<1x512xf32, #tpu.memory_space<vmem>>, vector<1x512xf32>
    %45 = vector.broadcast %44 : vector<1x512xf32> to vector<512x512xf32>
    %46 = arith.addf %43, %45 : vector<512x512xf32>
    %cst_23 = arith.constant 0.000000e+00 : f32
    %47 = vector.broadcast %cst_23 : f32 to vector<512x512xf32>
    %48 = arith.maximumf %46, %47 : vector<512x512xf32>
    %49 = arith.truncf %48 : vector<512x512xf32> to vector<512x512xbf16>
    %c0_24 = arith.constant 0 : index
    %c0_25 = arith.constant 0 : index
    %50 = vector.load %arg11[%c0_24, %c0_25] : memref<512x128xbf16, #tpu.memory_space<vmem>>, vector<512x128xbf16>
    %cst_26 = arith.constant dense<0.000000e+00> : vector<512x128xf32>
    %51 = tpu.matmul %49, %50, %cst_26 {dimension_numbers = #tpu.dot_dimension_numbers<[1], [0], [0], [1], [0, 0, 1, 1], [], []>} : vector<512x512xbf16>, vector<512x128xbf16>, vector<512x128xf32> -> vector<512x128xf32>
    %c0_27 = arith.constant 0 : index
    %c0_28 = arith.constant 0 : index
    %52 = vector.load %arg12[%c0_27, %c0_28] : memref<1x128xf32, #tpu.memory_space<vmem>>, vector<1x128xf32>
    %53 = vector.broadcast %52 : vector<1x128xf32> to vector<512x128xf32>
    %54 = arith.addf %51, %53 : vector<512x128xf32>
    %cst_29 = arith.constant 0.000000e+00 : f32
    %55 = vector.broadcast %cst_29 : f32 to vector<512x128xf32>
    %56 = arith.maximumf %54, %55 : vector<512x128xf32>
    %57 = arith.truncf %56 : vector<512x128xf32> to vector<512x128xbf16>
    %58 = vector.shape_cast %57 : vector<512x128xbf16> to vector<8x64x128xbf16>
    %cst_30 = arith.constant dense<0xFF80> : vector<8x128xbf16>
    %59 = vector.multi_reduction <maximumf>, %58, %cst_30 [1] : vector<8x64x128xbf16> to vector<8x128xbf16>
    %c0_31 = arith.constant 0 : index
    %c0_32 = arith.constant 0 : index
    %60 = vector.load %arg13[%c0_31, %c0_32] : memref<128x128xbf16, #tpu.memory_space<vmem>>, vector<128x128xbf16>
    %cst_33 = arith.constant dense<0.000000e+00> : vector<8x128xf32>
    %61 = tpu.matmul %59, %60, %cst_33 {dimension_numbers = #tpu.dot_dimension_numbers<[1], [0], [0], [1], [0, 0, 1, 1], [], []>} : vector<8x128xbf16>, vector<128x128xbf16>, vector<8x128xf32> -> vector<8x128xf32>
    %c0_34 = arith.constant 0 : index
    %c0_35 = arith.constant 0 : index
    %62 = vector.load %arg14[%c0_34, %c0_35] : memref<1x128xf32, #tpu.memory_space<vmem>>, vector<1x128xf32>
    %63 = vector.broadcast %62 : vector<1x128xf32> to vector<8x128xf32>
    %64 = arith.addf %61, %63 : vector<8x128xf32>
    %cst_36 = arith.constant 0.000000e+00 : f32
    %65 = vector.broadcast %cst_36 : f32 to vector<8x128xf32>
    %66 = arith.maximumf %64, %65 : vector<8x128xf32>
    %67 = arith.truncf %66 : vector<8x128xf32> to vector<8x128xbf16>
    %c0_37 = arith.constant 0 : index
    %c0_38 = arith.constant 0 : index
    %68 = vector.load %arg15[%c0_37, %c0_38] : memref<128x128xbf16, #tpu.memory_space<vmem>>, vector<128x128xbf16>
    %cst_39 = arith.constant dense<0.000000e+00> : vector<8x128xf32>
    %69 = tpu.matmul %67, %68, %cst_39 {dimension_numbers = #tpu.dot_dimension_numbers<[1], [0], [0], [1], [0, 0, 1, 1], [], []>} : vector<8x128xbf16>, vector<128x128xbf16>, vector<8x128xf32> -> vector<8x128xf32>
    %c0_40 = arith.constant 0 : index
    %c0_41 = arith.constant 0 : index
    %70 = vector.load %arg16[%c0_40, %c0_41] : memref<1x128xf32, #tpu.memory_space<vmem>>, vector<1x128xf32>
    %71 = vector.broadcast %70 : vector<1x128xf32> to vector<8x128xf32>
    %72 = arith.addf %69, %71 : vector<8x128xf32>
    %cst_42 = arith.constant 0.000000e+00 : f32
    %73 = vector.broadcast %cst_42 : f32 to vector<8x128xf32>
    %74 = arith.maximumf %72, %73 : vector<8x128xf32>
    %75 = arith.truncf %74 : vector<8x128xf32> to vector<8x128xbf16>
    %c0_43 = arith.constant 0 : index
    %c0_44 = arith.constant 0 : index
    %76 = vector.load %arg17[%c0_43, %c0_44] : memref<128x128xbf16, #tpu.memory_space<vmem>>, vector<128x128xbf16>
    %cst_45 = arith.constant dense<0.000000e+00> : vector<8x128xf32>
    %77 = tpu.matmul %75, %76, %cst_45 {dimension_numbers = #tpu.dot_dimension_numbers<[1], [0], [0], [1], [0, 0, 1, 1], [], []>} : vector<8x128xbf16>, vector<128x128xbf16>, vector<8x128xf32> -> vector<8x128xf32>
    %c0_46 = arith.constant 0 : index
    %c0_47 = arith.constant 0 : index
    %78 = vector.load %arg18[%c0_46, %c0_47] : memref<1x128xf32, #tpu.memory_space<vmem>>, vector<1x128xf32>
    %79 = vector.broadcast %78 : vector<1x128xf32> to vector<8x128xf32>
    %80 = arith.addf %77, %79 : vector<8x128xf32>
    %cst_48 = arith.constant 0.000000e+00 : f32
    %81 = vector.broadcast %cst_48 : f32 to vector<8x128xf32>
    %82 = arith.maximumf %80, %81 : vector<8x128xf32>
    %83 = arith.truncf %82 : vector<8x128xf32> to vector<8x128xbf16>
    %c0_49 = arith.constant 0 : index
    %c0_50 = arith.constant 0 : index
    %84 = vector.load %arg19[%c0_49, %c0_50] : memref<128x256xbf16, #tpu.memory_space<vmem>>, vector<128x256xbf16>
    %cst_51 = arith.constant dense<0.000000e+00> : vector<8x256xf32>
    %85 = tpu.matmul %83, %84, %cst_51 {dimension_numbers = #tpu.dot_dimension_numbers<[1], [0], [0], [1], [0, 0, 1, 1], [], []>} : vector<8x128xbf16>, vector<128x256xbf16>, vector<8x256xf32> -> vector<8x256xf32>
    %c0_52 = arith.constant 0 : index
    %c0_53 = arith.constant 0 : index
    %86 = vector.load %arg20[%c0_52, %c0_53] : memref<1x256xf32, #tpu.memory_space<vmem>>, vector<1x256xf32>
    %87 = vector.broadcast %86 : vector<1x256xf32> to vector<8x256xf32>
    %88 = arith.addf %85, %87 : vector<8x256xf32>
    %c0_54 = arith.constant 0 : index
    %c0_55 = arith.constant 0 : index
    %c0_56 = arith.constant 0 : index
    %89 = vector.load %arg21[%c0_54, %c0_55, %c0_56] : memref<1x8x256xf32, #tpu.memory_space<vmem>>, vector<1x8x256xf32>
    %90 = vector.shape_cast %89 : vector<1x8x256xf32> to vector<8x256xf32>
    %91 = vector.shape_cast %88 : vector<8x256xf32> to vector<1x8x256xf32>
    tpu.vector_store %arg21[%c0_54, %c0_55, %c0_56], %91 {strides = array<i32>} : memref<1x8x256xf32, #tpu.memory_space<vmem>>, vector<1x8x256xf32>,
    return
  }
  func.func @transform_0(%arg0: i32, %arg1: i32) -> (i32, i32, i32) {
    %c0_i32 = arith.constant 0 : i32
    %c0_i32_0 = arith.constant 0 : i32
    return %arg0, %arg1, %c0_i32 : i32, i32, i32
  }
  func.func @transform_1(%arg0: i32, %arg1: i32) -> (i32, i32) {
    %c0_i32 = arith.constant 0 : i32
    %c0_i32_0 = arith.constant 0 : i32
    %c0_i32_1 = arith.constant 0 : i32
    return %c0_i32, %c0_i32_0 : i32, i32
  }
  func.func @transform_2(%arg0: i32, %arg1: i32) -> (i32, i32) {
    %c0_i32 = arith.constant 0 : i32
    %c0_i32_0 = arith.constant 0 : i32
    %c0_i32_1 = arith.constant 0 : i32
    return %c0_i32, %c0_i32_0 : i32, i32
  }
  func.func @transform_3(%arg0: i32, %arg1: i32) -> (i32, i32) {
    %c0_i32 = arith.constant 0 : i32
    %c0_i32_0 = arith.constant 0 : i32
    %c0_i32_1 = arith.constant 0 : i32
    return %c0_i32, %c0_i32_0 : i32, i32
  }
  func.func @transform_4(%arg0: i32, %arg1: i32) -> (i32, i32) {
    %c0_i32 = arith.constant 0 : i32
    %c0_i32_0 = arith.constant 0 : i32
    %c0_i32_1 = arith.constant 0 : i32
    return %c0_i32, %c0_i32_0 : i32, i32
  }
  func.func @transform_5(%arg0: i32, %arg1: i32) -> (i32, i32) {
    %c0_i32 = arith.constant 0 : i32
    %c0_i32_0 = arith.constant 0 : i32
    %c0_i32_1 = arith.constant 0 : i32
    return %c0_i32, %c0_i32_0 : i32, i32
  }
  func.func @transform_6(%arg0: i32, %arg1: i32) -> (i32, i32) {
    %c0_i32 = arith.constant 0 : i32
    %c0_i32_0 = arith.constant 0 : i32
    %c0_i32_1 = arith.constant 0 : i32
    return %c0_i32, %c0_i32_0 : i32, i32
  }
  func.func @transform_7(%arg0: i32, %arg1: i32) -> (i32, i32) {
    %c0_i32 = arith.constant 0 : i32
    %c0_i32_0 = arith.constant 0 : i32
    %c0_i32_1 = arith.constant 0 : i32
    return %c0_i32, %c0_i32_0 : i32, i32
  }
  func.func @transform_8(%arg0: i32, %arg1: i32) -> (i32, i32) {
    %c0_i32 = arith.constant 0 : i32
    %c0_i32_0 = arith.constant 0 : i32
    %c0_i32_1 = arith.constant 0 : i32
    return %c0_i32, %c0_i32_0 : i32, i32
  }
  func.func @transform_9(%arg0: i32, %arg1: i32) -> (i32, i32) {
    %c0_i32 = arith.constant 0 : i32
    %c0_i32_0 = arith.constant 0 : i32
    %c0_i32_1 = arith.constant 0 : i32
    return %c0_i32, %c0_i32_0 : i32, i32
  }
  func.func @transform_10(%arg0: i32, %arg1: i32) -> (i32, i32) {
    %c0_i32 = arith.constant 0 : i32
    %c0_i32_0 = arith.constant 0 : i32
    %c0_i32_1 = arith.constant 0 : i32
    return %c0_i32, %c0_i32_0 : i32, i32
  }
  func.func @transform_11(%arg0: i32, %arg1: i32) -> (i32, i32) {
    %c0_i32 = arith.constant 0 : i32
    %c0_i32_0 = arith.constant 0 : i32
    %c0_i32_1 = arith.constant 0 : i32
    return %c0_i32, %c0_i32_0 : i32, i32
  }
  func.func @transform_12(%arg0: i32, %arg1: i32) -> (i32, i32) {
    %c0_i32 = arith.constant 0 : i32
    %c0_i32_0 = arith.constant 0 : i32
    %c0_i32_1 = arith.constant 0 : i32
    return %c0_i32, %c0_i32_0 : i32, i32
  }
  func.func @transform_13(%arg0: i32, %arg1: i32) -> (i32, i32) {
    %c0_i32 = arith.constant 0 : i32
    %c0_i32_0 = arith.constant 0 : i32
    %c0_i32_1 = arith.constant 0 : i32
    return %c0_i32, %c0_i32_0 : i32, i32
  }
  func.func @transform_14(%arg0: i32, %arg1: i32) -> (i32, i32) {
    %c0_i32 = arith.constant 0 : i32
    %c0_i32_0 = arith.constant 0 : i32
    %c0_i32_1 = arith.constant 0 : i32
    return %c0_i32, %c0_i32_0 : i32, i32
  }
  func.func @transform_15(%arg0: i32, %arg1: i32) -> (i32, i32) {
    %c0_i32 = arith.constant 0 : i32
    %c0_i32_0 = arith.constant 0 : i32
    %c0_i32_1 = arith.constant 0 : i32
    return %c0_i32, %c0_i32_0 : i32, i32
  }
  func.func @transform_16(%arg0: i32, %arg1: i32) -> (i32, i32) {
    %c0_i32 = arith.constant 0 : i32
    %c0_i32_0 = arith.constant 0 : i32
    %c0_i32_1 = arith.constant 0 : i32
    return %c0_i32, %c0_i32_0 : i32, i32
  }
  func.func @transform_17(%arg0: i32, %arg1: i32) -> (i32, i32) {
    %c0_i32 = arith.constant 0 : i32
    %c0_i32_0 = arith.constant 0 : i32
    %c0_i32_1 = arith.constant 0 : i32
    return %c0_i32, %c0_i32_0 : i32, i32
  }
  func.func @transform_18(%arg0: i32, %arg1: i32) -> (i32, i32) {
    %c0_i32 = arith.constant 0 : i32
    %c0_i32_0 = arith.constant 0 : i32
    %c0_i32_1 = arith.constant 0 : i32
    return %c0_i32, %c0_i32_0 : i32, i32
  }
  func.func @transform_19(%arg0: i32, %arg1: i32) -> (i32, i32, i32) {
    %c0_i32 = arith.constant 0 : i32
    %c0_i32_0 = arith.constant 0 : i32
    %c0_i32_1 = arith.constant 0 : i32
    return %arg0, %c0_i32, %c0_i32_0 : i32, i32, i32
  }
}

</mosaic_0001>

<llo_original>
// kernel: tpu_custom_call.1
$region0: #{tpu_custom_call.1}
  #allocation0 [shape = 'u32[]', space=smem, size = 0x4, offset = 0x4, fixed_abs, tag = 'smem constant byte address 0x4 - core index']
  #allocation1 [shape = 'u32[144,128]{1,0:T(1,128)}', space=vmem, size = 0x12000, scoped, tag = 'internal scratch']
  #allocation2 [shape = 'bf16[8,128]{1,0:T(8,128)(2,1)}', space=vmem, size = 0x800, scoped, tag = 'scratch operand']
  %s0 = inlined_call_operand.vmem [shape: f32[8,64,3], index: 0, kind: input, shape index: {}]
  %s1 = inlined_call_operand.vmem [shape: f32[3,64], index: 1, kind: input, shape index: {}]
  %s2 = inlined_call_operand.hbm [shape: f32[1,64], index: 2, kind: input, shape index: {}]
  %s3 = inlined_call_operand.vmem [shape: bf16[64,128], index: 3, kind: input, shape index: {}]
  %s4 = inlined_call_operand.hbm [shape: f32[1,128], index: 4, kind: input, shape index: {}]
  %s5 = inlined_call_operand.hbm [shape: bf16[128,256], index: 5, kind: input, shape index: {}]
  %s6 = inlined_call_operand.hbm [shape: f32[1,256], index: 6, kind: input, shape index: {}]
  %s7 = inlined_call_operand.vmem [shape: bf16[256,512], index: 7, kind: input, shape index: {}]
  %s8 = inlined_call_operand.hbm [shape: f32[1,512], index: 8, kind: input, shape index: {}]
  %s9 = inlined_call_operand.hbm [shape: bf16[512,128], index: 9, kind: input, shape index: {}]
  %s10 = inlined_call_operand.hbm [shape: f32[1,128], index: 10, kind: input, shape index: {}]
  %s11 = inlined_call_operand.hbm [shape: bf16[128,128], index: 11, kind: input, shape index: {}]
  %s12 = inlined_call_operand.vmem [shape: f32[1,128], index: 12, kind: input, shape index: {}]
  %s13 = inlined_call_operand.hbm [shape: bf16[128,128], index: 13, kind: input, shape index: {}]
  %s14 = inlined_call_operand.vmem [shape: f32[1,128], index: 14, kind: input, shape index: {}]
  %s15 = inlined_call_operand.hbm [shape: bf16[128,128], index: 15, kind: input, shape index: {}]
  %s16 = inlined_call_operand.vmem [shape: f32[1,128], index: 16, kind: input, shape index: {}]
  %s17 = inlined_call_operand.hbm [shape: bf16[128,256], index: 17, kind: input, shape index: {}]
  %s18 = inlined_call_operand.vmem [shape: f32[1,256], index: 18, kind: input, shape index: {}]
  %s19 = inlined_call_operand.hbm [shape: f32[1,8,256], index: 19, kind: output, shape index: {}]
  %s20 = sld [smem:[#allocation0]]
  $region130: #{tpu_custom_call.1} parent=0
    _
  %s22 = ssub.s32 1, %s20
  %s23 = scalar_select 0, %s22, %s20
  $region1: #{tpu_custom_call.1} parent=0
    #allocation3 [shape = 'u8[512]{0}', space=vmem, size = 0x400, scoped, tag = 'input window, operand 2, single buffered']
    #allocation4 [shape = 's32[1]{0}', space=sflag, size = 0x4, scoped, tag = 'scoped memory for tpu_custom_call.1']
    #allocation5 [shape = 's32[1]{0}', space=sflag, size = 0x4, scoped, tag = 'scoped memory for tpu_custom_call.1']
    #allocation6 [shape = 'u8[512]{0}', space=vmem, size = 0x400, scoped, tag = 'input window, operand 4, single buffered']
    #allocation7 [shape = 's32[1]{0}', space=sflag, size = 0x4, scoped, tag = 'scoped memory for tpu_custom_call.1']
    #allocation8 [shape = 'u8[65536]{0}', space=vmem, size = 0x10000, scoped, tag = 'input window, operand 5, single buffered']
    #allocation9 [shape = 'u8[1024]{0}', space=vmem, size = 0x400, scoped, tag = 'input window, operand 6, single buffered']
    #allocation10 [shape = 's32[1]{0}', space=sflag, size = 0x4, scoped, tag = 'scoped memory for tpu_custom_call.1']
    #allocation11 [shape = 'u8[2048]{0}', space=vmem, size = 0x800, scoped, tag = 'input window, operand 8, single buffered']
    #allocation12 [shape = 'u8[131072]{0}', space=vmem, size = 0x20000, scoped, tag = 'input window, operand 9, single buffered']
    #allocation13 [shape = 's32[1]{0}', space=sflag, size = 0x4, scoped, tag = 'scoped memory for tpu_custom_call.1']
    #allocation14 [shape = 'u8[512]{0}', space=vmem, size = 0x400, scoped, tag = 'input window, operand 10, single buffered']
    #allocation15 [shape = 'u8[32768]{0}', space=vmem, size = 0x8000, scoped, tag = 'input window, operand 11, single buffered']
    #allocation16 [shape = 's32[1]{0}', space=sflag, size = 0x4, scoped, tag = 'scoped memory for tpu_custom_call.1']
    #allocation17 [shape = 'u8[32768]{0}', space=vmem, size = 0x8000, scoped, tag = 'input window, operand 13, single buffered']
    #allocation18 [shape = 'u8[32768]{0}', space=vmem, size = 0x8000, scoped, tag = 'input window, operand 15, single buffered']
    #allocation19 [shape = 's32[1]{0}', space=sflag, size = 0x4, scoped, tag = 'scoped memory for tpu_custom_call.1']
    #allocation20 [shape = 'u8[65536]{0}', space=vmem, size = 0x10000, scoped, tag = 'input window, operand 17, single buffered']
    #allocation21 [shape = 'u8[8192]{0}', space=vmem, size = 0x2000, scoped, tag = 'output window, operand 0, single buffered']
    %24 = vsyncpa [#allocation4], 0
    %25 = vsyncpa [#allocation7], 0
    %26 = vsyncpa [#allocation10], 0
    %27 = vsyncpa [#allocation13], 0
    %28 = vsyncpa [#allocation16], 0
    %29 = vsyncpa [#allocation19], 0
    %30 = vsyncpa [#allocation5], 0
    // Predicated region
    $region2: #{tpu_custom_call.1} parent=1 // pred_check
      _
    $region3: #{tpu_custom_call.1} parent=1 // pred_check_branch
      %32 = sbr.rel (0) target = $region5
    $region4: #{tpu_custom_call.1} parent=1 // pred_region
      _
    $region5: #{tpu_custom_call.1} parent=1 // pred_fallthru
      _
    // Predicated region
    $region6: #{tpu_custom_call.1} parent=1 // pred_check
      _
    $region7: #{tpu_custom_call.1} parent=1 // pred_check_branch
      %34 = sbr.rel (0) target = $region9
    $region8: #{tpu_custom_call.1} parent=1 // pred_region
      _
    $region9: #{tpu_custom_call.1} parent=1 // pred_fallthru
      _
    // Predicated region
    $region10: #{tpu_custom_call.1} parent=1 // pred_check
      _
    $region11: #{tpu_custom_call.1} parent=1 // pred_check_branch
      %36 = sbr.rel (0) target = $region13
    $region12: #{tpu_custom_call.1} parent=1 // pred_region
      %s38 = ssub.s32 16, 16
      %39 = vsyncadd [#allocation4], %s38
      %s41 = sshll.u32 [#allocation3], 4
      %s42 = int_to_ptr.vmem [resolvable:$true] %s41
      %44 = dma.hbm_to_vmem [thread:$0]  %s2, 16, %s42, [#allocation4]
    $region13: #{tpu_custom_call.1} parent=1 // pred_fallthru
      _
    // Predicated region
    $region14: #{tpu_custom_call.1} parent=1 // pred_check
      _
    $region15: #{tpu_custom_call.1} parent=1 // pred_check_branch
      %46 = sbr.rel (0) target = $region17
    $region16: #{tpu_custom_call.1} parent=1 // pred_region
      _
    $region17: #{tpu_custom_call.1} parent=1 // pred_fallthru
      _
    // Predicated region
    $region18: #{tpu_custom_call.1} parent=1 // pred_check
      _
    $region19: #{tpu_custom_call.1} parent=1 // pred_check_branch
      %48 = sbr.rel (0) target = $region21
    $region20: #{tpu_custom_call.1} parent=1 // pred_region
      %s50 = ssub.s32 16, 16
      %51 = vsyncadd [#allocation7], %s50
      %s53 = sshll.u32 [#allocation6], 4
      %s54 = int_to_ptr.vmem [resolvable:$true] %s53
      %56 = dma.hbm_to_vmem [thread:$0]  %s4, 16, %s54, [#allocation7]
    $region21: #{tpu_custom_call.1} parent=1 // pred_fallthru
      _
    // Predicated region
    $region22: #{tpu_custom_call.1} parent=1 // pred_check
      _
    $region23: #{tpu_custom_call.1} parent=1 // pred_check_branch
      %58 = sbr.rel (0) target = $region25
    $region24: #{tpu_custom_call.1} parent=1 // pred_region
      %s60 = ssub.s32 2048, 2048
      %61 = vsyncadd [#allocation7], %s60
      %s62 = sshll.u32 [#allocation8], 4
      %s63 = int_to_ptr.vmem [resolvable:$true] %s62
      %68 = dma.hbm_to_vmem [thread:$0]  %s5, 2048, %s63, [#allocation7], 128, 128, 8
    $region25: #{tpu_custom_call.1} parent=1 // pred_fallthru
      _
    // Predicated region
    $region26: #{tpu_custom_call.1} parent=1 // pred_check
      _
    $region27: #{tpu_custom_call.1} parent=1 // pred_check_branch
      %70 = sbr.rel (0) target = $region29
    $region28: #{tpu_custom_call.1} parent=1 // pred_region
      %s72 = ssub.s32 32, 32
      %73 = vsyncadd [#allocation10], %s72
      %s75 = sshll.u32 [#allocation9], 4
      %s76 = int_to_ptr.vmem [resolvable:$true] %s75
      %78 = dma.hbm_to_vmem [thread:$0]  %s6, 32, %s76, [#allocation10]
    $region29: #{tpu_custom_call.1} parent=1 // pred_fallthru
      _
    // Predicated region
    $region30: #{tpu_custom_call.1} parent=1 // pred_check
      _
    $region31: #{tpu_custom_call.1} parent=1 // pred_check_branch
      %80 = sbr.rel (0) target = $region33
    $region32: #{tpu_custom_call.1} parent=1 // pred_region
      _
    $region33: #{tpu_custom_call.1} parent=1 // pred_fallthru
      _
    // Predicated region
    $region34: #{tpu_custom_call.1} parent=1 // pred_check
      _
    $region35: #{tpu_custom_call.1} parent=1 // pred_check_branch
      %82 = sbr.rel (0) target = $region37
    $region36: #{tpu_custom_call.1} parent=1 // pred_region
      %s84 = ssub.s32 64, 64
      %85 = vsyncadd [#allocation10], %s84
      %s87 = sshll.u32 [#allocation11], 4
      %s88 = int_to_ptr.vmem [resolvable:$true] %s87
      %90 = dma.hbm_to_vmem [thread:$0]  %s8, 64, %s88, [#allocation10]
    $region37: #{tpu_custom_call.1} parent=1 // pred_fallthru
      _
    // Predicated region
    $region38: #{tpu_custom_call.1} parent=1 // pred_check
      _
    $region39: #{tpu_custom_call.1} parent=1 // pred_check_branch
      %92 = sbr.rel (0) target = $region41
    $region40: #{tpu_custom_call.1} parent=1 // pred_region
      %s94 = ssub.s32 4096, 4096
      %95 = vsyncadd [#allocation13], %s94
      %s96 = sshll.u32 [#allocation12], 4
      %s97 = int_to_ptr.vmem [resolvable:$true] %s96
      %102 = dma.hbm_to_vmem [thread:$0]  %s9, 4096, %s97, [#allocation13], 64, 64, 4
    $region41: #{tpu_custom_call.1} parent=1 // pred_fallthru
      _
    // Predicated region
    $region42: #{tpu_custom_call.1} parent=1 // pred_check
      _
    $region43: #{tpu_custom_call.1} parent=1 // pred_check_branch
      %104 = sbr.rel (0) target = $region45
    $region44: #{tpu_custom_call.1} parent=1 // pred_region
      %s106 = ssub.s32 16, 16
      %107 = vsyncadd [#allocation13], %s106
      %s109 = sshll.u32 [#allocation14], 4
      %s110 = int_to_ptr.vmem [resolvable:$true] %s109
      %112 = dma.hbm_to_vmem [thread:$0]  %s10, 16, %s110, [#allocation13]
    $region45: #{tpu_custom_call.1} parent=1 // pred_fallthru
      _
    // Predicated region
    $region46: #{tpu_custom_call.1} parent=1 // pred_check
      _
    $region47: #{tpu_custom_call.1} parent=1 // pred_check_branch
      %114 = sbr.rel (0) target = $region49
    $region48: #{tpu_custom_call.1} parent=1 // pred_region
      %s116 = ssub.s32 1024, 1024
      %117 = vsyncadd [#allocation16], %s116
      %s118 = sshll.u32 [#allocation15], 4
      %s119 = int_to_ptr.vmem [resolvable:$true] %s118
      %124 = dma.hbm_to_vmem [thread:$0]  %s11, 1024, %s119, [#allocation16], 64, 64, 4
    $region49: #{tpu_custom_call.1} parent=1 // pred_fallthru
      _
    // Predicated region
    $region50: #{tpu_custom_call.1} parent=1 // pred_check
      _
    $region51: #{tpu_custom_call.1} parent=1 // pred_check_branch
      %126 = sbr.rel (0) target = $region53
    $region52: #{tpu_custom_call.1} parent=1 // pred_region
      _
    $region53: #{tpu_custom_call.1} parent=1 // pred_fallthru
      _
    // Predicated region
    $region54: #{tpu_custom_call.1} parent=1 // pred_check
      _
    $region55: #{tpu_custom_call.1} parent=1 // pred_check_branch
      %128 = sbr.rel (0) target = $region57
    $region56: #{tpu_custom_call.1} parent=1 // pred_region
      %s130 = ssub.s32 1024, 1024
      %131 = vsyncadd [#allocation16], %s130
      %s132 = sshll.u32 [#allocation17], 4
      %s133 = int_to_ptr.vmem [resolvable:$true] %s132
      %138 = dma.hbm_to_vmem [thread:$0]  %s13, 1024, %s133, [#allocation16], 64, 64, 4
    $region57: #{tpu_custom_call.1} parent=1 // pred_fallthru
      _
    // Predicated region
    $region58: #{tpu_custom_call.1} parent=1 // pred_check
      _
    $region59: #{tpu_custom_call.1} parent=1 // pred_check_branch
      %140 = sbr.rel (0) target = $region61
    $region60: #{tpu_custom_call.1} parent=1 // pred_region
      _
    $region61: #{tpu_custom_call.1} parent=1 // pred_fallthru
      _
    // Predicated region
    $region62: #{tpu_custom_call.1} parent=1 // pred_check
      _
    $region63: #{tpu_custom_call.1} parent=1 // pred_check_branch
      %142 = sbr.rel (0) target = $region65
    $region64: #{tpu_custom_call.1} parent=1 // pred_region
      %s144 = ssub.s32 1024, 1024
      %145 = vsyncadd [#allocation19], %s144
      %s146 = sshll.u32 [#allocation18], 4
      %s147 = int_to_ptr.vmem [resolvable:$true] %s146
      %152 = dma.hbm_to_vmem [thread:$0]  %s15, 1024, %s147, [#allocation19], 64, 64, 4
    $region65: #{tpu_custom_call.1} parent=1 // pred_fallthru
      _
    // Predicated region
    $region66: #{tpu_custom_call.1} parent=1 // pred_check
      _
    $region67: #{tpu_custom_call.1} parent=1 // pred_check_branch
      %154 = sbr.rel (0) target = $region69
    $region68: #{tpu_custom_call.1} parent=1 // pred_region
      _
    $region69: #{tpu_custom_call.1} parent=1 // pred_fallthru
      _
    // Predicated region
    $region70: #{tpu_custom_call.1} parent=1 // pred_check
      _
    $region71: #{tpu_custom_call.1} parent=1 // pred_check_branch
      %156 = sbr.rel (0) target = $region73
    $region72: #{tpu_custom_call.1} parent=1 // pred_region
      %s158 = ssub.s32 2048, 2048
      %159 = vsyncadd [#allocation19], %s158
      %s160 = sshll.u32 [#allocation20], 4
      %s161 = int_to_ptr.vmem [resolvable:$true] %s160
      %166 = dma.hbm_to_vmem [thread:$0]  %s17, 2048, %s161, [#allocation19], 128, 128, 8
    $region73: #{tpu_custom_call.1} parent=1 // pred_fallthru
      _
    // Predicated region
    $region74: #{tpu_custom_call.1} parent=1 // pred_check
      _
    $region75: #{tpu_custom_call.1} parent=1 // pred_check_branch
      %168 = sbr.rel (0) target = $region77
    $region76: #{tpu_custom_call.1} parent=1 // pred_region
      _
    $region77: #{tpu_custom_call.1} parent=1 // pred_fallthru
      _
    // Predicated region
    $region78: #{tpu_custom_call.1} parent=1 // pred_check
      _
    $region79: #{tpu_custom_call.1} parent=1 // pred_check_branch
      %170 = sbr.rel (0) target = $region81
    $region80: #{tpu_custom_call.1} parent=1 // pred_region
      %171 = dma.done [#allocation4], 16
    $region81: #{tpu_custom_call.1} parent=1 // pred_fallthru
      _
    // Predicated region
    $region82: #{tpu_custom_call.1} parent=1 // pred_check
      _
    $region83: #{tpu_custom_call.1} parent=1 // pred_check_branch
      %173 = sbr.rel (0) target = $region85
    $region84: #{tpu_custom_call.1} parent=1 // pred_region
      %174 = dma.done [#allocation7], 16
    $region85: #{tpu_custom_call.1} parent=1 // pred_fallthru
      _
    // Predicated region
    $region86: #{tpu_custom_call.1} parent=1 // pred_check
      _
    $region87: #{tpu_custom_call.1} parent=1 // pred_check_branch
      %176 = sbr.rel (0) target = $region89
    $region88: #{tpu_custom_call.1} parent=1 // pred_region
      %177 = dma.done [#allocation7], 2048
    $region89: #{tpu_custom_call.1} parent=1 // pred_fallthru
      _
    // Predicated region
    $region90: #{tpu_custom_call.1} parent=1 // pred_check
      _
    $region91: #{tpu_custom_call.1} parent=1 // pred_check_branch
      %179 = sbr.rel (0) target = $region93
    $region92: #{tpu_custom_call.1} parent=1 // pred_region
      %180 = dma.done [#allocation10], 32
    $region93: #{tpu_custom_call.1} parent=1 // pred_fallthru
      _
    // Predicated region
    $region94: #{tpu_custom_call.1} parent=1 // pred_check
      _
    $region95: #{tpu_custom_call.1} parent=1 // pred_check_branch
      %182 = sbr.rel (0) target = $region97
    $region96: #{tpu_custom_call.1} parent=1 // pred_region
      %183 = dma.done [#allocation10], 64
    $region97: #{tpu_custom_call.1} parent=1 // pred_fallthru
      _
    // Predicated region
    $region98: #{tpu_custom_call.1} parent=1 // pred_check
      _
    $region99: #{tpu_custom_call.1} parent=1 // pred_check_branch
      %185 = sbr.rel (0) target = $region101
    $region100: #{tpu_custom_call.1} parent=1 // pred_region
      %186 = dma.done [#allocation13], 4096
    $region101: #{tpu_custom_call.1} parent=1 // pred_fallthru
      _
    // Predicated region
    $region102: #{tpu_custom_call.1} parent=1 // pred_check
      _
    $region103: #{tpu_custom_call.1} parent=1 // pred_check_branch
      %188 = sbr.rel (0) target = $region105
    $region104: #{tpu_custom_call.1} parent=1 // pred_region
      %189 = dma.done [#allocation13], 16
    $region105: #{tpu_custom_call.1} parent=1 // pred_fallthru
      _
    // Predicated region
    $region106: #{tpu_custom_call.1} parent=1 // pred_check
      _
    $region107: #{tpu_custom_call.1} parent=1 // pred_check_branch
      %191 = sbr.rel (0) target = $region109
    $region108: #{tpu_custom_call.1} parent=1 // pred_region
      %192 = dma.done [#allocation16], 1024
    $region109: #{tpu_custom_call.1} parent=1 // pred_fallthru
      _
    // Predicated region
    $region110: #{tpu_custom_call.1} parent=1 // pred_check
      _
    $region111: #{tpu_custom_call.1} parent=1 // pred_check_branch
      %194 = sbr.rel (0) target = $region113
    $region112: #{tpu_custom_call.1} parent=1 // pred_region
      %195 = dma.done [#allocation16], 1024
    $region113: #{tpu_custom_call.1} parent=1 // pred_fallthru
      _
    // Predicated region
    $region114: #{tpu_custom_call.1} parent=1 // pred_check
      _
    $region115: #{tpu_custom_call.1} parent=1 // pred_check_branch
      %197 = sbr.rel (0) target = $region117
    $region116: #{tpu_custom_call.1} parent=1 // pred_region
      %198 = dma.done [#allocation19], 1024
    $region117: #{tpu_custom_call.1} parent=1 // pred_fallthru
      _
    // Predicated region
    $region118: #{tpu_custom_call.1} parent=1 // pred_check
      _
    $region119: #{tpu_custom_call.1} parent=1 // pred_check_branch
      %200 = sbr.rel (0) target = $region121
    $region120: #{tpu_custom_call.1} parent=1 // pred_region
      %201 = dma.done [#allocation19], 2048
    $region121: #{tpu_custom_call.1} parent=1 // pred_fallthru
      _
    %v203 = vld [vmem:[%s0] sm:$0xff]
    %v204 = vld [vmem:[%s0 + $0x8] sm:$0xff]
    %v205 = vld [vmem:[%s0 + $0x10] sm:$0xff]
    %v206 = vld [vmem:[%s0 + $0x18] sm:$0xff]
    %v207 = vld [vmem:[%s0 + $0x20] sm:$0xff]
    %v208 = vld [vmem:[%s0 + $0x28] sm:$0xff]
    %v209 = vld [vmem:[%s0 + $0x30] sm:$0xff]
    %v210 = vld [vmem:[%s0 + $0x38] sm:$0xff]
    %v211 = vld [vmem:[%s0 + $0x40] sm:$0xff]
    %v212 = vld [vmem:[%s0 + $0x48] sm:$0xff]
    %v213 = vld [vmem:[%s0 + $0x50] sm:$0xff]
    %v214 = vld [vmem:[%s0 + $0x58] sm:$0xff]
    %v215 = vld [vmem:[%s0 + $0x60] sm:$0xff]
    %v216 = vld [vmem:[%s0 + $0x68] sm:$0xff]
    %v217 = vld [vmem:[%s0 + $0x70] sm:$0xff]
    %v218 = vld [vmem:[%s0 + $0x78] sm:$0xff]
    %v219 = vld [vmem:[%s0 + $0x80] sm:$0xff]
    %v220 = vld [vmem:[%s0 + $0x88] sm:$0xff]
    %v221 = vld [vmem:[%s0 + $0x90] sm:$0xff]
    %v222 = vld [vmem:[%s0 + $0x98] sm:$0xff]
    %v223 = vld [vmem:[%s0 + $0xa0] sm:$0xff]
    %v224 = vld [vmem:[%s0 + $0xa8] sm:$0xff]
    %v225 = vld [vmem:[%s0 + $0xb0] sm:$0xff]
    %v226 = vld [vmem:[%s0 + $0xb8] sm:$0xff]
    %v227 = vld [vmem:[%s0 + $0xc0] sm:$0xff]
    %v228 = vld [vmem:[%s0 + $0xc8] sm:$0xff]
    %v229 = vld [vmem:[%s0 + $0xd0] sm:$0xff]
    %v230 = vld [vmem:[%s0 + $0xd8] sm:$0xff]
    %v231 = vld [vmem:[%s0 + $0xe0] sm:$0xff]
    %v232 = vld [vmem:[%s0 + $0xe8] sm:$0xff]
    %v233 = vld [vmem:[%s0 + $0xf0] sm:$0xff]
    %v234 = vld [vmem:[%s0 + $0xf8] sm:$0xff]
    %v235 = vld [vmem:[%s0 + $0x100] sm:$0xff]
    %v236 = vld [vmem:[%s0 + $0x108] sm:$0xff]
    %v237 = vld [vmem:[%s0 + $0x110] sm:$0xff]
    %v238 = vld [vmem:[%s0 + $0x118] sm:$0xff]
    %v239 = vld [vmem:[%s0 + $0x120] sm:$0xff]
    %v240 = vld [vmem:[%s0 + $0x128] sm:$0xff]
    %v241 = vld [vmem:[%s0 + $0x130] sm:$0xff]
    %v242 = vld [vmem:[%s0 + $0x138] sm:$0xff]
    %v243 = vld [vmem:[%s0 + $0x140] sm:$0xff]
    %v244 = vld [vmem:[%s0 + $0x148] sm:$0xff]
    %v245 = vld [vmem:[%s0 + $0x150] sm:$0xff]
    %v246 = vld [vmem:[%s0 + $0x158] sm:$0xff]
    %v247 = vld [vmem:[%s0 + $0x160] sm:$0xff]
    %v248 = vld [vmem:[%s0 + $0x168] sm:$0xff]
    %v249 = vld [vmem:[%s0 + $0x170] sm:$0xff]
    %v250 = vld [vmem:[%s0 + $0x178] sm:$0xff]
    %v251 = vld [vmem:[%s0 + $0x180] sm:$0xff]
    %v252 = vld [vmem:[%s0 + $0x188] sm:$0xff]
    %v253 = vld [vmem:[%s0 + $0x190] sm:$0xff]
    %v254 = vld [vmem:[%s0 + $0x198] sm:$0xff]
    %v255 = vld [vmem:[%s0 + $0x1a0] sm:$0xff]
    %v256 = vld [vmem:[%s0 + $0x1a8] sm:$0xff]
    %v257 = vld [vmem:[%s0 + $0x1b0] sm:$0xff]
    %v258 = vld [vmem:[%s0 + $0x1b8] sm:$0xff]
    %v259 = vld [vmem:[%s0 + $0x1c0] sm:$0xff]
    %v260 = vld [vmem:[%s0 + $0x1c8] sm:$0xff]
    %v261 = vld [vmem:[%s0 + $0x1d0] sm:$0xff]
    %v262 = vld [vmem:[%s0 + $0x1d8] sm:$0xff]
    %v263 = vld [vmem:[%s0 + $0x1e0] sm:$0xff]
    %v264 = vld [vmem:[%s0 + $0x1e8] sm:$0xff]
    %v265 = vld [vmem:[%s0 + $0x1f0] sm:$0xff]
    %v266 = vld [vmem:[%s0 + $0x1f8] sm:$0xff]
    %v267 = vld [vmem:[%s1] sm:$0x7]
    %269 = vset.pattern.permute.xlu0 0
    %270 = vperm.xlu0 %269, %v203
    %v271 = vpop.permute.xlu0 %270
    %274 = vset.pattern.permute.xlu0 0
    %275 = vperm.xlu0 %274, %v204
    %v276 = vpop.permute.xlu0 %275
    %279 = vset.pattern.permute.xlu0 0
    %280 = vperm.xlu0 %279, %v205
    %v281 = vpop.permute.xlu0 %280
    %284 = vset.pattern.permute.xlu0 0
    %285 = vperm.xlu0 %284, %v206
    %v286 = vpop.permute.xlu0 %285
    %289 = vset.pattern.permute.xlu0 0
    %290 = vperm.xlu0 %289, %v207
    %v291 = vpop.permute.xlu0 %290
    %294 = vset.pattern.permute.xlu0 0
    %295 = vperm.xlu0 %294, %v208
    %v296 = vpop.permute.xlu0 %295
    %299 = vset.pattern.permute.xlu0 0
    %300 = vperm.xlu0 %299, %v209
    %v301 = vpop.permute.xlu0 %300
    %304 = vset.pattern.permute.xlu0 0
    %305 = vperm.xlu0 %304, %v210
    %v306 = vpop.permute.xlu0 %305
    %309 = vset.pattern.permute.xlu0 0
    %310 = vperm.xlu0 %309, %v211
    %v311 = vpop.permute.xlu0 %310
    %314 = vset.pattern.permute.xlu0 0
    %315 = vperm.xlu0 %314, %v212
    %v316 = vpop.permute.xlu0 %315
    %319 = vset.pattern.permute.xlu0 0
    %320 = vperm.xlu0 %319, %v213
    %v321 = vpop.permute.xlu0 %320
    %324 = vset.pattern.permute.xlu0 0
    %325 = vperm.xlu0 %324, %v214
    %v326 = vpop.permute.xlu0 %325
    %329 = vset.pattern.permute.xlu0 0
    %330 = vperm.xlu0 %329, %v215
    %v331 = vpop.permute.xlu0 %330
    %334 = vset.pattern.permute.xlu0 0
    %335 = vperm.xlu0 %334, %v216
    %v336 = vpop.permute.xlu0 %335
    %339 = vset.pattern.permute.xlu0 0
    %340 = vperm.xlu0 %339, %v217
    %v341 = vpop.permute.xlu0 %340
    %344 = vset.pattern.permute.xlu0 0
    %345 = vperm.xlu0 %344, %v218
    %v346 = vpop.permute.xlu0 %345
    %349 = vset.pattern.permute.xlu0 0
    %350 = vperm.xlu0 %349, %v219
    %v351 = vpop.permute.xlu0 %350
    %354 = vset.pattern.permute.xlu0 0
    %355 = vperm.xlu0 %354, %v220
    %v356 = vpop.permute.xlu0 %355
    %359 = vset.pattern.permute.xlu0 0
    %360 = vperm.xlu0 %359, %v221
    %v361 = vpop.permute.xlu0 %360
    %364 = vset.pattern.permute.xlu0 0
    %365 = vperm.xlu0 %364, %v222
    %v366 = vpop.permute.xlu0 %365
    %369 = vset.pattern.permute.xlu0 0
    %370 = vperm.xlu0 %369, %v223
    %v371 = vpop.permute.xlu0 %370
    %374 = vset.pattern.permute.xlu0 0
    %375 = vperm.xlu0 %374, %v224
    %v376 = vpop.permute.xlu0 %375
    %379 = vset.pattern.permute.xlu0 0
    %380 = vperm.xlu0 %379, %v225
    %v381 = vpop.permute.xlu0 %380
    %384 = vset.pattern.permute.xlu0 0
    %385 = vperm.xlu0 %384, %v226
    %v386 = vpop.permute.xlu0 %385
    %389 = vset.pattern.permute.xlu0 0
    %390 = vperm.xlu0 %389, %v227
    %v391 = vpop.permute.xlu0 %390
    %394 = vset.pattern.permute.xlu0 0
    %395 = vperm.xlu0 %394, %v228
    %v396 = vpop.permute.xlu0 %395
    %399 = vset.pattern.permute.xlu0 0
    %400 = vperm.xlu0 %399, %v229
    %v401 = vpop.permute.xlu0 %400
    %404 = vset.pattern.permute.xlu0 0
    %405 = vperm.xlu0 %404, %v230
    %v406 = vpop.permute.xlu0 %405
    %409 = vset.pattern.permute.xlu0 0
    %410 = vperm.xlu0 %409, %v231
    %v411 = vpop.permute.xlu0 %410
    %414 = vset.pattern.permute.xlu0 0
    %415 = vperm.xlu0 %414, %v232
    %v416 = vpop.permute.xlu0 %415
    %419 = vset.pattern.permute.xlu0 0
    %420 = vperm.xlu0 %419, %v233
    %v421 = vpop.permute.xlu0 %420
    %424 = vset.pattern.permute.xlu0 0
    %425 = vperm.xlu0 %424, %v234
    %v426 = vpop.permute.xlu0 %425
    %429 = vset.pattern.permute.xlu0 0
    %430 = vperm.xlu0 %429, %v235
    %v431 = vpop.permute.xlu0 %430
    %434 = vset.pattern.permute.xlu0 0
    %435 = vperm.xlu0 %434, %v236
    %v436 = vpop.permute.xlu0 %435
    %439 = vset.pattern.permute.xlu0 0
    %440 = vperm.xlu0 %439, %v237
    %v441 = vpop.permute.xlu0 %440
    %444 = vset.pattern.permute.xlu0 0
    %445 = vperm.xlu0 %444, %v238
    %v446 = vpop.permute.xlu0 %445
    %449 = vset.pattern.permute.xlu0 0
    %450 = vperm.xlu0 %449, %v239
    %v451 = vpop.permute.xlu0 %450
    %454 = vset.pattern.permute.xlu0 0
    %455 = vperm.xlu0 %454, %v240
    %v456 = vpop.permute.xlu0 %455
    %459 = vset.pattern.permute.xlu0 0
    %460 = vperm.xlu0 %459, %v241
    %v461 = vpop.permute.xlu0 %460
    %464 = vset.pattern.permute.xlu0 0
    %465 = vperm.xlu0 %464, %v242
    %v466 = vpop.permute.xlu0 %465
    %469 = vset.pattern.permute.xlu0 0
    %470 = vperm.xlu0 %469, %v243
    %v471 = vpop.permute.xlu0 %470
    %474 = vset.pattern.permute.xlu0 0
    %475 = vperm.xlu0 %474, %v244
    %v476 = vpop.permute.xlu0 %475
    %479 = vset.pattern.permute.xlu0 0
    %480 = vperm.xlu0 %479, %v245
    %v481 = vpop.permute.xlu0 %480
    %484 = vset.pattern.permute.xlu0 0
    %485 = vperm.xlu0 %484, %v246
    %v486 = vpop.permute.xlu0 %485
    %489 = vset.pattern.permute.xlu0 0
    %490 = vperm.xlu0 %489, %v247
    %v491 = vpop.permute.xlu0 %490
    %494 = vset.pattern.permute.xlu0 0
    %495 = vperm.xlu0 %494, %v248
    %v496 = vpop.permute.xlu0 %495
    %499 = vset.pattern.permute.xlu0 0
    %500 = vperm.xlu0 %499, %v249
    %v501 = vpop.permute.xlu0 %500
    %504 = vset.pattern.permute.xlu0 0
    %505 = vperm.xlu0 %504, %v250
    %v506 = vpop.permute.xlu0 %505
    %509 = vset.pattern.permute.xlu0 0
    %510 = vperm.xlu0 %509, %v251
    %v511 = vpop.permute.xlu0 %510
    %514 = vset.pattern.permute.xlu0 0
    %515 = vperm.xlu0 %514, %v252
    %v516 = vpop.permute.xlu0 %515
    %519 = vset.pattern.permute.xlu0 0
    %520 = vperm.xlu0 %519, %v253
    %v521 = vpop.permute.xlu0 %520
    %524 = vset.pattern.permute.xlu0 0
    %525 = vperm.xlu0 %524, %v254
    %v526 = vpop.permute.xlu0 %525
    %529 = vset.pattern.permute.xlu0 0
    %530 = vperm.xlu0 %529, %v255
    %v531 = vpop.permute.xlu0 %530
    %534 = vset.pattern.permute.xlu0 0
    %535 = vperm.xlu0 %534, %v256
    %v536 = vpop.permute.xlu0 %535
    %539 = vset.pattern.permute.xlu0 0
    %540 = vperm.xlu0 %539, %v257
    %v541 = vpop.permute.xlu0 %540
    %544 = vset.pattern.permute.xlu0 0
    %545 = vperm.xlu0 %544, %v258
    %v546 = vpop.permute.xlu0 %545
    %549 = vset.pattern.permute.xlu0 0
    %550 = vperm.xlu0 %549, %v259
    %v551 = vpop.permute.xlu0 %550
    %554 = vset.pattern.permute.xlu0 0
    %555 = vperm.xlu0 %554, %v260
    %v556 = vpop.permute.xlu0 %555
    %559 = vset.pattern.permute.xlu0 0
    %560 = vperm.xlu0 %559, %v261
    %v561 = vpop.permute.xlu0 %560
    %564 = vset.pattern.permute.xlu0 0
    %565 = vperm.xlu0 %564, %v262
    %v566 = vpop.permute.xlu0 %565
    %569 = vset.pattern.permute.xlu0 0
    %570 = vperm.xlu0 %569, %v263
    %v571 = vpop.permute.xlu0 %570
    %574 = vset.pattern.permute.xlu0 0
    %575 = vperm.xlu0 %574, %v264
    %v576 = vpop.permute.xlu0 %575
    %579 = vset.pattern.permute.xlu0 0
    %580 = vperm.xlu0 %579, %v265
    %v581 = vpop.permute.xlu0 %580
    %584 = vset.pattern.permute.xlu0 0
    %585 = vperm.xlu0 %584, %v266
    %v586 = vpop.permute.xlu0 %585
    %v588 = vlaneseq
    %v589 = vshrl.u32 %v588, 7
    %v590 = vsub.s32 0, %v589
    %v591 = vrot.slane %v267, %v590
    %v592 = vmul.f32 %v271, %v591
    %v593 = vmul.f32 %v276, %v591
    %v594 = vmul.f32 %v281, %v591
    %v595 = vmul.f32 %v286, %v591
    %v596 = vmul.f32 %v291, %v591
    %v597 = vmul.f32 %v296, %v591
    %v598 = vmul.f32 %v301, %v591
    %v599 = vmul.f32 %v306, %v591
    %v600 = vmul.f32 %v311, %v591
    %v601 = vmul.f32 %v316, %v591
    %v602 = vmul.f32 %v321, %v591
    %v603 = vmul.f32 %v326, %v591
    %v604 = vmul.f32 %v331, %v591
    %v605 = vmul.f32 %v336, %v591
    %v606 = vmul.f32 %v341, %v591
    %v607 = vmul.f32 %v346, %v591
    %v608 = vmul.f32 %v351, %v591
    %v609 = vmul.f32 %v356, %v591
    %v610 = vmul.f32 %v361, %v591
    %v611 = vmul.f32 %v366, %v591
    %v612 = vmul.f32 %v371, %v591
    %v613 = vmul.f32 %v376, %v591
    %v614 = vmul.f32 %v381, %v591
    %v615 = vmul.f32 %v386, %v591
    %v616 = vmul.f32 %v391, %v591
    %v617 = vmul.f32 %v396, %v591
    %v618 = vmul.f32 %v401, %v591
    %v619 = vmul.f32 %v406, %v591
    %v620 = vmul.f32 %v411, %v591
    %v621 = vmul.f32 %v416, %v591
    %v622 = vmul.f32 %v421, %v591
    %v623 = vmul.f32 %v426, %v591
    %v624 = vmul.f32 %v431, %v591
    %v625 = vmul.f32 %v436, %v591
    %v626 = vmul.f32 %v441, %v591
    %v627 = vmul.f32 %v446, %v591
    %v628 = vmul.f32 %v451, %v591
    %v629 = vmul.f32 %v456, %v591
    %v630 = vmul.f32 %v461, %v591
    %v631 = vmul.f32 %v466, %v591
    %v632 = vmul.f32 %v471, %v591
    %v633 = vmul.f32 %v476, %v591
    %v634 = vmul.f32 %v481, %v591
    %v635 = vmul.f32 %v486, %v591
    %v636 = vmul.f32 %v491, %v591
    %v637 = vmul.f32 %v496, %v591
    %v638 = vmul.f32 %v501, %v591
    %v639 = vmul.f32 %v506, %v591
    %v640 = vmul.f32 %v511, %v591
    %v641 = vmul.f32 %v516, %v591
    %v642 = vmul.f32 %v521, %v591
    %v643 = vmul.f32 %v526, %v591
    %v644 = vmul.f32 %v531, %v591
    %v645 = vmul.f32 %v536, %v591
    %v646 = vmul.f32 %v541, %v591
    %v647 = vmul.f32 %v546, %v591
    %v648 = vmul.f32 %v551, %v591
    %v649 = vmul.f32 %v556, %v591
    %v650 = vmul.f32 %v561, %v591
    %v651 = vmul.f32 %v566, %v591
    %v652 = vmul.f32 %v571, %v591
    %v653 = vmul.f32 %v576, %v591
    %v654 = vmul.f32 %v581, %v591
    %v655 = vmul.f32 %v586, %v591
    %656 = vset.pattern.permute.xlu0 1
    %657 = vperm.xlu0 %656, %v203
    %v658 = vpop.permute.xlu0 %657
    %660 = vset.pattern.permute.xlu0 1
    %661 = vperm.xlu0 %660, %v204
    %v662 = vpop.permute.xlu0 %661
    %664 = vset.pattern.permute.xlu0 1
    %665 = vperm.xlu0 %664, %v205
    %v666 = vpop.permute.xlu0 %665
    %668 = vset.pattern.permute.xlu0 1
    %669 = vperm.xlu0 %668, %v206
    %v670 = vpop.permute.xlu0 %669
    %672 = vset.pattern.permute.xlu0 1
    %673 = vperm.xlu0 %672, %v207
    %v674 = vpop.permute.xlu0 %673
    %676 = vset.pattern.permute.xlu0 1
    %677 = vperm.xlu0 %676, %v208
    %v678 = vpop.permute.xlu0 %677
    %680 = vset.pattern.permute.xlu0 1
    %681 = vperm.xlu0 %680, %v209
    %v682 = vpop.permute.xlu0 %681
    %684 = vset.pattern.permute.xlu0 1
    %685 = vperm.xlu0 %684, %v210
    %v686 = vpop.permute.xlu0 %685
    %688 = vset.pattern.permute.xlu0 1
    %689 = vperm.xlu0 %688, %v211
    %v690 = vpop.permute.xlu0 %689
    %692 = vset.pattern.permute.xlu0 1
    %693 = vperm.xlu0 %692, %v212
    %v694 = vpop.permute.xlu0 %693
    %696 = vset.pattern.permute.xlu0 1
    %697 = vperm.xlu0 %696, %v213
    %v698 = vpop.permute.xlu0 %697
    %700 = vset.pattern.permute.xlu0 1
    %701 = vperm.xlu0 %700, %v214
    %v702 = vpop.permute.xlu0 %701
    %704 = vset.pattern.permute.xlu0 1
    %705 = vperm.xlu0 %704, %v215
    %v706 = vpop.permute.xlu0 %705
    %708 = vset.pattern.permute.xlu0 1
    %709 = vperm.xlu0 %708, %v216
    %v710 = vpop.permute.xlu0 %709
    %712 = vset.pattern.permute.xlu0 1
    %713 = vperm.xlu0 %712, %v217
    %v714 = vpop.permute.xlu0 %713
    %716 = vset.pattern.permute.xlu0 1
    %717 = vperm.xlu0 %716, %v218
    %v718 = vpop.permute.xlu0 %717
    %720 = vset.pattern.permute.xlu0 1
    %721 = vperm.xlu0 %720, %v219
    %v722 = vpop.permute.xlu0 %721
    %724 = vset.pattern.permute.xlu0 1
    %725 = vperm.xlu0 %724, %v220
    %v726 = vpop.permute.xlu0 %725
    %728 = vset.pattern.permute.xlu0 1
    %729 = vperm.xlu0 %728, %v221
    %v730 = vpop.permute.xlu0 %729
    %732 = vset.pattern.permute.xlu0 1
    %733 = vperm.xlu0 %732, %v222
    %v734 = vpop.permute.xlu0 %733
    %736 = vset.pattern.permute.xlu0 1
    %737 = vperm.xlu0 %736, %v223
    %v738 = vpop.permute.xlu0 %737
    %740 = vset.pattern.permute.xlu0 1
    %741 = vperm.xlu0 %740, %v224
    %v742 = vpop.permute.xlu0 %741
    %744 = vset.pattern.permute.xlu0 1
    %745 = vperm.xlu0 %744, %v225
    %v746 = vpop.permute.xlu0 %745
    %748 = vset.pattern.permute.xlu0 1
    %749 = vperm.xlu0 %748, %v226
    %v750 = vpop.permute.xlu0 %749
    %752 = vset.pattern.permute.xlu0 1
    %753 = vperm.xlu0 %752, %v227
    %v754 = vpop.permute.xlu0 %753
    %756 = vset.pattern.permute.xlu0 1
    %757 = vperm.xlu0 %756, %v228
    %v758 = vpop.permute.xlu0 %757
    %760 = vset.pattern.permute.xlu0 1
    %761 = vperm.xlu0 %760, %v229
    %v762 = vpop.permute.xlu0 %761
    %764 = vset.pattern.permute.xlu0 1
    %765 = vperm.xlu0 %764, %v230
    %v766 = vpop.permute.xlu0 %765
    %768 = vset.pattern.permute.xlu0 1
    %769 = vperm.xlu0 %768, %v231
    %v770 = vpop.permute.xlu0 %769
    %772 = vset.pattern.permute.xlu0 1
    %773 = vperm.xlu0 %772, %v232
    %v774 = vpop.permute.xlu0 %773
    %776 = vset.pattern.permute.xlu0 1
    %777 = vperm.xlu0 %776, %v233
    %v778 = vpop.permute.xlu0 %777
    %780 = vset.pattern.permute.xlu0 1
    %781 = vperm.xlu0 %780, %v234
    %v782 = vpop.permute.xlu0 %781
    %784 = vset.pattern.permute.xlu0 1
    %785 = vperm.xlu0 %784, %v235
    %v786 = vpop.permute.xlu0 %785
    %788 = vset.pattern.permute.xlu0 1
    %789 = vperm.xlu0 %788, %v236
    %v790 = vpop.permute.xlu0 %789
    %792 = vset.pattern.permute.xlu0 1
    %793 = vperm.xlu0 %792, %v237
    %v794 = vpop.permute.xlu0 %793
    %796 = vset.pattern.permute.xlu0 1
    %797 = vperm.xlu0 %796, %v238
    %v798 = vpop.permute.xlu0 %797
    %800 = vset.pattern.permute.xlu0 1
    %801 = vperm.xlu0 %800, %v239
    %v802 = vpop.permute.xlu0 %801
    %804 = vset.pattern.permute.xlu0 1
    %805 = vperm.xlu0 %804, %v240
    %v806 = vpop.permute.xlu0 %805
    %808 = vset.pattern.permute.xlu0 1
    %809 = vperm.xlu0 %808, %v241
    %v810 = vpop.permute.xlu0 %809
    %812 = vset.pattern.permute.xlu0 1
    %813 = vperm.xlu0 %812, %v242
    %v814 = vpop.permute.xlu0 %813
    %816 = vset.pattern.permute.xlu0 1
    %817 = vperm.xlu0 %816, %v243
    %v818 = vpop.permute.xlu0 %817
    %820 = vset.pattern.permute.xlu0 1
    %821 = vperm.xlu0 %820, %v244
    %v822 = vpop.permute.xlu0 %821
    %824 = vset.pattern.permute.xlu0 1
    %825 = vperm.xlu0 %824, %v245
    %v826 = vpop.permute.xlu0 %825
    %828 = vset.pattern.permute.xlu0 1
    %829 = vperm.xlu0 %828, %v246
    %v830 = vpop.permute.xlu0 %829
    %832 = vset.pattern.permute.xlu0 1
    %833 = vperm.xlu0 %832, %v247
    %v834 = vpop.permute.xlu0 %833
    %836 = vset.pattern.permute.xlu0 1
    %837 = vperm.xlu0 %836, %v248
    %v838 = vpop.permute.xlu0 %837
    %840 = vset.pattern.permute.xlu0 1
    %841 = vperm.xlu0 %840, %v249
    %v842 = vpop.permute.xlu0 %841
    %844 = vset.pattern.permute.xlu0 1
    %845 = vperm.xlu0 %844, %v250
    %v846 = vpop.permute.xlu0 %845
    %848 = vset.pattern.permute.xlu0 1
    %849 = vperm.xlu0 %848, %v251
    %v850 = vpop.permute.xlu0 %849
    %852 = vset.pattern.permute.xlu0 1
    %853 = vperm.xlu0 %852, %v252
    %v854 = vpop.permute.xlu0 %853
    %856 = vset.pattern.permute.xlu0 1
    %857 = vperm.xlu0 %856, %v253
    %v858 = vpop.permute.xlu0 %857
    %860 = vset.pattern.permute.xlu0 1
    %861 = vperm.xlu0 %860, %v254
    %v862 = vpop.permute.xlu0 %861
    %864 = vset.pattern.permute.xlu0 1
    %865 = vperm.xlu0 %864, %v255
    %v866 = vpop.permute.xlu0 %865
    %868 = vset.pattern.permute.xlu0 1
    %869 = vperm.xlu0 %868, %v256
    %v870 = vpop.permute.xlu0 %869
    %872 = vset.pattern.permute.xlu0 1
    %873 = vperm.xlu0 %872, %v257
    %v874 = vpop.permute.xlu0 %873
    %876 = vset.pattern.permute.xlu0 1
    %877 = vperm.xlu0 %876, %v258
    %v878 = vpop.permute.xlu0 %877
    %880 = vset.pattern.permute.xlu0 1
    %881 = vperm.xlu0 %880, %v259
    %v882 = vpop.permute.xlu0 %881
    %884 = vset.pattern.permute.xlu0 1
    %885 = vperm.xlu0 %884, %v260
    %v886 = vpop.permute.xlu0 %885
    %888 = vset.pattern.permute.xlu0 1
    %889 = vperm.xlu0 %888, %v261
    %v890 = vpop.permute.xlu0 %889
    %892 = vset.pattern.permute.xlu0 1
    %893 = vperm.xlu0 %892, %v262
    %v894 = vpop.permute.xlu0 %893
    %896 = vset.pattern.permute.xlu0 1
    %897 = vperm.xlu0 %896, %v263
    %v898 = vpop.permute.xlu0 %897
    %900 = vset.pattern.permute.xlu0 1
    %901 = vperm.xlu0 %900, %v264
    %v902 = vpop.permute.xlu0 %901
    %904 = vset.pattern.permute.xlu0 1
    %905 = vperm.xlu0 %904, %v265
    %v906 = vpop.permute.xlu0 %905
    %908 = vset.pattern.permute.xlu0 1
    %909 = vperm.xlu0 %908, %v266
    %v910 = vpop.permute.xlu0 %909
    %v912 = vlaneseq
    %v913 = vshrl.u32 %v912, 7
    %v914 = vsub.s32 1, %v913
    %v915 = vrot.slane %v267, %v914
    %v916 = vmul.f32 %v658, %v915
    %v917 = vmul.f32 %v662, %v915
    %v918 = vmul.f32 %v666, %v915
    %v919 = vmul.f32 %v670, %v915
    %v920 = vmul.f32 %v674, %v915
    %v921 = vmul.f32 %v678, %v915
    %v922 = vmul.f32 %v682, %v915
    %v923 = vmul.f32 %v686, %v915
    %v924 = vmul.f32 %v690, %v915
    %v925 = vmul.f32 %v694, %v915
    %v926 = vmul.f32 %v698, %v915
    %v927 = vmul.f32 %v702, %v915
    %v928 = vmul.f32 %v706, %v915
    %v929 = vmul.f32 %v710, %v915
    %v930 = vmul.f32 %v714, %v915
    %v931 = vmul.f32 %v718, %v915
    %v932 = vmul.f32 %v722, %v915
    %v933 = vmul.f32 %v726, %v915
    %v934 = vmul.f32 %v730, %v915
    %v935 = vmul.f32 %v734, %v915
    %v936 = vmul.f32 %v738, %v915
    %v937 = vmul.f32 %v742, %v915
    %v938 = vmul.f32 %v746, %v915
    %v939 = vmul.f32 %v750, %v915
    %v940 = vmul.f32 %v754, %v915
    %v941 = vmul.f32 %v758, %v915
    %v942 = vmul.f32 %v762, %v915
    %v943 = vmul.f32 %v766, %v915
    %v944 = vmul.f32 %v770, %v915
    %v945 = vmul.f32 %v774, %v915
    %v946 = vmul.f32 %v778, %v915
    %v947 = vmul.f32 %v782, %v915
    %v948 = vmul.f32 %v786, %v915
    %v949 = vmul.f32 %v790, %v915
    %v950 = vmul.f32 %v794, %v915
    %v951 = vmul.f32 %v798, %v915
    %v952 = vmul.f32 %v802, %v915
    %v953 = vmul.f32 %v806, %v915
    %v954 = vmul.f32 %v810, %v915
    %v955 = vmul.f32 %v814, %v915
    %v956 = vmul.f32 %v818, %v915
    %v957 = vmul.f32 %v822, %v915
    %v958 = vmul.f32 %v826, %v915
    %v959 = vmul.f32 %v830, %v915
    %v960 = vmul.f32 %v834, %v915
    %v961 = vmul.f32 %v838, %v915
    %v962 = vmul.f32 %v842, %v915
    %v963 = vmul.f32 %v846, %v915
    %v964 = vmul.f32 %v850, %v915
    %v965 = vmul.f32 %v854, %v915
    %v966 = vmul.f32 %v858, %v915
    %v967 = vmul.f32 %v862, %v915
    %v968 = vmul.f32 %v866, %v915
    %v969 = vmul.f32 %v870, %v915
    %v970 = vmul.f32 %v874, %v915
    %v971 = vmul.f32 %v878, %v915
    %v972 = vmul.f32 %v882, %v915
    %v973 = vmul.f32 %v886, %v915
    %v974 = vmul.f32 %v890, %v915
    %v975 = vmul.f32 %v894, %v915
    %v976 = vmul.f32 %v898, %v915
    %v977 = vmul.f32 %v902, %v915
    %v978 = vmul.f32 %v906, %v915
    %v979 = vmul.f32 %v910, %v915
    %v980 = vadd.f32 %v592, %v916
    %v981 = vadd.f32 %v593, %v917
    %v982 = vadd.f32 %v594, %v918
    %v983 = vadd.f32 %v595, %v919
    %v984 = vadd.f32 %v596, %v920
    %v985 = vadd.f32 %v597, %v921
    %v986 = vadd.f32 %v598, %v922
    %v987 = vadd.f32 %v599, %v923
    %v988 = vadd.f32 %v600, %v924
    %v989 = vadd.f32 %v601, %v925
    %v990 = vadd.f32 %v602, %v926
    %v991 = vadd.f32 %v603, %v927
    %v992 = vadd.f32 %v604, %v928
    %v993 = vadd.f32 %v605, %v929
    %v994 = vadd.f32 %v606, %v930
    %v995 = vadd.f32 %v607, %v931
    %v996 = vadd.f32 %v608, %v932
    %v997 = vadd.f32 %v609, %v933
    %v998 = vadd.f32 %v610, %v934
    %v999 = vadd.f32 %v611, %v935
    %v1000 = vadd.f32 %v612, %v936
    %v1001 = vadd.f32 %v613, %v937
    %v1002 = vadd.f32 %v614, %v938
    %v1003 = vadd.f32 %v615, %v939
    %v1004 = vadd.f32 %v616, %v940
    %v1005 = vadd.f32 %v617, %v941
    %v1006 = vadd.f32 %v618, %v942
    %v1007 = vadd.f32 %v619, %v943
    %v1008 = vadd.f32 %v620, %v944
    %v1009 = vadd.f32 %v621, %v945
    %v1010 = vadd.f32 %v622, %v946
    %v1011 = vadd.f32 %v623, %v947
    %v1012 = vadd.f32 %v624, %v948
    %v1013 = vadd.f32 %v625, %v949
    %v1014 = vadd.f32 %v626, %v950
    %v1015 = vadd.f32 %v627, %v951
    %v1016 = vadd.f32 %v628, %v952
    %v1017 = vadd.f32 %v629, %v953
    %v1018 = vadd.f32 %v630, %v954
    %v1019 = vadd.f32 %v631, %v955
    %v1020 = vadd.f32 %v632, %v956
    %v1021 = vadd.f32 %v633, %v957
    %v1022 = vadd.f32 %v634, %v958
    %v1023 = vadd.f32 %v635, %v959
    %v1024 = vadd.f32 %v636, %v960
    %v1025 = vadd.f32 %v637, %v961
    %v1026 = vadd.f32 %v638, %v962
    %v1027 = vadd.f32 %v639, %v963
    %v1028 = vadd.f32 %v640, %v964
    %v1029 = vadd.f32 %v641, %v965
    %v1030 = vadd.f32 %v642, %v966
    %v1031 = vadd.f32 %v643, %v967
    %v1032 = vadd.f32 %v644, %v968
    %v1033 = vadd.f32 %v645, %v969
    %v1034 = vadd.f32 %v646, %v970
    %v1035 = vadd.f32 %v647, %v971
    %v1036 = vadd.f32 %v648, %v972
    %v1037 = vadd.f32 %v649, %v973
    %v1038 = vadd.f32 %v650, %v974
    %v1039 = vadd.f32 %v651, %v975
    %v1040 = vadd.f32 %v652, %v976
    %v1041 = vadd.f32 %v653, %v977
    %v1042 = vadd.f32 %v654, %v978
    %v1043 = vadd.f32 %v655, %v979
    %1044 = vset.pattern.permute.xlu0 2
    %1045 = vperm.xlu0 %1044, %v203
    %v1046 = vpop.permute.xlu0 %1045
    %1048 = vset.pattern.permute.xlu0 2
    %1049 = vperm.xlu0 %1048, %v204
    %v1050 = vpop.permute.xlu0 %1049
    %1052 = vset.pattern.permute.xlu0 2
    %1053 = vperm.xlu0 %1052, %v205
    %v1054 = vpop.permute.xlu0 %1053
    %1056 = vset.pattern.permute.xlu0 2
    %1057 = vperm.xlu0 %1056, %v206
    %v1058 = vpop.permute.xlu0 %1057
    %1060 = vset.pattern.permute.xlu0 2
    %1061 = vperm.xlu0 %1060, %v207
    %v1062 = vpop.permute.xlu0 %1061
    %1064 = vset.pattern.permute.xlu0 2
    %1065 = vperm.xlu0 %1064, %v208
    %v1066 = vpop.permute.xlu0 %1065
    %1068 = vset.pattern.permute.xlu0 2
    %1069 = vperm.xlu0 %1068, %v209
    %v1070 = vpop.permute.xlu0 %1069
    %1072 = vset.pattern.permute.xlu0 2
    %1073 = vperm.xlu0 %1072, %v210
    %v1074 = vpop.permute.xlu0 %1073
    %1076 = vset.pattern.permute.xlu0 2
    %1077 = vperm.xlu0 %1076, %v211
    %v1078 = vpop.permute.xlu0 %1077
    %1080 = vset.pattern.permute.xlu0 2
    %1081 = vperm.xlu0 %1080, %v212
    %v1082 = vpop.permute.xlu0 %1081
    %1084 = vset.pattern.permute.xlu0 2
    %1085 = vperm.xlu0 %1084, %v213
    %v1086 = vpop.permute.xlu0 %1085
    %1088 = vset.pattern.permute.xlu0 2
    %1089 = vperm.xlu0 %1088, %v214
    %v1090 = vpop.permute.xlu0 %1089
    %1092 = vset.pattern.permute.xlu0 2
    %1093 = vperm.xlu0 %1092, %v215
    %v1094 = vpop.permute.xlu0 %1093
    %1096 = vset.pattern.permute.xlu0 2
    %1097 = vperm.xlu0 %1096, %v216
    %v1098 = vpop.permute.xlu0 %1097
    %1100 = vset.pattern.permute.xlu0 2
    %1101 = vperm.xlu0 %1100, %v217
    %v1102 = vpop.permute.xlu0 %1101
    %1104 = vset.pattern.permute.xlu0 2
    %1105 = vperm.xlu0 %1104, %v218
    %v1106 = vpop.permute.xlu0 %1105
    %1108 = vset.pattern.permute.xlu0 2
    %1109 = vperm.xlu0 %1108, %v219
    %v1110 = vpop.permute.xlu0 %1109
    %1112 = vset.pattern.permute.xlu0 2
    %1113 = vperm.xlu0 %1112, %v220
    %v1114 = vpop.permute.xlu0 %1113
    %1116 = vset.pattern.permute.xlu0 2
    %1117 = vperm.xlu0 %1116, %v221
    %v1118 = vpop.permute.xlu0 %1117
    %1120 = vset.pattern.permute.xlu0 2
    %1121 = vperm.xlu0 %1120, %v222
    %v1122 = vpop.permute.xlu0 %1121
    %1124 = vset.pattern.permute.xlu0 2
    %1125 = vperm.xlu0 %1124, %v223
    %v1126 = vpop.permute.xlu0 %1125
    %1128 = vset.pattern.permute.xlu0 2
    %1129 = vperm.xlu0 %1128, %v224
    %v1130 = vpop.permute.xlu0 %1129
    %1132 = vset.pattern.permute.xlu0 2
    %1133 = vperm.xlu0 %1132, %v225
    %v1134 = vpop.permute.xlu0 %1133
    %1136 = vset.pattern.permute.xlu0 2
    %1137 = vperm.xlu0 %1136, %v226
    %v1138 = vpop.permute.xlu0 %1137
    %1140 = vset.pattern.permute.xlu0 2
    %1141 = vperm.xlu0 %1140, %v227
    %v1142 = vpop.permute.xlu0 %1141
    %1144 = vset.pattern.permute.xlu0 2
    %1145 = vperm.xlu0 %1144, %v228
    %v1146 = vpop.permute.xlu0 %1145
    %1148 = vset.pattern.permute.xlu0 2
    %1149 = vperm.xlu0 %1148, %v229
    %v1150 = vpop.permute.xlu0 %1149
    %1152 = vset.pattern.permute.xlu0 2
    %1153 = vperm.xlu0 %1152, %v230
    %v1154 = vpop.permute.xlu0 %1153
    %1156 = vset.pattern.permute.xlu0 2
    %1157 = vperm.xlu0 %1156, %v231
    %v1158 = vpop.permute.xlu0 %1157
    %1160 = vset.pattern.permute.xlu0 2
    %1161 = vperm.xlu0 %1160, %v232
    %v1162 = vpop.permute.xlu0 %1161
    %1164 = vset.pattern.permute.xlu0 2
    %1165 = vperm.xlu0 %1164, %v233
    %v1166 = vpop.permute.xlu0 %1165
    %1168 = vset.pattern.permute.xlu0 2
    %1169 = vperm.xlu0 %1168, %v234
    %v1170 = vpop.permute.xlu0 %1169
    %1172 = vset.pattern.permute.xlu0 2
    %1173 = vperm.xlu0 %1172, %v235
    %v1174 = vpop.permute.xlu0 %1173
    %1176 = vset.pattern.permute.xlu0 2
    %1177 = vperm.xlu0 %1176, %v236
    %v1178 = vpop.permute.xlu0 %1177
    %1180 = vset.pattern.permute.xlu0 2
    %1181 = vperm.xlu0 %1180, %v237
    %v1182 = vpop.permute.xlu0 %1181
    %1184 = vset.pattern.permute.xlu0 2
    %1185 = vperm.xlu0 %1184, %v238
    %v1186 = vpop.permute.xlu0 %1185
    %1188 = vset.pattern.permute.xlu0 2
    %1189 = vperm.xlu0 %1188, %v239
    %v1190 = vpop.permute.xlu0 %1189
    %1192 = vset.pattern.permute.xlu0 2
    %1193 = vperm.xlu0 %1192, %v240
    %v1194 = vpop.permute.xlu0 %1193
    %1196 = vset.pattern.permute.xlu0 2
    %1197 = vperm.xlu0 %1196, %v241
    %v1198 = vpop.permute.xlu0 %1197
    %1200 = vset.pattern.permute.xlu0 2
    %1201 = vperm.xlu0 %1200, %v242
    %v1202 = vpop.permute.xlu0 %1201
    %1204 = vset.pattern.permute.xlu0 2
    %1205 = vperm.xlu0 %1204, %v243
    %v1206 = vpop.permute.xlu0 %1205
    %1208 = vset.pattern.permute.xlu0 2
    %1209 = vperm.xlu0 %1208, %v244
    %v1210 = vpop.permute.xlu0 %1209
    %1212 = vset.pattern.permute.xlu0 2
    %1213 = vperm.xlu0 %1212, %v245
    %v1214 = vpop.permute.xlu0 %1213
    %1216 = vset.pattern.permute.xlu0 2
    %1217 = vperm.xlu0 %1216, %v246
    %v1218 = vpop.permute.xlu0 %1217
    %1220 = vset.pattern.permute.xlu0 2
    %1221 = vperm.xlu0 %1220, %v247
    %v1222 = vpop.permute.xlu0 %1221
    %1224 = vset.pattern.permute.xlu0 2
    %1225 = vperm.xlu0 %1224, %v248
    %v1226 = vpop.permute.xlu0 %1225
    %1228 = vset.pattern.permute.xlu0 2
    %1229 = vperm.xlu0 %1228, %v249
    %v1230 = vpop.permute.xlu0 %1229
    %1232 = vset.pattern.permute.xlu0 2
    %1233 = vperm.xlu0 %1232, %v250
    %v1234 = vpop.permute.xlu0 %1233
    %1236 = vset.pattern.permute.xlu0 2
    %1237 = vperm.xlu0 %1236, %v251
    %v1238 = vpop.permute.xlu0 %1237
    %1240 = vset.pattern.permute.xlu0 2
    %1241 = vperm.xlu0 %1240, %v252
    %v1242 = vpop.permute.xlu0 %1241
    %1244 = vset.pattern.permute.xlu0 2
    %1245 = vperm.xlu0 %1244, %v253
    %v1246 = vpop.permute.xlu0 %1245
    %1248 = vset.pattern.permute.xlu0 2
    %1249 = vperm.xlu0 %1248, %v254
    %v1250 = vpop.permute.xlu0 %1249
    %1252 = vset.pattern.permute.xlu0 2
    %1253 = vperm.xlu0 %1252, %v255
    %v1254 = vpop.permute.xlu0 %1253
    %1256 = vset.pattern.permute.xlu0 2
    %1257 = vperm.xlu0 %1256, %v256
    %v1258 = vpop.permute.xlu0 %1257
    %1260 = vset.pattern.permute.xlu0 2
    %1261 = vperm.xlu0 %1260, %v257
    %v1262 = vpop.permute.xlu0 %1261
    %1264 = vset.pattern.permute.xlu0 2
    %1265 = vperm.xlu0 %1264, %v258
    %v1266 = vpop.permute.xlu0 %1265
    %1268 = vset.pattern.permute.xlu0 2
    %1269 = vperm.xlu0 %1268, %v259
    %v1270 = vpop.permute.xlu0 %1269
    %1272 = vset.pattern.permute.xlu0 2
    %1273 = vperm.xlu0 %1272, %v260
    %v1274 = vpop.permute.xlu0 %1273
    %1276 = vset.pattern.permute.xlu0 2
    %1277 = vperm.xlu0 %1276, %v261
    %v1278 = vpop.permute.xlu0 %1277
    %1280 = vset.pattern.permute.xlu0 2
    %1281 = vperm.xlu0 %1280, %v262
    %v1282 = vpop.permute.xlu0 %1281
    %1284 = vset.pattern.permute.xlu0 2
    %1285 = vperm.xlu0 %1284, %v263
    %v1286 = vpop.permute.xlu0 %1285
    %1288 = vset.pattern.permute.xlu0 2
    %1289 = vperm.xlu0 %1288, %v264
    %v1290 = vpop.permute.xlu0 %1289
    %1292 = vset.pattern.permute.xlu0 2
    %1293 = vperm.xlu0 %1292, %v265
    %v1294 = vpop.permute.xlu0 %1293
    %1296 = vset.pattern.permute.xlu0 2
    %1297 = vperm.xlu0 %1296, %v266
    %v1298 = vpop.permute.xlu0 %1297
    %v1300 = vlaneseq
    %v1301 = vshrl.u32 %v1300, 7
    %v1302 = vsub.s32 2, %v1301
    %v1303 = vrot.slane %v267, %v1302
    %v1304 = vmul.f32 %v1046, %v1303
    %v1305 = vmul.f32 %v1050, %v1303
    %v1306 = vmul.f32 %v1054, %v1303
    %v1307 = vmul.f32 %v1058, %v1303
    %v1308 = vmul.f32 %v1062, %v1303
    %v1309 = vmul.f32 %v1066, %v1303
    %v1310 = vmul.f32 %v1070, %v1303
    %v1311 = vmul.f32 %v1074, %v1303
    %v1312 = vmul.f32 %v1078, %v1303
    %v1313 = vmul.f32 %v1082, %v1303
    %v1314 = vmul.f32 %v1086, %v1303
    %v1315 = vmul.f32 %v1090, %v1303
    %v1316 = vmul.f32 %v1094, %v1303
    %v1317 = vmul.f32 %v1098, %v1303
    %v1318 = vmul.f32 %v1102, %v1303
    %v1319 = vmul.f32 %v1106, %v1303
    %v1320 = vmul.f32 %v1110, %v1303
    %v1321 = vmul.f32 %v1114, %v1303
    %v1322 = vmul.f32 %v1118, %v1303
    %v1323 = vmul.f32 %v1122, %v1303
    %v1324 = vmul.f32 %v1126, %v1303
    %v1325 = vmul.f32 %v1130, %v1303
    %v1326 = vmul.f32 %v1134, %v1303
    %v1327 = vmul.f32 %v1138, %v1303
    %v1328 = vmul.f32 %v1142, %v1303
    %v1329 = vmul.f32 %v1146, %v1303
    %v1330 = vmul.f32 %v1150, %v1303
    %v1331 = vmul.f32 %v1154, %v1303
    %v1332 = vmul.f32 %v1158, %v1303
    %v1333 = vmul.f32 %v1162, %v1303
    %v1334 = vmul.f32 %v1166, %v1303
    %v1335 = vmul.f32 %v1170, %v1303
    %v1336 = vmul.f32 %v1174, %v1303
    %v1337 = vmul.f32 %v1178, %v1303
    %v1338 = vmul.f32 %v1182, %v1303
    %v1339 = vmul.f32 %v1186, %v1303
    %v1340 = vmul.f32 %v1190, %v1303
    %v1341 = vmul.f32 %v1194, %v1303
    %v1342 = vmul.f32 %v1198, %v1303
    %v1343 = vmul.f32 %v1202, %v1303
    %v1344 = vmul.f32 %v1206, %v1303
    %v1345 = vmul.f32 %v1210, %v1303
    %v1346 = vmul.f32 %v1214, %v1303
    %v1347 = vmul.f32 %v1218, %v1303
    %v1348 = vmul.f32 %v1222, %v1303
    %v1349 = vmul.f32 %v1226, %v1303
    %v1350 = vmul.f32 %v1230, %v1303
    %v1351 = vmul.f32 %v1234, %v1303
    %v1352 = vmul.f32 %v1238, %v1303
    %v1353 = vmul.f32 %v1242, %v1303
    %v1354 = vmul.f32 %v1246, %v1303
    %v1355 = vmul.f32 %v1250, %v1303
    %v1356 = vmul.f32 %v1254, %v1303
    %v1357 = vmul.f32 %v1258, %v1303
    %v1358 = vmul.f32 %v1262, %v1303
    %v1359 = vmul.f32 %v1266, %v1303
    %v1360 = vmul.f32 %v1270, %v1303
    %v1361 = vmul.f32 %v1274, %v1303
    %v1362 = vmul.f32 %v1278, %v1303
    %v1363 = vmul.f32 %v1282, %v1303
    %v1364 = vmul.f32 %v1286, %v1303
    %v1365 = vmul.f32 %v1290, %v1303
    %v1366 = vmul.f32 %v1294, %v1303
    %v1367 = vmul.f32 %v1298, %v1303
    %v1368 = vadd.f32 %v980, %v1304
    %v1369 = vadd.f32 %v981, %v1305
    %v1370 = vadd.f32 %v982, %v1306
    %v1371 = vadd.f32 %v983, %v1307
    %v1372 = vadd.f32 %v984, %v1308
    %v1373 = vadd.f32 %v985, %v1309
    %v1374 = vadd.f32 %v986, %v1310
    %v1375 = vadd.f32 %v987, %v1311
    %v1376 = vadd.f32 %v988, %v1312
    %v1377 = vadd.f32 %v989, %v1313
    %v1378 = vadd.f32 %v990, %v1314
    %v1379 = vadd.f32 %v991, %v1315
    %v1380 = vadd.f32 %v992, %v1316
    %v1381 = vadd.f32 %v993, %v1317
    %v1382 = vadd.f32 %v994, %v1318
    %v1383 = vadd.f32 %v995, %v1319
    %v1384 = vadd.f32 %v996, %v1320
    %v1385 = vadd.f32 %v997, %v1321
    %v1386 = vadd.f32 %v998, %v1322
    %v1387 = vadd.f32 %v999, %v1323
    %v1388 = vadd.f32 %v1000, %v1324
    %v1389 = vadd.f32 %v1001, %v1325
    %v1390 = vadd.f32 %v1002, %v1326
    %v1391 = vadd.f32 %v1003, %v1327
    %v1392 = vadd.f32 %v1004, %v1328
    %v1393 = vadd.f32 %v1005, %v1329
    %v1394 = vadd.f32 %v1006, %v1330
    %v1395 = vadd.f32 %v1007, %v1331
    %v1396 = vadd.f32 %v1008, %v1332
    %v1397 = vadd.f32 %v1009, %v1333
    %v1398 = vadd.f32 %v1010, %v1334
    %v1399 = vadd.f32 %v1011, %v1335
    %v1400 = vadd.f32 %v1012, %v1336
    %v1401 = vadd.f32 %v1013, %v1337
    %v1402 = vadd.f32 %v1014, %v1338
    %v1403 = vadd.f32 %v1015, %v1339
    %v1404 = vadd.f32 %v1016, %v1340
    %v1405 = vadd.f32 %v1017, %v1341
    %v1406 = vadd.f32 %v1018, %v1342
    %v1407 = vadd.f32 %v1019, %v1343
    %v1408 = vadd.f32 %v1020, %v1344
    %v1409 = vadd.f32 %v1021, %v1345
    %v1410 = vadd.f32 %v1022, %v1346
    %v1411 = vadd.f32 %v1023, %v1347
    %v1412 = vadd.f32 %v1024, %v1348
    %v1413 = vadd.f32 %v1025, %v1349
    %v1414 = vadd.f32 %v1026, %v1350
    %v1415 = vadd.f32 %v1027, %v1351
    %v1416 = vadd.f32 %v1028, %v1352
    %v1417 = vadd.f32 %v1029, %v1353
    %v1418 = vadd.f32 %v1030, %v1354
    %v1419 = vadd.f32 %v1031, %v1355
    %v1420 = vadd.f32 %v1032, %v1356
    %v1421 = vadd.f32 %v1033, %v1357
    %v1422 = vadd.f32 %v1034, %v1358
    %v1423 = vadd.f32 %v1035, %v1359
    %v1424 = vadd.f32 %v1036, %v1360
    %v1425 = vadd.f32 %v1037, %v1361
    %v1426 = vadd.f32 %v1038, %v1362
    %v1427 = vadd.f32 %v1039, %v1363
    %v1428 = vadd.f32 %v1040, %v1364
    %v1429 = vadd.f32 %v1041, %v1365
    %v1430 = vadd.f32 %v1042, %v1366
    %v1431 = vadd.f32 %v1043, %v1367
    %v1432 = vld [vmem:[#allocation3] sm:$0x1]
    %v1434 = vlaneseq
    %v1435 = vshrl.u32 %v1434, 7
    %v1436 = vsub.s32 0, %v1435
    %v1437 = vrot.slane %v1432, %v1436
    %v1439 = vadd.f32 %v1368, %v1437
    %v1440 = vadd.f32 %v1369, %v1437
    %v1441 = vadd.f32 %v1370, %v1437
    %v1442 = vadd.f32 %v1371, %v1437
    %v1443 = vadd.f32 %v1372, %v1437
    %v1444 = vadd.f32 %v1373, %v1437
    %v1445 = vadd.f32 %v1374, %v1437
    %v1446 = vadd.f32 %v1375, %v1437
    %v1447 = vadd.f32 %v1376, %v1437
    %v1448 = vadd.f32 %v1377, %v1437
    %v1449 = vadd.f32 %v1378, %v1437
    %v1450 = vadd.f32 %v1379, %v1437
    %v1451 = vadd.f32 %v1380, %v1437
    %v1452 = vadd.f32 %v1381, %v1437
    %v1453 = vadd.f32 %v1382, %v1437
    %v1454 = vadd.f32 %v1383, %v1437
    %v1455 = vadd.f32 %v1384, %v1437
    %v1456 = vadd.f32 %v1385, %v1437
    %v1457 = vadd.f32 %v1386, %v1437
    %v1458 = vadd.f32 %v1387, %v1437
    %v1459 = vadd.f32 %v1388, %v1437
    %v1460 = vadd.f32 %v1389, %v1437
    %v1461 = vadd.f32 %v1390, %v1437
    %v1462 = vadd.f32 %v1391, %v1437
    %v1463 = vadd.f32 %v1392, %v1437
    %v1464 = vadd.f32 %v1393, %v1437
    %v1465 = vadd.f32 %v1394, %v1437
    %v1466 = vadd.f32 %v1395, %v1437
    %v1467 = vadd.f32 %v1396, %v1437
    %v1468 = vadd.f32 %v1397, %v1437
    %v1469 = vadd.f32 %v1398, %v1437
    %v1470 = vadd.f32 %v1399, %v1437
    %v1471 = vadd.f32 %v1400, %v1437
    %v1472 = vadd.f32 %v1401, %v1437
    %v1473 = vadd.f32 %v1402, %v1437
    %v1474 = vadd.f32 %v1403, %v1437
    %v1475 = vadd.f32 %v1404, %v1437
    %v1476 = vadd.f32 %v1405, %v1437
    %v1477 = vadd.f32 %v1406, %v1437
    %v1478 = vadd.f32 %v1407, %v1437
    %v1479 = vadd.f32 %v1408, %v1437
    %v1480 = vadd.f32 %v1409, %v1437
    %v1481 = vadd.f32 %v1410, %v1437
    %v1482 = vadd.f32 %v1411, %v1437
    %v1483 = vadd.f32 %v1412, %v1437
    %v1484 = vadd.f32 %v1413, %v1437
    %v1485 = vadd.f32 %v1414, %v1437
    %v1486 = vadd.f32 %v1415, %v1437
    %v1487 = vadd.f32 %v1416, %v1437
    %v1488 = vadd.f32 %v1417, %v1437
    %v1489 = vadd.f32 %v1418, %v1437
    %v1490 = vadd.f32 %v1419, %v1437
    %v1491 = vadd.f32 %v1420, %v1437
    %v1492 = vadd.f32 %v1421, %v1437
    %v1493 = vadd.f32 %v1422, %v1437
    %v1494 = vadd.f32 %v1423, %v1437
    %v1495 = vadd.f32 %v1424, %v1437
    %v1496 = vadd.f32 %v1425, %v1437
    %v1497 = vadd.f32 %v1426, %v1437
    %v1498 = vadd.f32 %v1427, %v1437
    %v1499 = vadd.f32 %v1428, %v1437
    %v1500 = vadd.f32 %v1429, %v1437
    %v1501 = vadd.f32 %v1430, %v1437
    %v1502 = vadd.f32 %v1431, %v1437
    %v1503 = vmax.f32 %v1439, 0.0
    %v1504 = vmax.f32 %v1440, 0.0
    %v1505 = vmax.f32 %v1441, 0.0
    %v1506 = vmax.f32 %v1442, 0.0
    %v1507 = vmax.f32 %v1443, 0.0
    %v1508 = vmax.f32 %v1444, 0.0
    %v1509 = vmax.f32 %v1445, 0.0
    %v1510 = vmax.f32 %v1446, 0.0
    %v1511 = vmax.f32 %v1447, 0.0
    %v1512 = vmax.f32 %v1448, 0.0
    %v1513 = vmax.f32 %v1449, 0.0
    %v1514 = vmax.f32 %v1450, 0.0
    %v1515 = vmax.f32 %v1451, 0.0
    %v1516 = vmax.f32 %v1452, 0.0
    %v1517 = vmax.f32 %v1453, 0.0
    %v1518 = vmax.f32 %v1454, 0.0
    %v1519 = vmax.f32 %v1455, 0.0
    %v1520 = vmax.f32 %v1456, 0.0
    %v1521 = vmax.f32 %v1457, 0.0
    %v1522 = vmax.f32 %v1458, 0.0
    %v1523 = vmax.f32 %v1459, 0.0
    %v1524 = vmax.f32 %v1460, 0.0
    %v1525 = vmax.f32 %v1461, 0.0
    %v1526 = vmax.f32 %v1462, 0.0
    %v1527 = vmax.f32 %v1463, 0.0
    %v1528 = vmax.f32 %v1464, 0.0
    %v1529 = vmax.f32 %v1465, 0.0
    %v1530 = vmax.f32 %v1466, 0.0
    %v1531 = vmax.f32 %v1467, 0.0
    %v1532 = vmax.f32 %v1468, 0.0
    %v1533 = vmax.f32 %v1469, 0.0
    %v1534 = vmax.f32 %v1470, 0.0
    %v1535 = vmax.f32 %v1471, 0.0
    %v1536 = vmax.f32 %v1472, 0.0
    %v1537 = vmax.f32 %v1473, 0.0
    %v1538 = vmax.f32 %v1474, 0.0
    %v1539 = vmax.f32 %v1475, 0.0
    %v1540 = vmax.f32 %v1476, 0.0
    %v1541 = vmax.f32 %v1477, 0.0
    %v1542 = vmax.f32 %v1478, 0.0
    %v1543 = vmax.f32 %v1479, 0.0
    %v1544 = vmax.f32 %v1480, 0.0
    %v1545 = vmax.f32 %v1481, 0.0
    %v1546 = vmax.f32 %v1482, 0.0
    %v1547 = vmax.f32 %v1483, 0.0
    %v1548 = vmax.f32 %v1484, 0.0
    %v1549 = vmax.f32 %v1485, 0.0
    %v1550 = vmax.f32 %v1486, 0.0
    %v1551 = vmax.f32 %v1487, 0.0
    %v1552 = vmax.f32 %v1488, 0.0
    %v1553 = vmax.f32 %v1489, 0.0
    %v1554 = vmax.f32 %v1490, 0.0
    %v1555 = vmax.f32 %v1491, 0.0
    %v1556 = vmax.f32 %v1492, 0.0
    %v1557 = vmax.f32 %v1493, 0.0
    %v1558 = vmax.f32 %v1494, 0.0
    %v1559 = vmax.f32 %v1495, 0.0
    %v1560 = vmax.f32 %v1496, 0.0
    %v1561 = vmax.f32 %v1497, 0.0
    %v1562 = vmax.f32 %v1498, 0.0
    %v1563 = vmax.f32 %v1499, 0.0
    %v1564 = vmax.f32 %v1500, 0.0
    %v1565 = vmax.f32 %v1501, 0.0
    %v1566 = vmax.f32 %v1502, 0.0
    %v1567 = vpack.c.bf16 %v1504, %v1503
    %v1568 = vpack.c.bf16 %v1506, %v1505
    %v1569 = vpack.c.bf16 %v1508, %v1507
    %v1570 = vpack.c.bf16 %v1510, %v1509
    %v1571 = vpack.c.bf16 %v1512, %v1511
    %v1572 = vpack.c.bf16 %v1514, %v1513
    %v1573 = vpack.c.bf16 %v1516, %v1515
    %v1574 = vpack.c.bf16 %v1518, %v1517
    %v1575 = vpack.c.bf16 %v1520, %v1519
    %v1576 = vpack.c.bf16 %v1522, %v1521
    %v1577 = vpack.c.bf16 %v1524, %v1523
    %v1578 = vpack.c.bf16 %v1526, %v1525
    %v1579 = vpack.c.bf16 %v1528, %v1527
    %v1580 = vpack.c.bf16 %v1530, %v1529
    %v1581 = vpack.c.bf16 %v1532, %v1531
    %v1582 = vpack.c.bf16 %v1534, %v1533
    %v1583 = vpack.c.bf16 %v1536, %v1535
    %v1584 = vpack.c.bf16 %v1538, %v1537
    %v1585 = vpack.c.bf16 %v1540, %v1539
    %v1586 = vpack.c.bf16 %v1542, %v1541
    %v1587 = vpack.c.bf16 %v1544, %v1543
    %v1588 = vpack.c.bf16 %v1546, %v1545
    %v1589 = vpack.c.bf16 %v1548, %v1547
    %v1590 = vpack.c.bf16 %v1550, %v1549
    %v1591 = vpack.c.bf16 %v1552, %v1551
    %v1592 = vpack.c.bf16 %v1554, %v1553
    %v1593 = vpack.c.bf16 %v1556, %v1555
    %v1594 = vpack.c.bf16 %v1558, %v1557
    %v1595 = vpack.c.bf16 %v1560, %v1559
    %v1596 = vpack.c.bf16 %v1562, %v1561
    %v1597 = vpack.c.bf16 %v1564, %v1563
    %v1598 = vpack.c.bf16 %v1566, %v1565
    %v1599 = vld [vmem:[%s3] sm:$0xf]
    %v1600 = vld [vmem:[%s3 + $0x4] sm:$0xf]
    %v1601 = vld [vmem:[%s3 + $0x8] sm:$0xf]
    %v1602 = vld [vmem:[%s3 + $0xc] sm:$0xf]
    %v1603 = vld [vmem:[%s3 + $0x10] sm:$0xf]
    %v1604 = vld [vmem:[%s3 + $0x14] sm:$0xf]
    %v1605 = vld [vmem:[%s3 + $0x18] sm:$0xf]
    %v1606 = vld [vmem:[%s3 + $0x1c] sm:$0xf]
    %v1607 = vld [vmem:[#allocation6] sm:$0x1]
    %v1609 = vlaneseq
    %v1610 = vshrl.u32 %v1609, 7
    %v1611 = vsub.s32 0, %v1610
    %v1612 = vrot.slane %v1607, %v1611
    %v1622 = vunpack.c.l.b16 %v1599
    %v1623 = vunpack.c.l.b16 %v1600
    %v1624 = vunpack.c.l.b16 %v1601
    %v1625 = vunpack.c.l.b16 %v1602
    %v1626 = vunpack.c.l.b16 %v1603
    %v1627 = vunpack.c.l.b16 %v1604
    %v1628 = vunpack.c.l.b16 %v1605
    %v1629 = vunpack.c.l.b16 %v1606
    %v1630 = vpack.c.b16 %v1623, %v1622
    %v1631 = vpack.c.b16 %v1625, %v1624
    %v1632 = vpack.c.b16 %v1627, %v1626
    %v1633 = vpack.c.b16 %v1629, %v1628
    %vm1638 = vcmask 523264
    %v1640 = vsel %vm1638, %v1567, 0
    %v1643 = vsel %vm1638, %v1568, 0
    %v1646 = vsel %vm1638, %v1569, 0
    %v1649 = vsel %vm1638, %v1570, 0
    %v1652 = vsel %vm1638, %v1571, 0
    %v1655 = vsel %vm1638, %v1572, 0
    %v1658 = vsel %vm1638, %v1573, 0
    %v1661 = vsel %vm1638, %v1574, 0
    %v1664 = vsel %vm1638, %v1575, 0
    %v1667 = vsel %vm1638, %v1576, 0
    %v1670 = vsel %vm1638, %v1577, 0
    %v1673 = vsel %vm1638, %v1578, 0
    %v1676 = vsel %vm1638, %v1579, 0
    %v1679 = vsel %vm1638, %v1580, 0
    %v1682 = vsel %vm1638, %v1581, 0
    %v1685 = vsel %vm1638, %v1582, 0
    %v1688 = vsel %vm1638, %v1583, 0
    %v1691 = vsel %vm1638, %v1584, 0
    %v1694 = vsel %vm1638, %v1585, 0
    %v1697 = vsel %vm1638, %v1586, 0
    %v1700 = vsel %vm1638, %v1587, 0
    %v1703 = vsel %vm1638, %v1588, 0
    %v1706 = vsel %vm1638, %v1589, 0
    %v1709 = vsel %vm1638, %v1590, 0
    %v1712 = vsel %vm1638, %v1591, 0
    %v1715 = vsel %vm1638, %v1592, 0
    %v1718 = vsel %vm1638, %v1593, 0
    %v1721 = vsel %vm1638, %v1594, 0
    %v1724 = vsel %vm1638, %v1595, 0
    %v1727 = vsel %vm1638, %v1596, 0
    %v1730 = vsel %vm1638, %v1597, 0
    %v1733 = vsel %vm1638, %v1598, 0
    %1735 = vmatprep.subr.bf16.mxu0 0
    %1736 = vmatpush1.bf16.msra.mxu0 0
    %1737 = vmatprep.subr.bf16.mxu0 0
    %1738 = vmatpush1.bf16.msra.mxu0 0
    %1739 = vmatprep.subr.bf16.mxu0 0
    %1740 = vmatpush1.bf16.msra.mxu0 0
    %1741 = vmatprep.subr.bf16.mxu0 0
    %1742 = vmatpush1.bf16.msra.mxu0 0
    %1743 = vmatprep.subr.bf16.mxu0 0
    %1744 = vmatpush1.bf16.msra.mxu0 %v1633
    %1745 = vmatprep.subr.bf16.mxu0 0
    %1746 = vmatpush1.bf16.msra.mxu0 %v1632
    %1747 = vmatprep.subr.bf16.mxu0 0
    %1748 = vmatpush1.bf16.msra.mxu0 %v1631
    %1749 = vmatprep.subr.bf16.mxu0 0
    %1750 = vmatpush1.bf16.msra.mxu0 %v1630
    %1751 = vmatprep.subr.bf16.mxu0 0
    %1752 = vmatpush2.bf16.msra.mxu0 0
    %1753 = vmatprep.subr.bf16.mxu0 0
    %1754 = vmatpush2.bf16.msra.mxu0 0
    %1755 = vmatprep.subr.bf16.mxu0 0
    %1756 = vmatpush2.bf16.msra.mxu0 0
    %1757 = vmatprep.subr.bf16.mxu0 0
    %1758 = vmatpush2.bf16.msra.mxu0 0
    %1759 = vmatprep.subr.bf16.mxu0 0
    %1760 = vmatpush2.bf16.msra.mxu0 0
    %1761 = vmatprep.subr.bf16.mxu0 0
    %1762 = vmatpush2.bf16.msra.mxu0 0
    %1763 = vmatprep.subr.bf16.mxu0 0
    %1764 = vmatpush2.bf16.msra.mxu0 0
    %1765 = vmatprep.subr.bf16.mxu0 0
    %1766 = vmatpush2.bf16.msra.mxu0 0
    %1767 = vmatprep.mubr.bf16.mxu0 0
    %1768 = vmatmul.mubr.bf16.gmra.mxu0 %v1640
    %v1769 = vpop.f32.mrf.mxu0
    %v1770 = vadd.f32 %v1612, %v1769
    %v1771 = vpop.f32.mrf.mxu0
    %v1772 = vpop.f32.mrf.mxu0
    %v1773 = vadd.f32 %v1612, %v1772
    %v1774 = vpop.f32.mrf.mxu0
    %1775 = vmatprep.mubr.bf16.mxu0 0
    %1776 = vmatmul.mubr.bf16.gmra.mxu0 %v1643
    %v1777 = vpop.f32.mrf.mxu0
    %v1778 = vadd.f32 %v1612, %v1777
    %v1779 = vpop.f32.mrf.mxu0
    %v1780 = vpop.f32.mrf.mxu0
    %v1781 = vadd.f32 %v1612, %v1780
    %v1782 = vpop.f32.mrf.mxu0
    %1783 = vmatprep.mubr.bf16.mxu0 0
    %1784 = vmatmul.mubr.bf16.gmra.mxu0 %v1646
    %v1785 = vpop.f32.mrf.mxu0
    %v1786 = vadd.f32 %v1612, %v1785
    %v1787 = vpop.f32.mrf.mxu0
    %v1788 = vpop.f32.mrf.mxu0
    %v1789 = vadd.f32 %v1612, %v1788
    %v1790 = vpop.f32.mrf.mxu0
    %1791 = vmatprep.mubr.bf16.mxu0 0
    %1792 = vmatmul.mubr.bf16.gmra.mxu0 %v1649
    %v1793 = vpop.f32.mrf.mxu0
    %v1794 = vadd.f32 %v1612, %v1793
    %v1795 = vpop.f32.mrf.mxu0
    %v1796 = vpop.f32.mrf.mxu0
    %v1797 = vadd.f32 %v1612, %v1796
    %v1798 = vpop.f32.mrf.mxu0
    %1799 = vmatprep.mubr.bf16.mxu0 0
    %1800 = vmatmul.mubr.bf16.gmra.mxu0 %v1652
    %v1801 = vpop.f32.mrf.mxu0
    %v1802 = vadd.f32 %v1612, %v1801
    %v1803 = vpop.f32.mrf.mxu0
    %v1804 = vpop.f32.mrf.mxu0
    %v1805 = vadd.f32 %v1612, %v1804
    %v1806 = vpop.f32.mrf.mxu0
    %1807 = vmatprep.mubr.bf16.mxu0 0
    %1808 = vmatmul.mubr.bf16.gmra.mxu0 %v1655
    %v1809 = vpop.f32.mrf.mxu0
    %v1810 = vadd.f32 %v1612, %v1809
    %v1811 = vpop.f32.mrf.mxu0
    %v1812 = vpop.f32.mrf.mxu0
    %v1813 = vadd.f32 %v1612, %v1812
    %v1814 = vpop.f32.mrf.mxu0
    %1815 = vmatprep.mubr.bf16.mxu0 0
    %1816 = vmatmul.mubr.bf16.gmra.mxu0 %v1658
    %v1817 = vpop.f32.mrf.mxu0
    %v1818 = vadd.f32 %v1612, %v1817
    %v1819 = vpop.f32.mrf.mxu0
    %v1820 = vpop.f32.mrf.mxu0
    %v1821 = vadd.f32 %v1612, %v1820
    %v1822 = vpop.f32.mrf.mxu0
    %1823 = vmatprep.mubr.bf16.mxu0 0
    %1824 = vmatmul.mubr.bf16.gmra.mxu0 %v1661
    %v1825 = vpop.f32.mrf.mxu0
    %v1826 = vadd.f32 %v1612, %v1825
    %v1827 = vpop.f32.mrf.mxu0
    %v1828 = vpop.f32.mrf.mxu0
    %v1829 = vadd.f32 %v1612, %v1828
    %v1830 = vpop.f32.mrf.mxu0
    %1831 = vmatprep.mubr.bf16.mxu0 0
    %1832 = vmatmul.mubr.bf16.gmra.mxu0 %v1664
    %v1833 = vpop.f32.mrf.mxu0
    %v1834 = vadd.f32 %v1612, %v1833
    %v1835 = vpop.f32.mrf.mxu0
    %v1836 = vpop.f32.mrf.mxu0
    %v1837 = vadd.f32 %v1612, %v1836
    %v1838 = vpop.f32.mrf.mxu0
    %1839 = vmatprep.mubr.bf16.mxu0 0
    %1840 = vmatmul.mubr.bf16.gmra.mxu0 %v1667
    %v1841 = vpop.f32.mrf.mxu0
    %v1842 = vadd.f32 %v1612, %v1841
    %v1843 = vpop.f32.mrf.mxu0
    %v1844 = vpop.f32.mrf.mxu0
    %v1845 = vadd.f32 %v1612, %v1844
    %v1846 = vpop.f32.mrf.mxu0
    %1847 = vmatprep.mubr.bf16.mxu0 0
    %1848 = vmatmul.mubr.bf16.gmra.mxu0 %v1670
    %v1849 = vpop.f32.mrf.mxu0
    %v1850 = vadd.f32 %v1612, %v1849
    %v1851 = vpop.f32.mrf.mxu0
    %v1852 = vpop.f32.mrf.mxu0
    %v1853 = vadd.f32 %v1612, %v1852
    %v1854 = vpop.f32.mrf.mxu0
    %1855 = vmatprep.mubr.bf16.mxu0 0
    %1856 = vmatmul.mubr.bf16.gmra.mxu0 %v1673
    %v1857 = vpop.f32.mrf.mxu0
    %v1858 = vadd.f32 %v1612, %v1857
    %v1859 = vpop.f32.mrf.mxu0
    %v1860 = vpop.f32.mrf.mxu0
    %v1861 = vadd.f32 %v1612, %v1860
    %v1862 = vpop.f32.mrf.mxu0
    %1863 = vmatprep.mubr.bf16.mxu0 0
    %1864 = vmatmul.mubr.bf16.gmra.mxu0 %v1676
    %v1865 = vpop.f32.mrf.mxu0
    %v1866 = vadd.f32 %v1612, %v1865
    %v1867 = vpop.f32.mrf.mxu0
    %v1868 = vpop.f32.mrf.mxu0
    %v1869 = vadd.f32 %v1612, %v1868
    %v1870 = vpop.f32.mrf.mxu0
    %1871 = vmatprep.mubr.bf16.mxu0 0
    %1872 = vmatmul.mubr.bf16.gmra.mxu0 %v1679
    %v1873 = vpop.f32.mrf.mxu0
    %v1874 = vadd.f32 %v1612, %v1873
    %v1875 = vpop.f32.mrf.mxu0
    %v1876 = vpop.f32.mrf.mxu0
    %v1877 = vadd.f32 %v1612, %v1876
    %v1878 = vpop.f32.mrf.mxu0
    %1879 = vmatprep.mubr.bf16.mxu0 0
    %1880 = vmatmul.mubr.bf16.gmra.mxu0 %v1682
    %v1881 = vpop.f32.mrf.mxu0
    %v1882 = vadd.f32 %v1612, %v1881
    %v1883 = vpop.f32.mrf.mxu0
    %v1884 = vpop.f32.mrf.mxu0
    %v1885 = vadd.f32 %v1612, %v1884
    %v1886 = vpop.f32.mrf.mxu0
    %1887 = vmatprep.mubr.bf16.mxu0 0
    %1888 = vmatmul.mubr.bf16.gmra.mxu0 %v1685
    %v1889 = vpop.f32.mrf.mxu0
    %v1890 = vadd.f32 %v1612, %v1889
    %v1891 = vpop.f32.mrf.mxu0
    %v1892 = vpop.f32.mrf.mxu0
    %v1893 = vadd.f32 %v1612, %v1892
    %v1894 = vpop.f32.mrf.mxu0
    %1895 = vmatprep.mubr.bf16.mxu0 0
    %1896 = vmatmul.mubr.bf16.gmra.mxu0 %v1688
    %v1897 = vpop.f32.mrf.mxu0
    %v1898 = vadd.f32 %v1612, %v1897
    %v1899 = vpop.f32.mrf.mxu0
    %v1900 = vpop.f32.mrf.mxu0
    %v1901 = vadd.f32 %v1612, %v1900
    %v1902 = vpop.f32.mrf.mxu0
    %1903 = vmatprep.mubr.bf16.mxu0 0
    %1904 = vmatmul.mubr.bf16.gmra.mxu0 %v1691
    %v1905 = vpop.f32.mrf.mxu0
    %v1906 = vadd.f32 %v1612, %v1905
    %v1907 = vpop.f32.mrf.mxu0
    %v1908 = vpop.f32.mrf.mxu0
    %v1909 = vadd.f32 %v1612, %v1908
    %v1910 = vpop.f32.mrf.mxu0
    %1911 = vmatprep.mubr.bf16.mxu0 0
    %1912 = vmatmul.mubr.bf16.gmra.mxu0 %v1694
    %v1913 = vpop.f32.mrf.mxu0
    %v1914 = vadd.f32 %v1612, %v1913
    %v1915 = vpop.f32.mrf.mxu0
    %v1916 = vpop.f32.mrf.mxu0
    %v1917 = vadd.f32 %v1612, %v1916
    %v1918 = vpop.f32.mrf.mxu0
    %1919 = vmatprep.mubr.bf16.mxu0 0
    %1920 = vmatmul.mubr.bf16.gmra.mxu0 %v1697
    %v1921 = vpop.f32.mrf.mxu0
    %v1922 = vadd.f32 %v1612, %v1921
    %v1923 = vpop.f32.mrf.mxu0
    %v1924 = vpop.f32.mrf.mxu0
    %v1925 = vadd.f32 %v1612, %v1924
    %v1926 = vpop.f32.mrf.mxu0
    %1927 = vmatprep.mubr.bf16.mxu0 0
    %1928 = vmatmul.mubr.bf16.gmra.mxu0 %v1700
    %v1929 = vpop.f32.mrf.mxu0
    %v1930 = vadd.f32 %v1612, %v1929
    %v1931 = vpop.f32.mrf.mxu0
    %v1932 = vpop.f32.mrf.mxu0
    %v1933 = vadd.f32 %v1612, %v1932
    %v1934 = vpop.f32.mrf.mxu0
    %1935 = vmatprep.mubr.bf16.mxu0 0
    %1936 = vmatmul.mubr.bf16.gmra.mxu0 %v1703
    %v1937 = vpop.f32.mrf.mxu0
    %v1938 = vadd.f32 %v1612, %v1937
    %v1939 = vpop.f32.mrf.mxu0
    %v1940 = vpop.f32.mrf.mxu0
    %v1941 = vadd.f32 %v1612, %v1940
    %v1942 = vpop.f32.mrf.mxu0
    %1943 = vmatprep.mubr.bf16.mxu0 0
    %1944 = vmatmul.mubr.bf16.gmra.mxu0 %v1706
    %v1945 = vpop.f32.mrf.mxu0
    %v1946 = vadd.f32 %v1612, %v1945
    %v1947 = vpop.f32.mrf.mxu0
    %v1948 = vpop.f32.mrf.mxu0
    %v1949 = vadd.f32 %v1612, %v1948
    %v1950 = vpop.f32.mrf.mxu0
    %1951 = vmatprep.mubr.bf16.mxu0 0
    %1952 = vmatmul.mubr.bf16.gmra.mxu0 %v1709
    %v1953 = vpop.f32.mrf.mxu0
    %v1954 = vadd.f32 %v1612, %v1953
    %v1955 = vpop.f32.mrf.mxu0
    %v1956 = vpop.f32.mrf.mxu0
    %v1957 = vadd.f32 %v1612, %v1956
    %v1958 = vpop.f32.mrf.mxu0
    %1959 = vmatprep.mubr.bf16.mxu0 0
    %1960 = vmatmul.mubr.bf16.gmra.mxu0 %v1712
    %v1961 = vpop.f32.mrf.mxu0
    %v1962 = vadd.f32 %v1612, %v1961
    %v1963 = vpop.f32.mrf.mxu0
    %v1964 = vpop.f32.mrf.mxu0
    %v1965 = vadd.f32 %v1612, %v1964
    %v1966 = vpop.f32.mrf.mxu0
    %1967 = vmatprep.mubr.bf16.mxu0 0
    %1968 = vmatmul.mubr.bf16.gmra.mxu0 %v1715
    %v1969 = vpop.f32.mrf.mxu0
    %v1970 = vadd.f32 %v1612, %v1969
    %v1971 = vpop.f32.mrf.mxu0
    %v1972 = vpop.f32.mrf.mxu0
    %v1973 = vadd.f32 %v1612, %v1972
    %v1974 = vpop.f32.mrf.mxu0
    %1975 = vmatprep.mubr.bf16.mxu0 0
    %1976 = vmatmul.mubr.bf16.gmra.mxu0 %v1718
    %v1977 = vpop.f32.mrf.mxu0
    %v1978 = vadd.f32 %v1612, %v1977
    %v1979 = vpop.f32.mrf.mxu0
    %v1980 = vpop.f32.mrf.mxu0
    %v1981 = vadd.f32 %v1612, %v1980
    %v1982 = vpop.f32.mrf.mxu0
    %1983 = vmatprep.mubr.bf16.mxu0 0
    %1984 = vmatmul.mubr.bf16.gmra.mxu0 %v1721
    %v1985 = vpop.f32.mrf.mxu0
    %v1986 = vadd.f32 %v1612, %v1985
    %v1987 = vpop.f32.mrf.mxu0
    %v1988 = vpop.f32.mrf.mxu0
    %v1989 = vadd.f32 %v1612, %v1988
    %v1990 = vpop.f32.mrf.mxu0
    %1991 = vmatprep.mubr.bf16.mxu0 0
    %1992 = vmatmul.mubr.bf16.gmra.mxu0 %v1724
    %v1993 = vpop.f32.mrf.mxu0
    %v1994 = vadd.f32 %v1612, %v1993
    %v1995 = vpop.f32.mrf.mxu0
    %v1996 = vpop.f32.mrf.mxu0
    %v1997 = vadd.f32 %v1612, %v1996
    %v1998 = vpop.f32.mrf.mxu0
    %1999 = vmatprep.mubr.bf16.mxu0 0
    %2000 = vmatmul.mubr.bf16.gmra.mxu0 %v1727
    %v2001 = vpop.f32.mrf.mxu0
    %v2002 = vadd.f32 %v1612, %v2001
    %v2003 = vpop.f32.mrf.mxu0
    %v2004 = vpop.f32.mrf.mxu0
    %v2005 = vadd.f32 %v1612, %v2004
    %v2006 = vpop.f32.mrf.mxu0
    %2007 = vmatprep.mubr.bf16.mxu0 0
    %2008 = vmatmul.mubr.bf16.gmra.mxu0 %v1730
    %v2009 = vpop.f32.mrf.mxu0
    %v2010 = vadd.f32 %v1612, %v2009
    %v2011 = vpop.f32.mrf.mxu0
    %v2012 = vpop.f32.mrf.mxu0
    %v2013 = vadd.f32 %v1612, %v2012
    %v2014 = vpop.f32.mrf.mxu0
    %2015 = vmatprep.mubr.bf16.mxu0 0
    %2016 = vmatmul.mubr.bf16.gmra.mxu0 %v1733
    %v2017 = vpop.f32.mrf.mxu0
    %v2018 = vadd.f32 %v1612, %v2017
    %v2019 = vpop.f32.mrf.mxu0
    %v2020 = vpop.f32.mrf.mxu0
    %v2021 = vadd.f32 %v1612, %v2020
    %v2022 = vpop.f32.mrf.mxu0
    %2023 = vdwg.mxu0
    %v2024 = vmax.f32 %v1770, 0.0
    %v2025 = vmax.f32 %v1773, 0.0
    %v2026 = vmax.f32 %v1778, 0.0
    %v2027 = vmax.f32 %v1781, 0.0
    %v2028 = vmax.f32 %v1786, 0.0
    %v2029 = vmax.f32 %v1789, 0.0
    %v2030 = vmax.f32 %v1794, 0.0
    %v2031 = vmax.f32 %v1797, 0.0
    %v2032 = vmax.f32 %v1802, 0.0
    %v2033 = vmax.f32 %v1805, 0.0
    %v2034 = vmax.f32 %v1810, 0.0
    %v2035 = vmax.f32 %v1813, 0.0
    %v2036 = vmax.f32 %v1818, 0.0
    %v2037 = vmax.f32 %v1821, 0.0
    %v2038 = vmax.f32 %v1826, 0.0
    %v2039 = vmax.f32 %v1829, 0.0
    %v2040 = vmax.f32 %v1834, 0.0
    %v2041 = vmax.f32 %v1837, 0.0
    %v2042 = vmax.f32 %v1842, 0.0
    %v2043 = vmax.f32 %v1845, 0.0
    %v2044 = vmax.f32 %v1850, 0.0
    %v2045 = vmax.f32 %v1853, 0.0
    %v2046 = vmax.f32 %v1858, 0.0
    %v2047 = vmax.f32 %v1861, 0.0
    %v2048 = vmax.f32 %v1866, 0.0
    %v2049 = vmax.f32 %v1869, 0.0
    %v2050 = vmax.f32 %v1874, 0.0
    %v2051 = vmax.f32 %v1877, 0.0
    %v2052 = vmax.f32 %v1882, 0.0
    %v2053 = vmax.f32 %v1885, 0.0
    %v2054 = vmax.f32 %v1890, 0.0
    %v2055 = vmax.f32 %v1893, 0.0
    %v2056 = vmax.f32 %v1898, 0.0
    %v2057 = vmax.f32 %v1901, 0.0
    %v2058 = vmax.f32 %v1906, 0.0
    %v2059 = vmax.f32 %v1909, 0.0
    %v2060 = vmax.f32 %v1914, 0.0
    %v2061 = vmax.f32 %v1917, 0.0
    %v2062 = vmax.f32 %v1922, 0.0
    %v2063 = vmax.f32 %v1925, 0.0
    %v2064 = vmax.f32 %v1930, 0.0
    %v2065 = vmax.f32 %v1933, 0.0
    %v2066 = vmax.f32 %v1938, 0.0
    %v2067 = vmax.f32 %v1941, 0.0
    %v2068 = vmax.f32 %v1946, 0.0
    %v2069 = vmax.f32 %v1949, 0.0
    %v2070 = vmax.f32 %v1954, 0.0
    %v2071 = vmax.f32 %v1957, 0.0
    %v2072 = vmax.f32 %v1962, 0.0
    %v2073 = vmax.f32 %v1965, 0.0
    %v2074 = vmax.f32 %v1970, 0.0
    %v2075 = vmax.f32 %v1973, 0.0
    %v2076 = vmax.f32 %v1978, 0.0
    %v2077 = vmax.f32 %v1981, 0.0
    %v2078 = vmax.f32 %v1986, 0.0
    %v2079 = vmax.f32 %v1989, 0.0
    %v2080 = vmax.f32 %v1994, 0.0
    %v2081 = vmax.f32 %v1997, 0.0
    %v2082 = vmax.f32 %v2002, 0.0
    %v2083 = vmax.f32 %v2005, 0.0
    %v2084 = vmax.f32 %v2010, 0.0
    %v2085 = vmax.f32 %v2013, 0.0
    %v2086 = vmax.f32 %v2018, 0.0
    %v2087 = vmax.f32 %v2021, 0.0
    %v2088 = vpack.c.bf16 %v2025, %v2024
    %v2089 = vpack.c.bf16 %v2027, %v2026
    %v2090 = vpack.c.bf16 %v2029, %v2028
    %v2091 = vpack.c.bf16 %v2031, %v2030
    %v2092 = vpack.c.bf16 %v2033, %v2032
    %v2093 = vpack.c.bf16 %v2035, %v2034
    %v2094 = vpack.c.bf16 %v2037, %v2036
    %v2095 = vpack.c.bf16 %v2039, %v2038
    %v2096 = vpack.c.bf16 %v2041, %v2040
    %v2097 = vpack.c.bf16 %v2043, %v2042
    %v2098 = vpack.c.bf16 %v2045, %v2044
    %v2099 = vpack.c.bf16 %v2047, %v2046
    %v2100 = vpack.c.bf16 %v2049, %v2048
    %v2101 = vpack.c.bf16 %v2051, %v2050
    %v2102 = vpack.c.bf16 %v2053, %v2052
    %v2103 = vpack.c.bf16 %v2055, %v2054
    %v2104 = vpack.c.bf16 %v2057, %v2056
    %v2105 = vpack.c.bf16 %v2059, %v2058
    %v2106 = vpack.c.bf16 %v2061, %v2060
    %v2107 = vpack.c.bf16 %v2063, %v2062
    %v2108 = vpack.c.bf16 %v2065, %v2064
    %v2109 = vpack.c.bf16 %v2067, %v2066
    %v2110 = vpack.c.bf16 %v2069, %v2068
    %v2111 = vpack.c.bf16 %v2071, %v2070
    %v2112 = vpack.c.bf16 %v2073, %v2072
    %v2113 = vpack.c.bf16 %v2075, %v2074
    %v2114 = vpack.c.bf16 %v2077, %v2076
    %v2115 = vpack.c.bf16 %v2079, %v2078
    %v2116 = vpack.c.bf16 %v2081, %v2080
    %v2117 = vpack.c.bf16 %v2083, %v2082
    %v2118 = vpack.c.bf16 %v2085, %v2084
    %v2119 = vpack.c.bf16 %v2087, %v2086
    %v2120 = vld [vmem:[#allocation8] sm:$0xff]
    %v2121 = vld [vmem:[#allocation8 + $0x8] sm:$0xff]
    %v2122 = vld [vmem:[#allocation8 + $0x10] sm:$0xff]
    %v2123 = vld [vmem:[#allocation8 + $0x18] sm:$0xff]
    %v2124 = vld [vmem:[#allocation8 + $0x20] sm:$0xff]
    %v2125 = vld [vmem:[#allocation8 + $0x28] sm:$0xff]
    %v2126 = vld [vmem:[#allocation8 + $0x30] sm:$0xff]
    %v2127 = vld [vmem:[#allocation8 + $0x38] sm:$0xff]
    %v2128 = vld [vmem:[#allocation8 + $0x40] sm:$0xff]
    %v2129 = vld [vmem:[#allocation8 + $0x48] sm:$0xff]
    %v2130 = vld [vmem:[#allocation8 + $0x50] sm:$0xff]
    %v2131 = vld [vmem:[#allocation8 + $0x58] sm:$0xff]
    %v2132 = vld [vmem:[#allocation8 + $0x60] sm:$0xff]
    %v2133 = vld [vmem:[#allocation8 + $0x68] sm:$0xff]
    %v2134 = vld [vmem:[#allocation8 + $0x70] sm:$0xff]
    %v2135 = vld [vmem:[#allocation8 + $0x78] sm:$0xff]
    %v2136 = vld [vmem:[#allocation9] sm:$0x3]
    %v2138 = vlaneseq
    %v2139 = vshrl.u32 %v2138, 7
    %v2140 = vsub.s32 0, %v2139
    %v2141 = vrot.slane %v2136, %v2140
    %v2142 = vlaneseq
    %v2143 = vshrl.u32 %v2142, 7
    %v2144 = vsub.s32 1, %v2143
    %v2145 = vrot.slane %v2136, %v2144
    %v2164 = vunpack.c.l.b16 %v2120
    %v2165 = vunpack.c.h.b16 %v2120
    %v2166 = vunpack.c.l.b16 %v2121
    %v2167 = vunpack.c.h.b16 %v2121
    %v2168 = vunpack.c.l.b16 %v2122
    %v2169 = vunpack.c.h.b16 %v2122
    %v2170 = vunpack.c.l.b16 %v2123
    %v2171 = vunpack.c.h.b16 %v2123
    %v2172 = vunpack.c.l.b16 %v2124
    %v2173 = vunpack.c.h.b16 %v2124
    %v2174 = vunpack.c.l.b16 %v2125
    %v2175 = vunpack.c.h.b16 %v2125
    %v2176 = vunpack.c.l.b16 %v2126
    %v2177 = vunpack.c.h.b16 %v2126
    %v2178 = vunpack.c.l.b16 %v2127
    %v2179 = vunpack.c.h.b16 %v2127
    %v2180 = vunpack.c.l.b16 %v2128
    %v2181 = vunpack.c.h.b16 %v2128
    %v2182 = vunpack.c.l.b16 %v2129
    %v2183 = vunpack.c.h.b16 %v2129
    %v2184 = vunpack.c.l.b16 %v2130
    %v2185 = vunpack.c.h.b16 %v2130
    %v2186 = vunpack.c.l.b16 %v2131
    %v2187 = vunpack.c.h.b16 %v2131
    %v2188 = vunpack.c.l.b16 %v2132
    %v2189 = vunpack.c.h.b16 %v2132
    %v2190 = vunpack.c.l.b16 %v2133
    %v2191 = vunpack.c.h.b16 %v2133
    %v2192 = vunpack.c.l.b16 %v2134
    %v2193 = vunpack.c.h.b16 %v2134
    %v2194 = vunpack.c.l.b16 %v2135
    %v2195 = vunpack.c.h.b16 %v2135
    %v2196 = vpack.c.b16 %v2166, %v2164
    %v2197 = vpack.c.b16 %v2167, %v2165
    %v2198 = vpack.c.b16 %v2170, %v2168
    %v2199 = vpack.c.b16 %v2171, %v2169
    %v2200 = vpack.c.b16 %v2174, %v2172
    %v2201 = vpack.c.b16 %v2175, %v2173
    %v2202 = vpack.c.b16 %v2178, %v2176
    %v2203 = vpack.c.b16 %v2179, %v2177
    %v2204 = vpack.c.b16 %v2182, %v2180
    %v2205 = vpack.c.b16 %v2183, %v2181
    %v2206 = vpack.c.b16 %v2186, %v2184
    %v2207 = vpack.c.b16 %v2187, %v2185
    %v2208 = vpack.c.b16 %v2190, %v2188
    %v2209 = vpack.c.b16 %v2191, %v2189
    %v2210 = vpack.c.b16 %v2194, %v2192
    %v2211 = vpack.c.b16 %v2195, %v2193
    %2228 = vmatprep.subr.bf16.mxu0 %v2211
    %2229 = vmatpush1.bf16.msra.mxu0 %v2210
    %2230 = vmatprep.subr.bf16.mxu0 %v2209
    %2231 = vmatpush1.bf16.msra.mxu0 %v2208
    %2232 = vmatprep.subr.bf16.mxu0 %v2207
    %2233 = vmatpush1.bf16.msra.mxu0 %v2206
    %2234 = vmatprep.subr.bf16.mxu0 %v2205
    %2235 = vmatpush1.bf16.msra.mxu0 %v2204
    %2236 = vmatprep.subr.bf16.mxu0 %v2203
    %2237 = vmatpush1.bf16.msra.mxu0 %v2202
    %2238 = vmatprep.subr.bf16.mxu0 %v2201
    %2239 = vmatpush1.bf16.msra.mxu0 %v2200
    %2240 = vmatprep.subr.bf16.mxu0 %v2199
    %2241 = vmatpush1.bf16.msra.mxu0 %v2198
    %2242 = vmatprep.subr.bf16.mxu0 %v2197
    %2243 = vmatpush1.bf16.msra.mxu0 %v2196
    %2244 = vmatprep.subr.bf16.mxu0 0
    %2245 = vmatpush2.bf16.msra.mxu0 0
    %2246 = vmatprep.subr.bf16.mxu0 0
    %2247 = vmatpush2.bf16.msra.mxu0 0
    %2248 = vmatprep.subr.bf16.mxu0 0
    %2249 = vmatpush2.bf16.msra.mxu0 0
    %2250 = vmatprep.subr.bf16.mxu0 0
    %2251 = vmatpush2.bf16.msra.mxu0 0
    %2252 = vmatprep.subr.bf16.mxu0 0
    %2253 = vmatpush2.bf16.msra.mxu0 0
    %2254 = vmatprep.subr.bf16.mxu0 0
    %2255 = vmatpush2.bf16.msra.mxu0 0
    %2256 = vmatprep.subr.bf16.mxu0 0
    %2257 = vmatpush2.bf16.msra.mxu0 0
    %2258 = vmatprep.subr.bf16.mxu0 0
    %2259 = vmatpush2.bf16.msra.mxu0 0
    %2260 = vmatprep.mubr.bf16.mxu0 0
    %2261 = vmatmul.mubr.bf16.gmra.mxu0 %v2088
    %v2262 = vpop.f32.mrf.mxu0
    %v2263 = vadd.f32 %v2141, %v2262
    %v2264 = vpop.f32.mrf.mxu0
    %v2265 = vadd.f32 %v2145, %v2264
    %v2266 = vpop.f32.mrf.mxu0
    %v2267 = vadd.f32 %v2141, %v2266
    %v2268 = vpop.f32.mrf.mxu0
    %v2269 = vadd.f32 %v2145, %v2268
    %2270 = vmatprep.mubr.bf16.mxu0 0
    %2271 = vmatmul.mubr.bf16.gmra.mxu0 %v2089
    %v2272 = vpop.f32.mrf.mxu0
    %v2273 = vadd.f32 %v2141, %v2272
    %v2274 = vpop.f32.mrf.mxu0
    %v2275 = vadd.f32 %v2145, %v2274
    %v2276 = vpop.f32.mrf.mxu0
    %v2277 = vadd.f32 %v2141, %v2276
    %v2278 = vpop.f32.mrf.mxu0
    %v2279 = vadd.f32 %v2145, %v2278
    %2280 = vmatprep.mubr.bf16.mxu0 0
    %2281 = vmatmul.mubr.bf16.gmra.mxu0 %v2090
    %v2282 = vpop.f32.mrf.mxu0
    %v2283 = vadd.f32 %v2141, %v2282
    %v2284 = vpop.f32.mrf.mxu0
    %v2285 = vadd.f32 %v2145, %v2284
    %v2286 = vpop.f32.mrf.mxu0
    %v2287 = vadd.f32 %v2141, %v2286
    %v2288 = vpop.f32.mrf.mxu0
    %v2289 = vadd.f32 %v2145, %v2288
    %2290 = vmatprep.mubr.bf16.mxu0 0
    %2291 = vmatmul.mubr.bf16.gmra.mxu0 %v2091
    %v2292 = vpop.f32.mrf.mxu0
    %v2293 = vadd.f32 %v2141, %v2292
    %v2294 = vpop.f32.mrf.mxu0
    %v2295 = vadd.f32 %v2145, %v2294
    %v2296 = vpop.f32.mrf.mxu0
    %v2297 = vadd.f32 %v2141, %v2296
    %v2298 = vpop.f32.mrf.mxu0
    %v2299 = vadd.f32 %v2145, %v2298
    %2300 = vmatprep.mubr.bf16.mxu0 0
    %2301 = vmatmul.mubr.bf16.gmra.mxu0 %v2092
    %v2302 = vpop.f32.mrf.mxu0
    %v2303 = vadd.f32 %v2141, %v2302
    %v2304 = vpop.f32.mrf.mxu0
    %v2305 = vadd.f32 %v2145, %v2304
    %v2306 = vpop.f32.mrf.mxu0
    %v2307 = vadd.f32 %v2141, %v2306
    %v2308 = vpop.f32.mrf.mxu0
    %v2309 = vadd.f32 %v2145, %v2308
    %2310 = vmatprep.mubr.bf16.mxu0 0
    %2311 = vmatmul.mubr.bf16.gmra.mxu0 %v2093
    %v2312 = vpop.f32.mrf.mxu0
    %v2313 = vadd.f32 %v2141, %v2312
    %v2314 = vpop.f32.mrf.mxu0
    %v2315 = vadd.f32 %v2145, %v2314
    %v2316 = vpop.f32.mrf.mxu0
    %v2317 = vadd.f32 %v2141, %v2316
    %v2318 = vpop.f32.mrf.mxu0
    %v2319 = vadd.f32 %v2145, %v2318
    %2320 = vmatprep.mubr.bf16.mxu0 0
    %2321 = vmatmul.mubr.bf16.gmra.mxu0 %v2094
    %v2322 = vpop.f32.mrf.mxu0
    %v2323 = vadd.f32 %v2141, %v2322
    %v2324 = vpop.f32.mrf.mxu0
    %v2325 = vadd.f32 %v2145, %v2324
    %v2326 = vpop.f32.mrf.mxu0
    %v2327 = vadd.f32 %v2141, %v2326
    %v2328 = vpop.f32.mrf.mxu0
    %v2329 = vadd.f32 %v2145, %v2328
    %2330 = vmatprep.mubr.bf16.mxu0 0
    %2331 = vmatmul.mubr.bf16.gmra.mxu0 %v2095
    %v2332 = vpop.f32.mrf.mxu0
    %v2333 = vadd.f32 %v2141, %v2332
    %v2334 = vpop.f32.mrf.mxu0
    %v2335 = vadd.f32 %v2145, %v2334
    %v2336 = vpop.f32.mrf.mxu0
    %v2337 = vadd.f32 %v2141, %v2336
    %v2338 = vpop.f32.mrf.mxu0
    %v2339 = vadd.f32 %v2145, %v2338
    %2340 = vmatprep.mubr.bf16.mxu0 0
    %2341 = vmatmul.mubr.bf16.gmra.mxu0 %v2096
    %v2342 = vpop.f32.mrf.mxu0
    %v2343 = vadd.f32 %v2141, %v2342
    %v2344 = vpop.f32.mrf.mxu0
    %v2345 = vadd.f32 %v2145, %v2344
    %v2346 = vpop.f32.mrf.mxu0
    %v2347 = vadd.f32 %v2141, %v2346
    %v2348 = vpop.f32.mrf.mxu0
    %v2349 = vadd.f32 %v2145, %v2348
    %2350 = vmatprep.mubr.bf16.mxu0 0
    %2351 = vmatmul.mubr.bf16.gmra.mxu0 %v2097
    %v2352 = vpop.f32.mrf.mxu0
    %v2353 = vadd.f32 %v2141, %v2352
    %v2354 = vpop.f32.mrf.mxu0
    %v2355 = vadd.f32 %v2145, %v2354
    %v2356 = vpop.f32.mrf.mxu0
    %v2357 = vadd.f32 %v2141, %v2356
    %v2358 = vpop.f32.mrf.mxu0
    %v2359 = vadd.f32 %v2145, %v2358
    %2360 = vmatprep.mubr.bf16.mxu0 0
    %2361 = vmatmul.mubr.bf16.gmra.mxu0 %v2098
    %v2362 = vpop.f32.mrf.mxu0
    %v2363 = vadd.f32 %v2141, %v2362
    %v2364 = vpop.f32.mrf.mxu0
    %v2365 = vadd.f32 %v2145, %v2364
    %v2366 = vpop.f32.mrf.mxu0
    %v2367 = vadd.f32 %v2141, %v2366
    %v2368 = vpop.f32.mrf.mxu0
    %v2369 = vadd.f32 %v2145, %v2368
    %2370 = vmatprep.mubr.bf16.mxu0 0
    %2371 = vmatmul.mubr.bf16.gmra.mxu0 %v2099
    %v2372 = vpop.f32.mrf.mxu0
    %v2373 = vadd.f32 %v2141, %v2372
    %v2374 = vpop.f32.mrf.mxu0
    %v2375 = vadd.f32 %v2145, %v2374
    %v2376 = vpop.f32.mrf.mxu0
    %v2377 = vadd.f32 %v2141, %v2376
    %v2378 = vpop.f32.mrf.mxu0
    %v2379 = vadd.f32 %v2145, %v2378
    %2380 = vmatprep.mubr.bf16.mxu0 0
    %2381 = vmatmul.mubr.bf16.gmra.mxu0 %v2100
    %v2382 = vpop.f32.mrf.mxu0
    %v2383 = vadd.f32 %v2141, %v2382
    %v2384 = vpop.f32.mrf.mxu0
    %v2385 = vadd.f32 %v2145, %v2384
    %v2386 = vpop.f32.mrf.mxu0
    %v2387 = vadd.f32 %v2141, %v2386
    %v2388 = vpop.f32.mrf.mxu0
    %v2389 = vadd.f32 %v2145, %v2388
    %2390 = vmatprep.mubr.bf16.mxu0 0
    %2391 = vmatmul.mubr.bf16.gmra.mxu0 %v2101
    %v2392 = vpop.f32.mrf.mxu0
    %v2393 = vadd.f32 %v2141, %v2392
    %v2394 = vpop.f32.mrf.mxu0
    %v2395 = vadd.f32 %v2145, %v2394
    %v2396 = vpop.f32.mrf.mxu0
    %v2397 = vadd.f32 %v2141, %v2396
    %v2398 = vpop.f32.mrf.mxu0
    %v2399 = vadd.f32 %v2145, %v2398
    %2400 = vmatprep.mubr.bf16.mxu0 0
    %2401 = vmatmul.mubr.bf16.gmra.mxu0 %v2102
    %v2402 = vpop.f32.mrf.mxu0
    %v2403 = vadd.f32 %v2141, %v2402
    %v2404 = vpop.f32.mrf.mxu0
    %v2405 = vadd.f32 %v2145, %v2404
    %v2406 = vpop.f32.mrf.mxu0
    %v2407 = vadd.f32 %v2141, %v2406
    %v2408 = vpop.f32.mrf.mxu0
    %v2409 = vadd.f32 %v2145, %v2408
    %2410 = vmatprep.mubr.bf16.mxu0 0
    %2411 = vmatmul.mubr.bf16.gmra.mxu0 %v2103
    %v2412 = vpop.f32.mrf.mxu0
    %v2413 = vadd.f32 %v2141, %v2412
    %v2414 = vpop.f32.mrf.mxu0
    %v2415 = vadd.f32 %v2145, %v2414
    %v2416 = vpop.f32.mrf.mxu0
    %v2417 = vadd.f32 %v2141, %v2416
    %v2418 = vpop.f32.mrf.mxu0
    %v2419 = vadd.f32 %v2145, %v2418
    %2420 = vmatprep.mubr.bf16.mxu0 0
    %2421 = vmatmul.mubr.bf16.gmra.mxu0 %v2104
    %v2422 = vpop.f32.mrf.mxu0
    %v2423 = vadd.f32 %v2141, %v2422
    %v2424 = vpop.f32.mrf.mxu0
    %v2425 = vadd.f32 %v2145, %v2424
    %v2426 = vpop.f32.mrf.mxu0
    %v2427 = vadd.f32 %v2141, %v2426
    %v2428 = vpop.f32.mrf.mxu0
    %v2429 = vadd.f32 %v2145, %v2428
    %2430 = vmatprep.mubr.bf16.mxu0 0
    %2431 = vmatmul.mubr.bf16.gmra.mxu0 %v2105
    %v2432 = vpop.f32.mrf.mxu0
    %v2433 = vadd.f32 %v2141, %v2432
    %v2434 = vpop.f32.mrf.mxu0
    %v2435 = vadd.f32 %v2145, %v2434
    %v2436 = vpop.f32.mrf.mxu0
    %v2437 = vadd.f32 %v2141, %v2436
    %v2438 = vpop.f32.mrf.mxu0
    %v2439 = vadd.f32 %v2145, %v2438
    %2440 = vmatprep.mubr.bf16.mxu0 0
    %2441 = vmatmul.mubr.bf16.gmra.mxu0 %v2106
    %v2442 = vpop.f32.mrf.mxu0
    %v2443 = vadd.f32 %v2141, %v2442
    %v2444 = vpop.f32.mrf.mxu0
    %v2445 = vadd.f32 %v2145, %v2444
    %v2446 = vpop.f32.mrf.mxu0
    %v2447 = vadd.f32 %v2141, %v2446
    %v2448 = vpop.f32.mrf.mxu0
    %v2449 = vadd.f32 %v2145, %v2448
    %2450 = vmatprep.mubr.bf16.mxu0 0
    %2451 = vmatmul.mubr.bf16.gmra.mxu0 %v2107
    %v2452 = vpop.f32.mrf.mxu0
    %v2453 = vadd.f32 %v2141, %v2452
    %v2454 = vpop.f32.mrf.mxu0
    %v2455 = vadd.f32 %v2145, %v2454
    %v2456 = vpop.f32.mrf.mxu0
    %v2457 = vadd.f32 %v2141, %v2456
    %v2458 = vpop.f32.mrf.mxu0
    %v2459 = vadd.f32 %v2145, %v2458
    %2460 = vmatprep.mubr.bf16.mxu0 0
    %2461 = vmatmul.mubr.bf16.gmra.mxu0 %v2108
    %v2462 = vpop.f32.mrf.mxu0
    %v2463 = vadd.f32 %v2141, %v2462
    %v2464 = vpop.f32.mrf.mxu0
    %v2465 = vadd.f32 %v2145, %v2464
    %v2466 = vpop.f32.mrf.mxu0
    %v2467 = vadd.f32 %v2141, %v2466
    %v2468 = vpop.f32.mrf.mxu0
    %v2469 = vadd.f32 %v2145, %v2468
    %2470 = vmatprep.mubr.bf16.mxu0 0
    %2471 = vmatmul.mubr.bf16.gmra.mxu0 %v2109
    %v2472 = vpop.f32.mrf.mxu0
    %v2473 = vadd.f32 %v2141, %v2472
    %v2474 = vpop.f32.mrf.mxu0
    %v2475 = vadd.f32 %v2145, %v2474
    %v2476 = vpop.f32.mrf.mxu0
    %v2477 = vadd.f32 %v2141, %v2476
    %v2478 = vpop.f32.mrf.mxu0
    %v2479 = vadd.f32 %v2145, %v2478
    %2480 = vmatprep.mubr.bf16.mxu0 0
    %2481 = vmatmul.mubr.bf16.gmra.mxu0 %v2110
    %v2482 = vpop.f32.mrf.mxu0
    %v2483 = vadd.f32 %v2141, %v2482
    %v2484 = vpop.f32.mrf.mxu0
    %v2485 = vadd.f32 %v2145, %v2484
    %v2486 = vpop.f32.mrf.mxu0
    %v2487 = vadd.f32 %v2141, %v2486
    %v2488 = vpop.f32.mrf.mxu0
    %v2489 = vadd.f32 %v2145, %v2488
    %2490 = vmatprep.mubr.bf16.mxu0 0
    %2491 = vmatmul.mubr.bf16.gmra.mxu0 %v2111
    %v2492 = vpop.f32.mrf.mxu0
    %v2493 = vadd.f32 %v2141, %v2492
    %v2494 = vpop.f32.mrf.mxu0
    %v2495 = vadd.f32 %v2145, %v2494
    %v2496 = vpop.f32.mrf.mxu0
    %v2497 = vadd.f32 %v2141, %v2496
    %v2498 = vpop.f32.mrf.mxu0
    %v2499 = vadd.f32 %v2145, %v2498
    %2500 = vmatprep.mubr.bf16.mxu0 0
    %2501 = vmatmul.mubr.bf16.gmra.mxu0 %v2112
    %v2502 = vpop.f32.mrf.mxu0
    %v2503 = vadd.f32 %v2141, %v2502
    %v2504 = vpop.f32.mrf.mxu0
    %v2505 = vadd.f32 %v2145, %v2504
    %v2506 = vpop.f32.mrf.mxu0
    %v2507 = vadd.f32 %v2141, %v2506
    %v2508 = vpop.f32.mrf.mxu0
    %v2509 = vadd.f32 %v2145, %v2508
    %2510 = vmatprep.mubr.bf16.mxu0 0
    %2511 = vmatmul.mubr.bf16.gmra.mxu0 %v2113
    %v2512 = vpop.f32.mrf.mxu0
    %v2513 = vadd.f32 %v2141, %v2512
    %v2514 = vpop.f32.mrf.mxu0
    %v2515 = vadd.f32 %v2145, %v2514
    %v2516 = vpop.f32.mrf.mxu0
    %v2517 = vadd.f32 %v2141, %v2516
    %v2518 = vpop.f32.mrf.mxu0
    %v2519 = vadd.f32 %v2145, %v2518
    %2520 = vmatprep.mubr.bf16.mxu0 0
    %2521 = vmatmul.mubr.bf16.gmra.mxu0 %v2114
    %v2522 = vpop.f32.mrf.mxu0
    %v2523 = vadd.f32 %v2141, %v2522
    %v2524 = vpop.f32.mrf.mxu0
    %v2525 = vadd.f32 %v2145, %v2524
    %v2526 = vpop.f32.mrf.mxu0
    %v2527 = vadd.f32 %v2141, %v2526
    %v2528 = vpop.f32.mrf.mxu0
    %v2529 = vadd.f32 %v2145, %v2528
    %2530 = vmatprep.mubr.bf16.mxu0 0
    %2531 = vmatmul.mubr.bf16.gmra.mxu0 %v2115
    %v2532 = vpop.f32.mrf.mxu0
    %v2533 = vadd.f32 %v2141, %v2532
    %v2534 = vpop.f32.mrf.mxu0
    %v2535 = vadd.f32 %v2145, %v2534
    %v2536 = vpop.f32.mrf.mxu0
    %v2537 = vadd.f32 %v2141, %v2536
    %v2538 = vpop.f32.mrf.mxu0
    %v2539 = vadd.f32 %v2145, %v2538
    %2540 = vmatprep.mubr.bf16.mxu0 0
    %2541 = vmatmul.mubr.bf16.gmra.mxu0 %v2116
    %v2542 = vpop.f32.mrf.mxu0
    %v2543 = vadd.f32 %v2141, %v2542
    %v2544 = vpop.f32.mrf.mxu0
    %v2545 = vadd.f32 %v2145, %v2544
    %v2546 = vpop.f32.mrf.mxu0
    %v2547 = vadd.f32 %v2141, %v2546
    %v2548 = vpop.f32.mrf.mxu0
    %v2549 = vadd.f32 %v2145, %v2548
    %2550 = vmatprep.mubr.bf16.mxu0 0
    %2551 = vmatmul.mubr.bf16.gmra.mxu0 %v2117
    %v2552 = vpop.f32.mrf.mxu0
    %v2553 = vadd.f32 %v2141, %v2552
    %v2554 = vpop.f32.mrf.mxu0
    %v2555 = vadd.f32 %v2145, %v2554
    %v2556 = vpop.f32.mrf.mxu0
    %v2557 = vadd.f32 %v2141, %v2556
    %v2558 = vpop.f32.mrf.mxu0
    %v2559 = vadd.f32 %v2145, %v2558
    %2560 = vmatprep.mubr.bf16.mxu0 0
    %2561 = vmatmul.mubr.bf16.gmra.mxu0 %v2118
    %v2562 = vpop.f32.mrf.mxu0
    %v2563 = vadd.f32 %v2141, %v2562
    %v2564 = vpop.f32.mrf.mxu0
    %v2565 = vadd.f32 %v2145, %v2564
    %v2566 = vpop.f32.mrf.mxu0
    %v2567 = vadd.f32 %v2141, %v2566
    %v2568 = vpop.f32.mrf.mxu0
    %v2569 = vadd.f32 %v2145, %v2568
    %2570 = vmatprep.mubr.bf16.mxu0 0
    %2571 = vmatmul.mubr.bf16.gmra.mxu0 %v2119
    %v2572 = vpop.f32.mrf.mxu0
    %v2573 = vadd.f32 %v2141, %v2572
    %v2574 = vpop.f32.mrf.mxu0
    %v2575 = vadd.f32 %v2145, %v2574
    %v2576 = vpop.f32.mrf.mxu0
    %v2577 = vadd.f32 %v2141, %v2576
    %v2578 = vpop.f32.mrf.mxu0
    %v2579 = vadd.f32 %v2145, %v2578
    %2580 = vdwg.mxu0
    %v2581 = vmax.f32 %v2263, 0.0
    %v2582 = vmax.f32 %v2265, 0.0
    %v2583 = vmax.f32 %v2267, 0.0
    %v2584 = vmax.f32 %v2269, 0.0
    %v2585 = vmax.f32 %v2273, 0.0
    %v2586 = vmax.f32 %v2275, 0.0
    %v2587 = vmax.f32 %v2277, 0.0
    %v2588 = vmax.f32 %v2279, 0.0
    %v2589 = vmax.f32 %v2283, 0.0
    %v2590 = vmax.f32 %v2285, 0.0
    %v2591 = vmax.f32 %v2287, 0.0
    %v2592 = vmax.f32 %v2289, 0.0
    %v2593 = vmax.f32 %v2293, 0.0
    %v2594 = vmax.f32 %v2295, 0.0
    %v2595 = vmax.f32 %v2297, 0.0
    %v2596 = vmax.f32 %v2299, 0.0
    %v2597 = vmax.f32 %v2303, 0.0
    %v2598 = vmax.f32 %v2305, 0.0
    %v2599 = vmax.f32 %v2307, 0.0
    %v2600 = vmax.f32 %v2309, 0.0
    %v2601 = vmax.f32 %v2313, 0.0
    %v2602 = vmax.f32 %v2315, 0.0
    %v2603 = vmax.f32 %v2317, 0.0
    %v2604 = vmax.f32 %v2319, 0.0
    %v2605 = vmax.f32 %v2323, 0.0
    %v2606 = vmax.f32 %v2325, 0.0
    %v2607 = vmax.f32 %v2327, 0.0
    %v2608 = vmax.f32 %v2329, 0.0
    %v2609 = vmax.f32 %v2333, 0.0
    %v2610 = vmax.f32 %v2335, 0.0
    %v2611 = vmax.f32 %v2337, 0.0
    %v2612 = vmax.f32 %v2339, 0.0
    %v2613 = vmax.f32 %v2343, 0.0
    %v2614 = vmax.f32 %v2345, 0.0
    %v2615 = vmax.f32 %v2347, 0.0
    %v2616 = vmax.f32 %v2349, 0.0
    %v2617 = vmax.f32 %v2353, 0.0
    %v2618 = vmax.f32 %v2355, 0.0
    %v2619 = vmax.f32 %v2357, 0.0
    %v2620 = vmax.f32 %v2359, 0.0
    %v2621 = vmax.f32 %v2363, 0.0
    %v2622 = vmax.f32 %v2365, 0.0
    %v2623 = vmax.f32 %v2367, 0.0
    %v2624 = vmax.f32 %v2369, 0.0
    %v2625 = vmax.f32 %v2373, 0.0
    %v2626 = vmax.f32 %v2375, 0.0
    %v2627 = vmax.f32 %v2377, 0.0
    %v2628 = vmax.f32 %v2379, 0.0
    %v2629 = vmax.f32 %v2383, 0.0
    %v2630 = vmax.f32 %v2385, 0.0
    %v2631 = vmax.f32 %v2387, 0.0
    %v2632 = vmax.f32 %v2389, 0.0
    %v2633 = vmax.f32 %v2393, 0.0
    %v2634 = vmax.f32 %v2395, 0.0
    %v2635 = vmax.f32 %v2397, 0.0
    %v2636 = vmax.f32 %v2399, 0.0
    %v2637 = vmax.f32 %v2403, 0.0
    %v2638 = vmax.f32 %v2405, 0.0
    %v2639 = vmax.f32 %v2407, 0.0
    %v2640 = vmax.f32 %v2409, 0.0
    %v2641 = vmax.f32 %v2413, 0.0
    %v2642 = vmax.f32 %v2415, 0.0
    %v2643 = vmax.f32 %v2417, 0.0
    %v2644 = vmax.f32 %v2419, 0.0
    %v2645 = vmax.f32 %v2423, 0.0
    %v2646 = vmax.f32 %v2425, 0.0
    %v2647 = vmax.f32 %v2427, 0.0
    %v2648 = vmax.f32 %v2429, 0.0
    %v2649 = vmax.f32 %v2433, 0.0
    %v2650 = vmax.f32 %v2435, 0.0
    %v2651 = vmax.f32 %v2437, 0.0
    %v2652 = vmax.f32 %v2439, 0.0
    %v2653 = vmax.f32 %v2443, 0.0
    %v2654 = vmax.f32 %v2445, 0.0
    %v2655 = vmax.f32 %v2447, 0.0
    %v2656 = vmax.f32 %v2449, 0.0
    %v2657 = vmax.f32 %v2453, 0.0
    %v2658 = vmax.f32 %v2455, 0.0
    %v2659 = vmax.f32 %v2457, 0.0
    %v2660 = vmax.f32 %v2459, 0.0
    %v2661 = vmax.f32 %v2463, 0.0
    %v2662 = vmax.f32 %v2465, 0.0
    %v2663 = vmax.f32 %v2467, 0.0
    %v2664 = vmax.f32 %v2469, 0.0
    %v2665 = vmax.f32 %v2473, 0.0
    %v2666 = vmax.f32 %v2475, 0.0
    %v2667 = vmax.f32 %v2477, 0.0
    %v2668 = vmax.f32 %v2479, 0.0
    %v2669 = vmax.f32 %v2483, 0.0
    %v2670 = vmax.f32 %v2485, 0.0
    %v2671 = vmax.f32 %v2487, 0.0
    %v2672 = vmax.f32 %v2489, 0.0
    %v2673 = vmax.f32 %v2493, 0.0
    %v2674 = vmax.f32 %v2495, 0.0
    %v2675 = vmax.f32 %v2497, 0.0
    %v2676 = vmax.f32 %v2499, 0.0
    %v2677 = vmax.f32 %v2503, 0.0
    %v2678 = vmax.f32 %v2505, 0.0
    %v2679 = vmax.f32 %v2507, 0.0
    %v2680 = vmax.f32 %v2509, 0.0
    %v2681 = vmax.f32 %v2513, 0.0
    %v2682 = vmax.f32 %v2515, 0.0
    %v2683 = vmax.f32 %v2517, 0.0
    %v2684 = vmax.f32 %v2519, 0.0
    %v2685 = vmax.f32 %v2523, 0.0
    %v2686 = vmax.f32 %v2525, 0.0
    %v2687 = vmax.f32 %v2527, 0.0
    %v2688 = vmax.f32 %v2529, 0.0
    %v2689 = vmax.f32 %v2533, 0.0
    %v2690 = vmax.f32 %v2535, 0.0
    %v2691 = vmax.f32 %v2537, 0.0
    %v2692 = vmax.f32 %v2539, 0.0
    %v2693 = vmax.f32 %v2543, 0.0
    %v2694 = vmax.f32 %v2545, 0.0
    %v2695 = vmax.f32 %v2547, 0.0
    %v2696 = vmax.f32 %v2549, 0.0
    %v2697 = vmax.f32 %v2553, 0.0
    %v2698 = vmax.f32 %v2555, 0.0
    %v2699 = vmax.f32 %v2557, 0.0
    %v2700 = vmax.f32 %v2559, 0.0
    %v2701 = vmax.f32 %v2563, 0.0
    %v2702 = vmax.f32 %v2565, 0.0
    %v2703 = vmax.f32 %v2567, 0.0
    %v2704 = vmax.f32 %v2569, 0.0
    %v2705 = vmax.f32 %v2573, 0.0
    %v2706 = vmax.f32 %v2575, 0.0
    %v2707 = vmax.f32 %v2577, 0.0
    %v2708 = vmax.f32 %v2579, 0.0
    %v2709 = vpack.c.bf16 %v2583, %v2581
    %v2710 = vpack.c.bf16 %v2584, %v2582
    %v2711 = vpack.c.bf16 %v2587, %v2585
    %v2712 = vpack.c.bf16 %v2588, %v2586
    %v2713 = vpack.c.bf16 %v2591, %v2589
    %v2714 = vpack.c.bf16 %v2592, %v2590
    %v2715 = vpack.c.bf16 %v2595, %v2593
    %v2716 = vpack.c.bf16 %v2596, %v2594
    %v2717 = vpack.c.bf16 %v2599, %v2597
    %v2718 = vpack.c.bf16 %v2600, %v2598
    %v2719 = vpack.c.bf16 %v2603, %v2601
    %v2720 = vpack.c.bf16 %v2604, %v2602
    %v2721 = vpack.c.bf16 %v2607, %v2605
    %v2722 = vpack.c.bf16 %v2608, %v2606
    %v2723 = vpack.c.bf16 %v2611, %v2609
    %v2724 = vpack.c.bf16 %v2612, %v2610
    %v2725 = vpack.c.bf16 %v2615, %v2613
    %v2726 = vpack.c.bf16 %v2616, %v2614
    %v2727 = vpack.c.bf16 %v2619, %v2617
    %v2728 = vpack.c.bf16 %v2620, %v2618
    %v2729 = vpack.c.bf16 %v2623, %v2621
    %v2730 = vpack.c.bf16 %v2624, %v2622
    %v2731 = vpack.c.bf16 %v2627, %v2625
    %v2732 = vpack.c.bf16 %v2628, %v2626
    %v2733 = vpack.c.bf16 %v2631, %v2629
    %v2734 = vpack.c.bf16 %v2632, %v2630
    %v2735 = vpack.c.bf16 %v2635, %v2633
    %v2736 = vpack.c.bf16 %v2636, %v2634
    %v2737 = vpack.c.bf16 %v2639, %v2637
    %v2738 = vpack.c.bf16 %v2640, %v2638
    %v2739 = vpack.c.bf16 %v2643, %v2641
    %v2740 = vpack.c.bf16 %v2644, %v2642
    %v2741 = vpack.c.bf16 %v2647, %v2645
    %v2742 = vpack.c.bf16 %v2648, %v2646
    %v2743 = vpack.c.bf16 %v2651, %v2649
    %v2744 = vpack.c.bf16 %v2652, %v2650
    %v2745 = vpack.c.bf16 %v2655, %v2653
    %v2746 = vpack.c.bf16 %v2656, %v2654
    %v2747 = vpack.c.bf16 %v2659, %v2657
    %v2748 = vpack.c.bf16 %v2660, %v2658
    %v2749 = vpack.c.bf16 %v2663, %v2661
    %v2750 = vpack.c.bf16 %v2664, %v2662
    %v2751 = vpack.c.bf16 %v2667, %v2665
    %v2752 = vpack.c.bf16 %v2668, %v2666
    %v2753 = vpack.c.bf16 %v2671, %v2669
    %v2754 = vpack.c.bf16 %v2672, %v2670
    %v2755 = vpack.c.bf16 %v2675, %v2673
    %v2756 = vpack.c.bf16 %v2676, %v2674
    %v2757 = vpack.c.bf16 %v2679, %v2677
    %v2758 = vpack.c.bf16 %v2680, %v2678
    %v2759 = vpack.c.bf16 %v2683, %v2681
    %v2760 = vpack.c.bf16 %v2684, %v2682
    %v2761 = vpack.c.bf16 %v2687, %v2685
    %v2762 = vpack.c.bf16 %v2688, %v2686
    %v2763 = vpack.c.bf16 %v2691, %v2689
    %v2764 = vpack.c.bf16 %v2692, %v2690
    %v2765 = vpack.c.bf16 %v2695, %v2693
    %v2766 = vpack.c.bf16 %v2696, %v2694
    %v2767 = vpack.c.bf16 %v2699, %v2697
    %v2768 = vpack.c.bf16 %v2700, %v2698
    %v2769 = vpack.c.bf16 %v2703, %v2701
    %v2770 = vpack.c.bf16 %v2704, %v2702
    %v2771 = vpack.c.bf16 %v2707, %v2705
    %v2772 = vpack.c.bf16 %v2708, %v2706
    %v2773 = vld [vmem:[%s7] sm:$0xff]
    %v2774 = vld [vmem:[%s7 + $0x8] sm:$0xff]
    %v2775 = vld [vmem:[%s7 + $0x10] sm:$0xff]
    %v2776 = vld [vmem:[%s7 + $0x18] sm:$0xff]
    %v2777 = vld [vmem:[%s7 + $0x20] sm:$0xff]
    %v2778 = vld [vmem:[%s7 + $0x28] sm:$0xff]
    %v2779 = vld [vmem:[%s7 + $0x30] sm:$0xff]
    %v2780 = vld [vmem:[%s7 + $0x38] sm:$0xff]
    %v2781 = vld [vmem:[%s7 + $0x40] sm:$0xff]
    %v2782 = vld [vmem:[%s7 + $0x48] sm:$0xff]
    %v2783 = vld [vmem:[%s7 + $0x50] sm:$0xff]
    %v2784 = vld [vmem:[%s7 + $0x58] sm:$0xff]
    %v2785 = vld [vmem:[%s7 + $0x60] sm:$0xff]
    %v2786 = vld [vmem:[%s7 + $0x68] sm:$0xff]
    %v2787 = vld [vmem:[%s7 + $0x70] sm:$0xff]
    %v2788 = vld [vmem:[%s7 + $0x78] sm:$0xff]
    %v2789 = vld [vmem:[%s7 + $0x80] sm:$0xff]
    %v2790 = vld [vmem:[%s7 + $0x88] sm:$0xff]
    %v2791 = vld [vmem:[%s7 + $0x90] sm:$0xff]
    %v2792 = vld [vmem:[%s7 + $0x98] sm:$0xff]
    %v2793 = vld [vmem:[%s7 + $0xa0] sm:$0xff]
    %v2794 = vld [vmem:[%s7 + $0xa8] sm:$0xff]
    %v2795 = vld [vmem:[%s7 + $0xb0] sm:$0xff]
    %v2796 = vld [vmem:[%s7 + $0xb8] sm:$0xff]
    %v2797 = vld [vmem:[%s7 + $0xc0] sm:$0xff]
    %v2798 = vld [vmem:[%s7 + $0xc8] sm:$0xff]
    %v2799 = vld [vmem:[%s7 + $0xd0] sm:$0xff]
    %v2800 = vld [vmem:[%s7 + $0xd8] sm:$0xff]
    %v2801 = vld [vmem:[%s7 + $0xe0] sm:$0xff]
    %v2802 = vld [vmem:[%s7 + $0xe8] sm:$0xff]
    %v2803 = vld [vmem:[%s7 + $0xf0] sm:$0xff]
    %v2804 = vld [vmem:[%s7 + $0xf8] sm:$0xff]
    %v2805 = vld [vmem:[%s7 + $0x100] sm:$0xff]
    %v2806 = vld [vmem:[%s7 + $0x108] sm:$0xff]
    %v2807 = vld [vmem:[%s7 + $0x110] sm:$0xff]
    %v2808 = vld [vmem:[%s7 + $0x118] sm:$0xff]
    %v2809 = vld [vmem:[%s7 + $0x120] sm:$0xff]
    %v2810 = vld [vmem:[%s7 + $0x128] sm:$0xff]
    %v2811 = vld [vmem:[%s7 + $0x130] sm:$0xff]
    %v2812 = vld [vmem:[%s7 + $0x138] sm:$0xff]
    %v2813 = vld [vmem:[%s7 + $0x140] sm:$0xff]
    %v2814 = vld [vmem:[%s7 + $0x148] sm:$0xff]
    %v2815 = vld [vmem:[%s7 + $0x150] sm:$0xff]
    %v2816 = vld [vmem:[%s7 + $0x158] sm:$0xff]
    %v2817 = vld [vmem:[%s7 + $0x160] sm:$0xff]
    %v2818 = vld [vmem:[%s7 + $0x168] sm:$0xff]
    %v2819 = vld [vmem:[%s7 + $0x170] sm:$0xff]
    %v2820 = vld [vmem:[%s7 + $0x178] sm:$0xff]
    %v2821 = vld [vmem:[%s7 + $0x180] sm:$0xff]
    %v2822 = vld [vmem:[%s7 + $0x188] sm:$0xff]
    %v2823 = vld [vmem:[%s7 + $0x190] sm:$0xff]
    %v2824 = vld [vmem:[%s7 + $0x198] sm:$0xff]
    %v2825 = vld [vmem:[%s7 + $0x1a0] sm:$0xff]
    %v2826 = vld [vmem:[%s7 + $0x1a8] sm:$0xff]
    %v2827 = vld [vmem:[%s7 + $0x1b0] sm:$0xff]
    %v2828 = vld [vmem:[%s7 + $0x1b8] sm:$0xff]
    %v2829 = vld [vmem:[%s7 + $0x1c0] sm:$0xff]
    %v2830 = vld [vmem:[%s7 + $0x1c8] sm:$0xff]
    %v2831 = vld [vmem:[%s7 + $0x1d0] sm:$0xff]
    %v2832 = vld [vmem:[%s7 + $0x1d8] sm:$0xff]
    %v2833 = vld [vmem:[%s7 + $0x1e0] sm:$0xff]
    %v2834 = vld [vmem:[%s7 + $0x1e8] sm:$0xff]
    %v2835 = vld [vmem:[%s7 + $0x1f0] sm:$0xff]
    %v2836 = vld [vmem:[%s7 + $0x1f8] sm:$0xff]
    %v2837 = vld [vmem:[#allocation11] sm:$0xf]
    %v2839 = vlaneseq
    %v2840 = vshrl.u32 %v2839, 7
    %v2841 = vsub.s32 0, %v2840
    %v2842 = vrot.slane %v2837, %v2841
    %v2843 = vlaneseq
    %v2844 = vshrl.u32 %v2843, 7
    %v2845 = vsub.s32 1, %v2844
    %v2846 = vrot.slane %v2837, %v2845
    %v2847 = vlaneseq
    %v2848 = vshrl.u32 %v2847, 7
    %v2849 = vsub.s32 2, %v2848
    %v2850 = vrot.slane %v2837, %v2849
    %v2851 = vlaneseq
    %v2852 = vshrl.u32 %v2851, 7
    %v2853 = vsub.s32 3, %v2852
    %v2854 = vrot.slane %v2837, %v2853
    %v2923 = vunpack.c.l.b16 %v2773
    %v2924 = vunpack.c.h.b16 %v2773
    %v2925 = vunpack.c.l.b16 %v2774
    %v2926 = vunpack.c.h.b16 %v2774
    %v2927 = vunpack.c.l.b16 %v2775
    %v2928 = vunpack.c.h.b16 %v2775
    %v2929 = vunpack.c.l.b16 %v2776
    %v2930 = vunpack.c.h.b16 %v2776
    %v2931 = vunpack.c.l.b16 %v2777
    %v2932 = vunpack.c.h.b16 %v2777
    %v2933 = vunpack.c.l.b16 %v2778
    %v2934 = vunpack.c.h.b16 %v2778
    %v2935 = vunpack.c.l.b16 %v2779
    %v2936 = vunpack.c.h.b16 %v2779
    %v2937 = vunpack.c.l.b16 %v2780
    %v2938 = vunpack.c.h.b16 %v2780
    %v2939 = vunpack.c.l.b16 %v2781
    %v2940 = vunpack.c.h.b16 %v2781
    %v2941 = vunpack.c.l.b16 %v2782
    %v2942 = vunpack.c.h.b16 %v2782
    %v2943 = vunpack.c.l.b16 %v2783
    %v2944 = vunpack.c.h.b16 %v2783
    %v2945 = vunpack.c.l.b16 %v2784
    %v2946 = vunpack.c.h.b16 %v2784
    %v2947 = vunpack.c.l.b16 %v2785
    %v2948 = vunpack.c.h.b16 %v2785
    %v2949 = vunpack.c.l.b16 %v2786
    %v2950 = vunpack.c.h.b16 %v2786
    %v2951 = vunpack.c.l.b16 %v2787
    %v2952 = vunpack.c.h.b16 %v2787
    %v2953 = vunpack.c.l.b16 %v2788
    %v2954 = vunpack.c.h.b16 %v2788
    %v2955 = vunpack.c.l.b16 %v2789
    %v2956 = vunpack.c.h.b16 %v2789
    %v2957 = vunpack.c.l.b16 %v2790
    %v2958 = vunpack.c.h.b16 %v2790
    %v2959 = vunpack.c.l.b16 %v2791
    %v2960 = vunpack.c.h.b16 %v2791
    %v2961 = vunpack.c.l.b16 %v2792
    %v2962 = vunpack.c.h.b16 %v2792
    %v2963 = vunpack.c.l.b16 %v2793
    %v2964 = vunpack.c.h.b16 %v2793
    %v2965 = vunpack.c.l.b16 %v2794
    %v2966 = vunpack.c.h.b16 %v2794
    %v2967 = vunpack.c.l.b16 %v2795
    %v2968 = vunpack.c.h.b16 %v2795
    %v2969 = vunpack.c.l.b16 %v2796
    %v2970 = vunpack.c.h.b16 %v2796
    %v2971 = vunpack.c.l.b16 %v2797
    %v2972 = vunpack.c.h.b16 %v2797
    %v2973 = vunpack.c.l.b16 %v2798
    %v2974 = vunpack.c.h.b16 %v2798
    %v2975 = vunpack.c.l.b16 %v2799
    %v2976 = vunpack.c.h.b16 %v2799
    %v2977 = vunpack.c.l.b16 %v2800
    %v2978 = vunpack.c.h.b16 %v2800
    %v2979 = vunpack.c.l.b16 %v2801
    %v2980 = vunpack.c.h.b16 %v2801
    %v2981 = vunpack.c.l.b16 %v2802
    %v2982 = vunpack.c.h.b16 %v2802
    %v2983 = vunpack.c.l.b16 %v2803
    %v2984 = vunpack.c.h.b16 %v2803
    %v2985 = vunpack.c.l.b16 %v2804
    %v2986 = vunpack.c.h.b16 %v2804
    %v2987 = vunpack.c.l.b16 %v2805
    %v2988 = vunpack.c.h.b16 %v2805
    %v2989 = vunpack.c.l.b16 %v2806
    %v2990 = vunpack.c.h.b16 %v2806
    %v2991 = vunpack.c.l.b16 %v2807
    %v2992 = vunpack.c.h.b16 %v2807
    %v2993 = vunpack.c.l.b16 %v2808
    %v2994 = vunpack.c.h.b16 %v2808
    %v2995 = vunpack.c.l.b16 %v2809
    %v2996 = vunpack.c.h.b16 %v2809
    %v2997 = vunpack.c.l.b16 %v2810
    %v2998 = vunpack.c.h.b16 %v2810
    %v2999 = vunpack.c.l.b16 %v2811
    %v3000 = vunpack.c.h.b16 %v2811
    %v3001 = vunpack.c.l.b16 %v2812
    %v3002 = vunpack.c.h.b16 %v2812
    %v3003 = vunpack.c.l.b16 %v2813
    %v3004 = vunpack.c.h.b16 %v2813
    %v3005 = vunpack.c.l.b16 %v2814
    %v3006 = vunpack.c.h.b16 %v2814
    %v3007 = vunpack.c.l.b16 %v2815
    %v3008 = vunpack.c.h.b16 %v2815
    %v3009 = vunpack.c.l.b16 %v2816
    %v3010 = vunpack.c.h.b16 %v2816
    %v3011 = vunpack.c.l.b16 %v2817
    %v3012 = vunpack.c.h.b16 %v2817
    %v3013 = vunpack.c.l.b16 %v2818
    %v3014 = vunpack.c.h.b16 %v2818
    %v3015 = vunpack.c.l.b16 %v2819
    %v3016 = vunpack.c.h.b16 %v2819
    %v3017 = vunpack.c.l.b16 %v2820
    %v3018 = vunpack.c.h.b16 %v2820
    %v3019 = vunpack.c.l.b16 %v2821
    %v3020 = vunpack.c.h.b16 %v2821
    %v3021 = vunpack.c.l.b16 %v2822
    %v3022 = vunpack.c.h.b16 %v2822
    %v3023 = vunpack.c.l.b16 %v2823
    %v3024 = vunpack.c.h.b16 %v2823
    %v3025 = vunpack.c.l.b16 %v2824
    %v3026 = vunpack.c.h.b16 %v2824
    %v3027 = vunpack.c.l.b16 %v2825
    %v3028 = vunpack.c.h.b16 %v2825
    %v3029 = vunpack.c.l.b16 %v2826
    %v3030 = vunpack.c.h.b16 %v2826
    %v3031 = vunpack.c.l.b16 %v2827
    %v3032 = vunpack.c.h.b16 %v2827
    %v3033 = vunpack.c.l.b16 %v2828
    %v3034 = vunpack.c.h.b16 %v2828
    %v3035 = vunpack.c.l.b16 %v2829
    %v3036 = vunpack.c.h.b16 %v2829
    %v3037 = vunpack.c.l.b16 %v2830
    %v3038 = vunpack.c.h.b16 %v2830
    %v3039 = vunpack.c.l.b16 %v2831
    %v3040 = vunpack.c.h.b16 %v2831
    %v3041 = vunpack.c.l.b16 %v2832
    %v3042 = vunpack.c.h.b16 %v2832
    %v3043 = vunpack.c.l.b16 %v2833
    %v3044 = vunpack.c.h.b16 %v2833
    %v3045 = vunpack.c.l.b16 %v2834
    %v3046 = vunpack.c.h.b16 %v2834
    %v3047 = vunpack.c.l.b16 %v2835
    %v3048 = vunpack.c.h.b16 %v2835
    %v3049 = vunpack.c.l.b16 %v2836
    %v3050 = vunpack.c.h.b16 %v2836
    %v3051 = vpack.c.b16 %v2927, %v2923
    %v3052 = vpack.c.b16 %v2928, %v2924
    %v3053 = vpack.c.b16 %v2929, %v2925
    %v3054 = vpack.c.b16 %v2930, %v2926
    %v3055 = vpack.c.b16 %v2935, %v2931
    %v3056 = vpack.c.b16 %v2936, %v2932
    %v3057 = vpack.c.b16 %v2937, %v2933
    %v3058 = vpack.c.b16 %v2938, %v2934
    %v3059 = vpack.c.b16 %v2943, %v2939
    %v3060 = vpack.c.b16 %v2944, %v2940
    %v3061 = vpack.c.b16 %v2945, %v2941
    %v3062 = vpack.c.b16 %v2946, %v2942
    %v3063 = vpack.c.b16 %v2951, %v2947
    %v3064 = vpack.c.b16 %v2952, %v2948
    %v3065 = vpack.c.b16 %v2953, %v2949
    %v3066 = vpack.c.b16 %v2954, %v2950
    %v3067 = vpack.c.b16 %v2959, %v2955
    %v3068 = vpack.c.b16 %v2960, %v2956
    %v3069 = vpack.c.b16 %v2961, %v2957
    %v3070 = vpack.c.b16 %v2962, %v2958
    %v3071 = vpack.c.b16 %v2967, %v2963
    %v3072 = vpack.c.b16 %v2968, %v2964
    %v3073 = vpack.c.b16 %v2969, %v2965
    %v3074 = vpack.c.b16 %v2970, %v2966
    %v3075 = vpack.c.b16 %v2975, %v2971
    %v3076 = vpack.c.b16 %v2976, %v2972
    %v3077 = vpack.c.b16 %v2977, %v2973
    %v3078 = vpack.c.b16 %v2978, %v2974
    %v3079 = vpack.c.b16 %v2983, %v2979
    %v3080 = vpack.c.b16 %v2984, %v2980
    %v3081 = vpack.c.b16 %v2985, %v2981
    %v3082 = vpack.c.b16 %v2986, %v2982
    %v3083 = vpack.c.b16 %v2991, %v2987
    %v3084 = vpack.c.b16 %v2992, %v2988
    %v3085 = vpack.c.b16 %v2993, %v2989
    %v3086 = vpack.c.b16 %v2994, %v2990
    %v3087 = vpack.c.b16 %v2999, %v2995
    %v3088 = vpack.c.b16 %v3000, %v2996
    %v3089 = vpack.c.b16 %v3001, %v2997
    %v3090 = vpack.c.b16 %v3002, %v2998
    %v3091 = vpack.c.b16 %v3007, %v3003
    %v3092 = vpack.c.b16 %v3008, %v3004
    %v3093 = vpack.c.b16 %v3009, %v3005
    %v3094 = vpack.c.b16 %v3010, %v3006
    %v3095 = vpack.c.b16 %v3015, %v3011
    %v3096 = vpack.c.b16 %v3016, %v3012
    %v3097 = vpack.c.b16 %v3017, %v3013
    %v3098 = vpack.c.b16 %v3018, %v3014
    %v3099 = vpack.c.b16 %v3023, %v3019
    %v3100 = vpack.c.b16 %v3024, %v3020
    %v3101 = vpack.c.b16 %v3025, %v3021
    %v3102 = vpack.c.b16 %v3026, %v3022
    %v3103 = vpack.c.b16 %v3031, %v3027
    %v3104 = vpack.c.b16 %v3032, %v3028
    %v3105 = vpack.c.b16 %v3033, %v3029
    %v3106 = vpack.c.b16 %v3034, %v3030
    %v3107 = vpack.c.b16 %v3039, %v3035
    %v3108 = vpack.c.b16 %v3040, %v3036
    %v3109 = vpack.c.b16 %v3041, %v3037
    %v3110 = vpack.c.b16 %v3042, %v3038
    %v3111 = vpack.c.b16 %v3047, %v3043
    %v3112 = vpack.c.b16 %v3048, %v3044
    %v3113 = vpack.c.b16 %v3049, %v3045
    %v3114 = vpack.c.b16 %v3050, %v3046
    %3179 = vmatprep.subr.bf16.mxu0 %v3080
    %3180 = vmatpush1.bf16.msra.mxu0 %v3079
    %3181 = vmatprep.subr.bf16.mxu0 %v3076
    %3182 = vmatpush1.bf16.msra.mxu0 %v3075
    %3183 = vmatprep.subr.bf16.mxu0 %v3072
    %3184 = vmatpush1.bf16.msra.mxu0 %v3071
    %3185 = vmatprep.subr.bf16.mxu0 %v3068
    %3186 = vmatpush1.bf16.msra.mxu0 %v3067
    %3187 = vmatprep.subr.bf16.mxu0 %v3064
    %3188 = vmatpush1.bf16.msra.mxu0 %v3063
    %3189 = vmatprep.subr.bf16.mxu0 %v3060
    %3190 = vmatpush1.bf16.msra.mxu0 %v3059
    %3191 = vmatprep.subr.bf16.mxu0 %v3056
    %3192 = vmatpush1.bf16.msra.mxu0 %v3055
    %3193 = vmatprep.subr.bf16.mxu0 %v3052
    %3194 = vmatpush1.bf16.msra.mxu0 %v3051
    %3195 = vmatprep.subr.bf16.mxu0 %v3112
    %3196 = vmatpush2.bf16.msra.mxu0 %v3111
    %3197 = vmatprep.subr.bf16.mxu0 %v3108
    %3198 = vmatpush2.bf16.msra.mxu0 %v3107
    %3199 = vmatprep.subr.bf16.mxu0 %v3104
    %3200 = vmatpush2.bf16.msra.mxu0 %v3103
    %3201 = vmatprep.subr.bf16.mxu0 %v3100
    %3202 = vmatpush2.bf16.msra.mxu0 %v3099
    %3203 = vmatprep.subr.bf16.mxu0 %v3096
    %3204 = vmatpush2.bf16.msra.mxu0 %v3095
    %3205 = vmatprep.subr.bf16.mxu0 %v3092
    %3206 = vmatpush2.bf16.msra.mxu0 %v3091
    %3207 = vmatprep.subr.bf16.mxu0 %v3088
    %3208 = vmatpush2.bf16.msra.mxu0 %v3087
    %3209 = vmatprep.subr.bf16.mxu0 %v3084
    %3210 = vmatpush2.bf16.msra.mxu0 %v3083
    %3211 = vmatprep.mubr.bf16.mxu0 %v2710
    %3212 = vmatmul.mubr.bf16.gmra.mxu0 %v2709
    %v3213 = vpop.f32.mrf.mxu0
    %v3214 = vadd.f32 %v2842, %v3213
    %v3215 = vpop.f32.mrf.mxu0
    %v3216 = vadd.f32 %v2846, %v3215
    %v3217 = vpop.f32.mrf.mxu0
    %v3218 = vadd.f32 %v2842, %v3217
    %v3219 = vpop.f32.mrf.mxu0
    %v3220 = vadd.f32 %v2846, %v3219
    %3221 = vmatprep.mubr.bf16.mxu0 %v2712
    %3222 = vmatmul.mubr.bf16.gmra.mxu0 %v2711
    %v3223 = vpop.f32.mrf.mxu0
    %v3224 = vadd.f32 %v2842, %v3223
    %v3225 = vpop.f32.mrf.mxu0
    %v3226 = vadd.f32 %v2846, %v3225
    %v3227 = vpop.f32.mrf.mxu0
    %v3228 = vadd.f32 %v2842, %v3227
    %v3229 = vpop.f32.mrf.mxu0
    %v3230 = vadd.f32 %v2846, %v3229
    %3231 = vmatprep.mubr.bf16.mxu0 %v2714
    %3232 = vmatmul.mubr.bf16.gmra.mxu0 %v2713
    %v3233 = vpop.f32.mrf.mxu0
    %v3234 = vadd.f32 %v2842, %v3233
    %v3235 = vpop.f32.mrf.mxu0
    %v3236 = vadd.f32 %v2846, %v3235
    %v3237 = vpop.f32.mrf.mxu0
    %v3238 = vadd.f32 %v2842, %v3237
    %v3239 = vpop.f32.mrf.mxu0
    %v3240 = vadd.f32 %v2846, %v3239
    %3241 = vmatprep.mubr.bf16.mxu0 %v2716
    %3242 = vmatmul.mubr.bf16.gmra.mxu0 %v2715
    %v3243 = vpop.f32.mrf.mxu0
    %v3244 = vadd.f32 %v2842, %v3243
    %v3245 = vpop.f32.mrf.mxu0
    %v3246 = vadd.f32 %v2846, %v3245
    %v3247 = vpop.f32.mrf.mxu0
    %v3248 = vadd.f32 %v2842, %v3247
    %v3249 = vpop.f32.mrf.mxu0
    %v3250 = vadd.f32 %v2846, %v3249
    %3251 = vmatprep.mubr.bf16.mxu0 %v2718
    %3252 = vmatmul.mubr.bf16.gmra.mxu0 %v2717
    %v3253 = vpop.f32.mrf.mxu0
    %v3254 = vadd.f32 %v2842, %v3253
    %v3255 = vpop.f32.mrf.mxu0
    %v3256 = vadd.f32 %v2846, %v3255
    %v3257 = vpop.f32.mrf.mxu0
    %v3258 = vadd.f32 %v2842, %v3257
    %v3259 = vpop.f32.mrf.mxu0
    %v3260 = vadd.f32 %v2846, %v3259
    %3261 = vmatprep.mubr.bf16.mxu0 %v2720
    %3262 = vmatmul.mubr.bf16.gmra.mxu0 %v2719
    %v3263 = vpop.f32.mrf.mxu0
    %v3264 = vadd.f32 %v2842, %v3263
    %v3265 = vpop.f32.mrf.mxu0
    %v3266 = vadd.f32 %v2846, %v3265
    %v3267 = vpop.f32.mrf.mxu0
    %v3268 = vadd.f32 %v2842, %v3267
    %v3269 = vpop.f32.mrf.mxu0
    %v3270 = vadd.f32 %v2846, %v3269
    %3271 = vmatprep.mubr.bf16.mxu0 %v2722
    %3272 = vmatmul.mubr.bf16.gmra.mxu0 %v2721
    %v3273 = vpop.f32.mrf.mxu0
    %v3274 = vadd.f32 %v2842, %v3273
    %v3275 = vpop.f32.mrf.mxu0
    %v3276 = vadd.f32 %v2846, %v3275
    %v3277 = vpop.f32.mrf.mxu0
    %v3278 = vadd.f32 %v2842, %v3277
    %v3279 = vpop.f32.mrf.mxu0
    %v3280 = vadd.f32 %v2846, %v3279
    %3281 = vmatprep.mubr.bf16.mxu0 %v2724
    %3282 = vmatmul.mubr.bf16.gmra.mxu0 %v2723
    %v3283 = vpop.f32.mrf.mxu0
    %v3284 = vadd.f32 %v2842, %v3283
    %v3285 = vpop.f32.mrf.mxu0
    %v3286 = vadd.f32 %v2846, %v3285
    %v3287 = vpop.f32.mrf.mxu0
    %v3288 = vadd.f32 %v2842, %v3287
    %v3289 = vpop.f32.mrf.mxu0
    %v3290 = vadd.f32 %v2846, %v3289
    %3291 = vmatprep.mubr.bf16.mxu0 %v2726
    %3292 = vmatmul.mubr.bf16.gmra.mxu0 %v2725
    %v3293 = vpop.f32.mrf.mxu0
    %v3294 = vadd.f32 %v2842, %v3293
    %v3295 = vpop.f32.mrf.mxu0
    %v3296 = vadd.f32 %v2846, %v3295
    %v3297 = vpop.f32.mrf.mxu0
    %v3298 = vadd.f32 %v2842, %v3297
    %v3299 = vpop.f32.mrf.mxu0
    %v3300 = vadd.f32 %v2846, %v3299
    %3301 = vmatprep.mubr.bf16.mxu0 %v2728
    %3302 = vmatmul.mubr.bf16.gmra.mxu0 %v2727
    %v3303 = vpop.f32.mrf.mxu0
    %v3304 = vadd.f32 %v2842, %v3303
    %v3305 = vpop.f32.mrf.mxu0
    %v3306 = vadd.f32 %v2846, %v3305
    %v3307 = vpop.f32.mrf.mxu0
    %v3308 = vadd.f32 %v2842, %v3307
    %v3309 = vpop.f32.mrf.mxu0
    %v3310 = vadd.f32 %v2846, %v3309
    %3311 = vmatprep.mubr.bf16.mxu0 %v2730
    %3312 = vmatmul.mubr.bf16.gmra.mxu0 %v2729
    %v3313 = vpop.f32.mrf.mxu0
    %v3314 = vadd.f32 %v2842, %v3313
    %v3315 = vpop.f32.mrf.mxu0
    %v3316 = vadd.f32 %v2846, %v3315
    %v3317 = vpop.f32.mrf.mxu0
    %v3318 = vadd.f32 %v2842, %v3317
    %v3319 = vpop.f32.mrf.mxu0
    %v3320 = vadd.f32 %v2846, %v3319
    %3321 = vmatprep.mubr.bf16.mxu0 %v2732
    %3322 = vmatmul.mubr.bf16.gmra.mxu0 %v2731
    %v3323 = vpop.f32.mrf.mxu0
    %v3324 = vadd.f32 %v2842, %v3323
    %v3325 = vpop.f32.mrf.mxu0
    %v3326 = vadd.f32 %v2846, %v3325
    %v3327 = vpop.f32.mrf.mxu0
    %v3328 = vadd.f32 %v2842, %v3327
    %v3329 = vpop.f32.mrf.mxu0
    %v3330 = vadd.f32 %v2846, %v3329
    %3331 = vmatprep.mubr.bf16.mxu0 %v2734
    %3332 = vmatmul.mubr.bf16.gmra.mxu0 %v2733
    %v3333 = vpop.f32.mrf.mxu0
    %v3334 = vadd.f32 %v2842, %v3333
    %v3335 = vpop.f32.mrf.mxu0
    %v3336 = vadd.f32 %v2846, %v3335
    %v3337 = vpop.f32.mrf.mxu0
    %v3338 = vadd.f32 %v2842, %v3337
    %v3339 = vpop.f32.mrf.mxu0
    %v3340 = vadd.f32 %v2846, %v3339
    %3341 = vmatprep.mubr.bf16.mxu0 %v2736
    %3342 = vmatmul.mubr.bf16.gmra.mxu0 %v2735
    %v3343 = vpop.f32.mrf.mxu0
    %v3344 = vadd.f32 %v2842, %v3343
    %v3345 = vpop.f32.mrf.mxu0
    %v3346 = vadd.f32 %v2846, %v3345
    %v3347 = vpop.f32.mrf.mxu0
    %v3348 = vadd.f32 %v2842, %v3347
    %v3349 = vpop.f32.mrf.mxu0
    %v3350 = vadd.f32 %v2846, %v3349
    %3351 = vmatprep.mubr.bf16.mxu0 %v2738
    %3352 = vmatmul.mubr.bf16.gmra.mxu0 %v2737
    %v3353 = vpop.f32.mrf.mxu0
    %v3354 = vadd.f32 %v2842, %v3353
    %v3355 = vpop.f32.mrf.mxu0
    %v3356 = vadd.f32 %v2846, %v3355
    %v3357 = vpop.f32.mrf.mxu0
    %v3358 = vadd.f32 %v2842, %v3357
    %v3359 = vpop.f32.mrf.mxu0
    %v3360 = vadd.f32 %v2846, %v3359
    %3361 = vmatprep.mubr.bf16.mxu0 %v2740
    %3362 = vmatmul.mubr.bf16.gmra.mxu0 %v2739
    %v3363 = vpop.f32.mrf.mxu0
    %v3364 = vadd.f32 %v2842, %v3363
    %v3365 = vpop.f32.mrf.mxu0
    %v3366 = vadd.f32 %v2846, %v3365
    %v3367 = vpop.f32.mrf.mxu0
    %v3368 = vadd.f32 %v2842, %v3367
    %v3369 = vpop.f32.mrf.mxu0
    %v3370 = vadd.f32 %v2846, %v3369
    %3371 = vmatprep.mubr.bf16.mxu0 %v2742
    %3372 = vmatmul.mubr.bf16.gmra.mxu0 %v2741
    %v3373 = vpop.f32.mrf.mxu0
    %v3374 = vadd.f32 %v2842, %v3373
    %v3375 = vpop.f32.mrf.mxu0
    %v3376 = vadd.f32 %v2846, %v3375
    %v3377 = vpop.f32.mrf.mxu0
    %v3378 = vadd.f32 %v2842, %v3377
    %v3379 = vpop.f32.mrf.mxu0
    %v3380 = vadd.f32 %v2846, %v3379
    %3381 = vmatprep.mubr.bf16.mxu0 %v2744
    %3382 = vmatmul.mubr.bf16.gmra.mxu0 %v2743
    %v3383 = vpop.f32.mrf.mxu0
    %v3384 = vadd.f32 %v2842, %v3383
    %v3385 = vpop.f32.mrf.mxu0
    %v3386 = vadd.f32 %v2846, %v3385
    %v3387 = vpop.f32.mrf.mxu0
    %v3388 = vadd.f32 %v2842, %v3387
    %v3389 = vpop.f32.mrf.mxu0
    %v3390 = vadd.f32 %v2846, %v3389
    %3391 = vmatprep.mubr.bf16.mxu0 %v2746
    %3392 = vmatmul.mubr.bf16.gmra.mxu0 %v2745
    %v3393 = vpop.f32.mrf.mxu0
    %v3394 = vadd.f32 %v2842, %v3393
    %v3395 = vpop.f32.mrf.mxu0
    %v3396 = vadd.f32 %v2846, %v3395
    %v3397 = vpop.f32.mrf.mxu0
    %v3398 = vadd.f32 %v2842, %v3397
    %v3399 = vpop.f32.mrf.mxu0
    %v3400 = vadd.f32 %v2846, %v3399
    %3401 = vmatprep.mubr.bf16.mxu0 %v2748
    %3402 = vmatmul.mubr.bf16.gmra.mxu0 %v2747
    %v3403 = vpop.f32.mrf.mxu0
    %v3404 = vadd.f32 %v2842, %v3403
    %v3405 = vpop.f32.mrf.mxu0
    %v3406 = vadd.f32 %v2846, %v3405
    %v3407 = vpop.f32.mrf.mxu0
    %v3408 = vadd.f32 %v2842, %v3407
    %v3409 = vpop.f32.mrf.mxu0
    %v3410 = vadd.f32 %v2846, %v3409
    %3411 = vmatprep.mubr.bf16.mxu0 %v2750
    %3412 = vmatmul.mubr.bf16.gmra.mxu0 %v2749
    %v3413 = vpop.f32.mrf.mxu0
    %v3414 = vadd.f32 %v2842, %v3413
    %v3415 = vpop.f32.mrf.mxu0
    %v3416 = vadd.f32 %v2846, %v3415
    %v3417 = vpop.f32.mrf.mxu0
    %v3418 = vadd.f32 %v2842, %v3417
    %v3419 = vpop.f32.mrf.mxu0
    %v3420 = vadd.f32 %v2846, %v3419
    %3421 = vmatprep.mubr.bf16.mxu0 %v2752
    %3422 = vmatmul.mubr.bf16.gmra.mxu0 %v2751
    %v3423 = vpop.f32.mrf.mxu0
    %v3424 = vadd.f32 %v2842, %v3423
    %v3425 = vpop.f32.mrf.mxu0
    %v3426 = vadd.f32 %v2846, %v3425
    %v3427 = vpop.f32.mrf.mxu0
    %v3428 = vadd.f32 %v2842, %v3427
    %v3429 = vpop.f32.mrf.mxu0
    %v3430 = vadd.f32 %v2846, %v3429
    %3431 = vmatprep.mubr.bf16.mxu0 %v2754
    %3432 = vmatmul.mubr.bf16.gmra.mxu0 %v2753
    %v3433 = vpop.f32.mrf.mxu0
    %v3434 = vadd.f32 %v2842, %v3433
    %v3435 = vpop.f32.mrf.mxu0
    %v3436 = vadd.f32 %v2846, %v3435
    %v3437 = vpop.f32.mrf.mxu0
    %v3438 = vadd.f32 %v2842, %v3437
    %v3439 = vpop.f32.mrf.mxu0
    %v3440 = vadd.f32 %v2846, %v3439
    %3441 = vmatprep.mubr.bf16.mxu0 %v2756
    %3442 = vmatmul.mubr.bf16.gmra.mxu0 %v2755
    %v3443 = vpop.f32.mrf.mxu0
    %v3444 = vadd.f32 %v2842, %v3443
    %v3445 = vpop.f32.mrf.mxu0
    %v3446 = vadd.f32 %v2846, %v3445
    %v3447 = vpop.f32.mrf.mxu0
    %v3448 = vadd.f32 %v2842, %v3447
    %v3449 = vpop.f32.mrf.mxu0
    %v3450 = vadd.f32 %v2846, %v3449
    %3451 = vmatprep.mubr.bf16.mxu0 %v2758
    %3452 = vmatmul.mubr.bf16.gmra.mxu0 %v2757
    %v3453 = vpop.f32.mrf.mxu0
    %v3454 = vadd.f32 %v2842, %v3453
    %v3455 = vpop.f32.mrf.mxu0
    %v3456 = vadd.f32 %v2846, %v3455
    %v3457 = vpop.f32.mrf.mxu0
    %v3458 = vadd.f32 %v2842, %v3457
    %v3459 = vpop.f32.mrf.mxu0
    %v3460 = vadd.f32 %v2846, %v3459
    %3461 = vmatprep.mubr.bf16.mxu0 %v2760
    %3462 = vmatmul.mubr.bf16.gmra.mxu0 %v2759
    %v3463 = vpop.f32.mrf.mxu0
    %v3464 = vadd.f32 %v2842, %v3463
    %v3465 = vpop.f32.mrf.mxu0
    %v3466 = vadd.f32 %v2846, %v3465
    %v3467 = vpop.f32.mrf.mxu0
    %v3468 = vadd.f32 %v2842, %v3467
    %v3469 = vpop.f32.mrf.mxu0
    %v3470 = vadd.f32 %v2846, %v3469
    %3471 = vmatprep.mubr.bf16.mxu0 %v2762
    %3472 = vmatmul.mubr.bf16.gmra.mxu0 %v2761
    %v3473 = vpop.f32.mrf.mxu0
    %v3474 = vadd.f32 %v2842, %v3473
    %v3475 = vpop.f32.mrf.mxu0
    %v3476 = vadd.f32 %v2846, %v3475
    %v3477 = vpop.f32.mrf.mxu0
    %v3478 = vadd.f32 %v2842, %v3477
    %v3479 = vpop.f32.mrf.mxu0
    %v3480 = vadd.f32 %v2846, %v3479
    %3481 = vmatprep.mubr.bf16.mxu0 %v2764
    %3482 = vmatmul.mubr.bf16.gmra.mxu0 %v2763
    %v3483 = vpop.f32.mrf.mxu0
    %v3484 = vadd.f32 %v2842, %v3483
    %v3485 = vpop.f32.mrf.mxu0
    %v3486 = vadd.f32 %v2846, %v3485
    %v3487 = vpop.f32.mrf.mxu0
    %v3488 = vadd.f32 %v2842, %v3487
    %v3489 = vpop.f32.mrf.mxu0
    %v3490 = vadd.f32 %v2846, %v3489
    %3491 = vmatprep.mubr.bf16.mxu0 %v2766
    %3492 = vmatmul.mubr.bf16.gmra.mxu0 %v2765
    %v3493 = vpop.f32.mrf.mxu0
    %v3494 = vadd.f32 %v2842, %v3493
    %v3495 = vpop.f32.mrf.mxu0
    %v3496 = vadd.f32 %v2846, %v3495
    %v3497 = vpop.f32.mrf.mxu0
    %v3498 = vadd.f32 %v2842, %v3497
    %v3499 = vpop.f32.mrf.mxu0
    %v3500 = vadd.f32 %v2846, %v3499
    %3501 = vmatprep.mubr.bf16.mxu0 %v2768
    %3502 = vmatmul.mubr.bf16.gmra.mxu0 %v2767
    %v3503 = vpop.f32.mrf.mxu0
    %v3504 = vadd.f32 %v2842, %v3503
    %v3505 = vpop.f32.mrf.mxu0
    %v3506 = vadd.f32 %v2846, %v3505
    %v3507 = vpop.f32.mrf.mxu0
    %v3508 = vadd.f32 %v2842, %v3507
    %v3509 = vpop.f32.mrf.mxu0
    %v3510 = vadd.f32 %v2846, %v3509
    %3511 = vmatprep.mubr.bf16.mxu0 %v2770
    %3512 = vmatmul.mubr.bf16.gmra.mxu0 %v2769
    %v3513 = vpop.f32.mrf.mxu0
    %v3514 = vadd.f32 %v2842, %v3513
    %v3515 = vpop.f32.mrf.mxu0
    %v3516 = vadd.f32 %v2846, %v3515
    %v3517 = vpop.f32.mrf.mxu0
    %v3518 = vadd.f32 %v2842, %v3517
    %v3519 = vpop.f32.mrf.mxu0
    %v3520 = vadd.f32 %v2846, %v3519
    %3521 = vmatprep.mubr.bf16.mxu0 %v2772
    %3522 = vmatmul.mubr.bf16.gmra.mxu0 %v2771
    %v3523 = vpop.f32.mrf.mxu0
    %v3524 = vadd.f32 %v2842, %v3523
    %v3525 = vpop.f32.mrf.mxu0
    %v3526 = vadd.f32 %v2846, %v3525
    %v3527 = vpop.f32.mrf.mxu0
    %v3528 = vadd.f32 %v2842, %v3527
    %v3529 = vpop.f32.mrf.mxu0
    %v3530 = vadd.f32 %v2846, %v3529
    %3531 = vdwg.mxu0
    %3532 = vmatprep.subr.bf16.mxu0 %v3082
    %3533 = vmatpush1.bf16.msra.mxu0 %v3081
    %3534 = vmatprep.subr.bf16.mxu0 %v3078
    %3535 = vmatpush1.bf16.msra.mxu0 %v3077
    %3536 = vmatprep.subr.bf16.mxu0 %v3074
    %3537 = vmatpush1.bf16.msra.mxu0 %v3073
    %3538 = vmatprep.subr.bf16.mxu0 %v3070
    %3539 = vmatpush1.bf16.msra.mxu0 %v3069
    %3540 = vmatprep.subr.bf16.mxu0 %v3066
    %3541 = vmatpush1.bf16.msra.mxu0 %v3065
    %3542 = vmatprep.subr.bf16.mxu0 %v3062
    %3543 = vmatpush1.bf16.msra.mxu0 %v3061
    %3544 = vmatprep.subr.bf16.mxu0 %v3058
    %3545 = vmatpush1.bf16.msra.mxu0 %v3057
    %3546 = vmatprep.subr.bf16.mxu0 %v3054
    %3547 = vmatpush1.bf16.msra.mxu0 %v3053
    %3548 = vmatprep.subr.bf16.mxu0 %v3114
    %3549 = vmatpush2.bf16.msra.mxu0 %v3113
    %3550 = vmatprep.subr.bf16.mxu0 %v3110
    %3551 = vmatpush2.bf16.msra.mxu0 %v3109
    %3552 = vmatprep.subr.bf16.mxu0 %v3106
    %3553 = vmatpush2.bf16.msra.mxu0 %v3105
    %3554 = vmatprep.subr.bf16.mxu0 %v3102
    %3555 = vmatpush2.bf16.msra.mxu0 %v3101
    %3556 = vmatprep.subr.bf16.mxu0 %v3098
    %3557 = vmatpush2.bf16.msra.mxu0 %v3097
    %3558 = vmatprep.subr.bf16.mxu0 %v3094
    %3559 = vmatpush2.bf16.msra.mxu0 %v3093
    %3560 = vmatprep.subr.bf16.mxu0 %v3090
    %3561 = vmatpush2.bf16.msra.mxu0 %v3089
    %3562 = vmatprep.subr.bf16.mxu0 %v3086
    %3563 = vmatpush2.bf16.msra.mxu0 %v3085
    %3564 = vmatprep.mubr.bf16.mxu0 %v2710
    %3565 = vmatmul.mubr.bf16.gmra.mxu0 %v2709
    %v3566 = vpop.f32.mrf.mxu0
    %v3567 = vadd.f32 %v2850, %v3566
    %v3568 = vpop.f32.mrf.mxu0
    %v3569 = vadd.f32 %v2854, %v3568
    %v3570 = vpop.f32.mrf.mxu0
    %v3571 = vadd.f32 %v2850, %v3570
    %v3572 = vpop.f32.mrf.mxu0
    %v3573 = vadd.f32 %v2854, %v3572
    %3574 = vmatprep.mubr.bf16.mxu0 %v2712
    %3575 = vmatmul.mubr.bf16.gmra.mxu0 %v2711
    %v3576 = vpop.f32.mrf.mxu0
    %v3577 = vadd.f32 %v2850, %v3576
    %v3578 = vpop.f32.mrf.mxu0
    %v3579 = vadd.f32 %v2854, %v3578
    %v3580 = vpop.f32.mrf.mxu0
    %v3581 = vadd.f32 %v2850, %v3580
    %v3582 = vpop.f32.mrf.mxu0
    %v3583 = vadd.f32 %v2854, %v3582
    %3584 = vmatprep.mubr.bf16.mxu0 %v2714
    %3585 = vmatmul.mubr.bf16.gmra.mxu0 %v2713
    %v3586 = vpop.f32.mrf.mxu0
    %v3587 = vadd.f32 %v2850, %v3586
    %v3588 = vpop.f32.mrf.mxu0
    %v3589 = vadd.f32 %v2854, %v3588
    %v3590 = vpop.f32.mrf.mxu0
    %v3591 = vadd.f32 %v2850, %v3590
    %v3592 = vpop.f32.mrf.mxu0
    %v3593 = vadd.f32 %v2854, %v3592
    %3594 = vmatprep.mubr.bf16.mxu0 %v2716
    %3595 = vmatmul.mubr.bf16.gmra.mxu0 %v2715
    %v3596 = vpop.f32.mrf.mxu0
    %v3597 = vadd.f32 %v2850, %v3596
    %v3598 = vpop.f32.mrf.mxu0
    %v3599 = vadd.f32 %v2854, %v3598
    %v3600 = vpop.f32.mrf.mxu0
    %v3601 = vadd.f32 %v2850, %v3600
    %v3602 = vpop.f32.mrf.mxu0
    %v3603 = vadd.f32 %v2854, %v3602
    %3604 = vmatprep.mubr.bf16.mxu0 %v2718
    %3605 = vmatmul.mubr.bf16.gmra.mxu0 %v2717
    %v3606 = vpop.f32.mrf.mxu0
    %v3607 = vadd.f32 %v2850, %v3606
    %v3608 = vpop.f32.mrf.mxu0
    %v3609 = vadd.f32 %v2854, %v3608
    %v3610 = vpop.f32.mrf.mxu0
    %v3611 = vadd.f32 %v2850, %v3610
    %v3612 = vpop.f32.mrf.mxu0
    %v3613 = vadd.f32 %v2854, %v3612
    %3614 = vmatprep.mubr.bf16.mxu0 %v2720
    %3615 = vmatmul.mubr.bf16.gmra.mxu0 %v2719
    %v3616 = vpop.f32.mrf.mxu0
    %v3617 = vadd.f32 %v2850, %v3616
    %v3618 = vpop.f32.mrf.mxu0
    %v3619 = vadd.f32 %v2854, %v3618
    %v3620 = vpop.f32.mrf.mxu0
    %v3621 = vadd.f32 %v2850, %v3620
    %v3622 = vpop.f32.mrf.mxu0
    %v3623 = vadd.f32 %v2854, %v3622
    %3624 = vmatprep.mubr.bf16.mxu0 %v2722
    %3625 = vmatmul.mubr.bf16.gmra.mxu0 %v2721
    %v3626 = vpop.f32.mrf.mxu0
    %v3627 = vadd.f32 %v2850, %v3626
    %v3628 = vpop.f32.mrf.mxu0
    %v3629 = vadd.f32 %v2854, %v3628
    %v3630 = vpop.f32.mrf.mxu0
    %v3631 = vadd.f32 %v2850, %v3630
    %v3632 = vpop.f32.mrf.mxu0
    %v3633 = vadd.f32 %v2854, %v3632
    %3634 = vmatprep.mubr.bf16.mxu0 %v2724
    %3635 = vmatmul.mubr.bf16.gmra.mxu0 %v2723
    %v3636 = vpop.f32.mrf.mxu0
    %v3637 = vadd.f32 %v2850, %v3636
    %v3638 = vpop.f32.mrf.mxu0
    %v3639 = vadd.f32 %v2854, %v3638
    %v3640 = vpop.f32.mrf.mxu0
    %v3641 = vadd.f32 %v2850, %v3640
    %v3642 = vpop.f32.mrf.mxu0
    %v3643 = vadd.f32 %v2854, %v3642
    %3644 = vmatprep.mubr.bf16.mxu0 %v2726
    %3645 = vmatmul.mubr.bf16.gmra.mxu0 %v2725
    %v3646 = vpop.f32.mrf.mxu0
    %v3647 = vadd.f32 %v2850, %v3646
    %v3648 = vpop.f32.mrf.mxu0
    %v3649 = vadd.f32 %v2854, %v3648
    %v3650 = vpop.f32.mrf.mxu0
    %v3651 = vadd.f32 %v2850, %v3650
    %v3652 = vpop.f32.mrf.mxu0
    %v3653 = vadd.f32 %v2854, %v3652
    %3654 = vmatprep.mubr.bf16.mxu0 %v2728
    %3655 = vmatmul.mubr.bf16.gmra.mxu0 %v2727
    %v3656 = vpop.f32.mrf.mxu0
    %v3657 = vadd.f32 %v2850, %v3656
    %v3658 = vpop.f32.mrf.mxu0
    %v3659 = vadd.f32 %v2854, %v3658
    %v3660 = vpop.f32.mrf.mxu0
    %v3661 = vadd.f32 %v2850, %v3660
    %v3662 = vpop.f32.mrf.mxu0
    %v3663 = vadd.f32 %v2854, %v3662
    %3664 = vmatprep.mubr.bf16.mxu0 %v2730
    %3665 = vmatmul.mubr.bf16.gmra.mxu0 %v2729
    %v3666 = vpop.f32.mrf.mxu0
    %v3667 = vadd.f32 %v2850, %v3666
    %v3668 = vpop.f32.mrf.mxu0
    %v3669 = vadd.f32 %v2854, %v3668
    %v3670 = vpop.f32.mrf.mxu0
    %v3671 = vadd.f32 %v2850, %v3670
    %v3672 = vpop.f32.mrf.mxu0
    %v3673 = vadd.f32 %v2854, %v3672
    %3674 = vmatprep.mubr.bf16.mxu0 %v2732
    %3675 = vmatmul.mubr.bf16.gmra.mxu0 %v2731
    %v3676 = vpop.f32.mrf.mxu0
    %v3677 = vadd.f32 %v2850, %v3676
    %v3678 = vpop.f32.mrf.mxu0
    %v3679 = vadd.f32 %v2854, %v3678
    %v3680 = vpop.f32.mrf.mxu0
    %v3681 = vadd.f32 %v2850, %v3680
    %v3682 = vpop.f32.mrf.mxu0
    %v3683 = vadd.f32 %v2854, %v3682
    %3684 = vmatprep.mubr.bf16.mxu0 %v2734
    %3685 = vmatmul.mubr.bf16.gmra.mxu0 %v2733
    %v3686 = vpop.f32.mrf.mxu0
    %v3687 = vadd.f32 %v2850, %v3686
    %v3688 = vpop.f32.mrf.mxu0
    %v3689 = vadd.f32 %v2854, %v3688
    %v3690 = vpop.f32.mrf.mxu0
    %v3691 = vadd.f32 %v2850, %v3690
    %v3692 = vpop.f32.mrf.mxu0
    %v3693 = vadd.f32 %v2854, %v3692
    %3694 = vmatprep.mubr.bf16.mxu0 %v2736
    %3695 = vmatmul.mubr.bf16.gmra.mxu0 %v2735
    %v3696 = vpop.f32.mrf.mxu0
    %v3697 = vadd.f32 %v2850, %v3696
    %v3698 = vpop.f32.mrf.mxu0
    %v3699 = vadd.f32 %v2854, %v3698
    %v3700 = vpop.f32.mrf.mxu0
    %v3701 = vadd.f32 %v2850, %v3700
    %v3702 = vpop.f32.mrf.mxu0
    %v3703 = vadd.f32 %v2854, %v3702
    %3704 = vmatprep.mubr.bf16.mxu0 %v2738
    %3705 = vmatmul.mubr.bf16.gmra.mxu0 %v2737
    %v3706 = vpop.f32.mrf.mxu0
    %v3707 = vadd.f32 %v2850, %v3706
    %v3708 = vpop.f32.mrf.mxu0
    %v3709 = vadd.f32 %v2854, %v3708
    %v3710 = vpop.f32.mrf.mxu0
    %v3711 = vadd.f32 %v2850, %v3710
    %v3712 = vpop.f32.mrf.mxu0
    %v3713 = vadd.f32 %v2854, %v3712
    %3714 = vmatprep.mubr.bf16.mxu0 %v2740
    %3715 = vmatmul.mubr.bf16.gmra.mxu0 %v2739
    %v3716 = vpop.f32.mrf.mxu0
    %v3717 = vadd.f32 %v2850, %v3716
    %v3718 = vpop.f32.mrf.mxu0
    %v3719 = vadd.f32 %v2854, %v3718
    %v3720 = vpop.f32.mrf.mxu0
    %v3721 = vadd.f32 %v2850, %v3720
    %v3722 = vpop.f32.mrf.mxu0
    %v3723 = vadd.f32 %v2854, %v3722
    %3724 = vmatprep.mubr.bf16.mxu0 %v2742
    %3725 = vmatmul.mubr.bf16.gmra.mxu0 %v2741
    %v3726 = vpop.f32.mrf.mxu0
    %v3727 = vadd.f32 %v2850, %v3726
    %v3728 = vpop.f32.mrf.mxu0
    %v3729 = vadd.f32 %v2854, %v3728
    %v3730 = vpop.f32.mrf.mxu0
    %v3731 = vadd.f32 %v2850, %v3730
    %v3732 = vpop.f32.mrf.mxu0
    %v3733 = vadd.f32 %v2854, %v3732
    %3734 = vmatprep.mubr.bf16.mxu0 %v2744
    %3735 = vmatmul.mubr.bf16.gmra.mxu0 %v2743
    %v3736 = vpop.f32.mrf.mxu0
    %v3737 = vadd.f32 %v2850, %v3736
    %v3738 = vpop.f32.mrf.mxu0
    %v3739 = vadd.f32 %v2854, %v3738
    %v3740 = vpop.f32.mrf.mxu0
    %v3741 = vadd.f32 %v2850, %v3740
    %v3742 = vpop.f32.mrf.mxu0
    %v3743 = vadd.f32 %v2854, %v3742
    %3744 = vmatprep.mubr.bf16.mxu0 %v2746
    %3745 = vmatmul.mubr.bf16.gmra.mxu0 %v2745
    %v3746 = vpop.f32.mrf.mxu0
    %v3747 = vadd.f32 %v2850, %v3746
    %v3748 = vpop.f32.mrf.mxu0
    %v3749 = vadd.f32 %v2854, %v3748
    %v3750 = vpop.f32.mrf.mxu0
    %v3751 = vadd.f32 %v2850, %v3750
    %v3752 = vpop.f32.mrf.mxu0
    %v3753 = vadd.f32 %v2854, %v3752
    %3754 = vmatprep.mubr.bf16.mxu0 %v2748
    %3755 = vmatmul.mubr.bf16.gmra.mxu0 %v2747
    %v3756 = vpop.f32.mrf.mxu0
    %v3757 = vadd.f32 %v2850, %v3756
    %v3758 = vpop.f32.mrf.mxu0
    %v3759 = vadd.f32 %v2854, %v3758
    %v3760 = vpop.f32.mrf.mxu0
    %v3761 = vadd.f32 %v2850, %v3760
    %v3762 = vpop.f32.mrf.mxu0
    %v3763 = vadd.f32 %v2854, %v3762
    %3764 = vmatprep.mubr.bf16.mxu0 %v2750
    %3765 = vmatmul.mubr.bf16.gmra.mxu0 %v2749
    %v3766 = vpop.f32.mrf.mxu0
    %v3767 = vadd.f32 %v2850, %v3766
    %v3768 = vpop.f32.mrf.mxu0
    %v3769 = vadd.f32 %v2854, %v3768
    %v3770 = vpop.f32.mrf.mxu0
    %v3771 = vadd.f32 %v2850, %v3770
    %v3772 = vpop.f32.mrf.mxu0
    %v3773 = vadd.f32 %v2854, %v3772
    %3774 = vmatprep.mubr.bf16.mxu0 %v2752
    %3775 = vmatmul.mubr.bf16.gmra.mxu0 %v2751
    %v3776 = vpop.f32.mrf.mxu0
    %v3777 = vadd.f32 %v2850, %v3776
    %v3778 = vpop.f32.mrf.mxu0
    %v3779 = vadd.f32 %v2854, %v3778
    %v3780 = vpop.f32.mrf.mxu0
    %v3781 = vadd.f32 %v2850, %v3780
    %v3782 = vpop.f32.mrf.mxu0
    %v3783 = vadd.f32 %v2854, %v3782
    %3784 = vmatprep.mubr.bf16.mxu0 %v2754
    %3785 = vmatmul.mubr.bf16.gmra.mxu0 %v2753
    %v3786 = vpop.f32.mrf.mxu0
    %v3787 = vadd.f32 %v2850, %v3786
    %v3788 = vpop.f32.mrf.mxu0
    %v3789 = vadd.f32 %v2854, %v3788
    %v3790 = vpop.f32.mrf.mxu0
    %v3791 = vadd.f32 %v2850, %v3790
    %v3792 = vpop.f32.mrf.mxu0
    %v3793 = vadd.f32 %v2854, %v3792
    %3794 = vmatprep.mubr.bf16.mxu0 %v2756
    %3795 = vmatmul.mubr.bf16.gmra.mxu0 %v2755
    %v3796 = vpop.f32.mrf.mxu0
    %v3797 = vadd.f32 %v2850, %v3796
    %v3798 = vpop.f32.mrf.mxu0
    %v3799 = vadd.f32 %v2854, %v3798
    %v3800 = vpop.f32.mrf.mxu0
    %v3801 = vadd.f32 %v2850, %v3800
    %v3802 = vpop.f32.mrf.mxu0
    %v3803 = vadd.f32 %v2854, %v3802
    %3804 = vmatprep.mubr.bf16.mxu0 %v2758
    %3805 = vmatmul.mubr.bf16.gmra.mxu0 %v2757
    %v3806 = vpop.f32.mrf.mxu0
    %v3807 = vadd.f32 %v2850, %v3806
    %v3808 = vpop.f32.mrf.mxu0
    %v3809 = vadd.f32 %v2854, %v3808
    %v3810 = vpop.f32.mrf.mxu0
    %v3811 = vadd.f32 %v2850, %v3810
    %v3812 = vpop.f32.mrf.mxu0
    %v3813 = vadd.f32 %v2854, %v3812
    %3814 = vmatprep.mubr.bf16.mxu0 %v2760
    %3815 = vmatmul.mubr.bf16.gmra.mxu0 %v2759
    %v3816 = vpop.f32.mrf.mxu0
    %v3817 = vadd.f32 %v2850, %v3816
    %v3818 = vpop.f32.mrf.mxu0
    %v3819 = vadd.f32 %v2854, %v3818
    %v3820 = vpop.f32.mrf.mxu0
    %v3821 = vadd.f32 %v2850, %v3820
    %v3822 = vpop.f32.mrf.mxu0
    %v3823 = vadd.f32 %v2854, %v3822
    %3824 = vmatprep.mubr.bf16.mxu0 %v2762
    %3825 = vmatmul.mubr.bf16.gmra.mxu0 %v2761
    %v3826 = vpop.f32.mrf.mxu0
    %v3827 = vadd.f32 %v2850, %v3826
    %v3828 = vpop.f32.mrf.mxu0
    %v3829 = vadd.f32 %v2854, %v3828
    %v3830 = vpop.f32.mrf.mxu0
    %v3831 = vadd.f32 %v2850, %v3830
    %v3832 = vpop.f32.mrf.mxu0
    %v3833 = vadd.f32 %v2854, %v3832
    %3834 = vmatprep.mubr.bf16.mxu0 %v2764
    %3835 = vmatmul.mubr.bf16.gmra.mxu0 %v2763
    %v3836 = vpop.f32.mrf.mxu0
    %v3837 = vadd.f32 %v2850, %v3836
    %v3838 = vpop.f32.mrf.mxu0
    %v3839 = vadd.f32 %v2854, %v3838
    %v3840 = vpop.f32.mrf.mxu0
    %v3841 = vadd.f32 %v2850, %v3840
    %v3842 = vpop.f32.mrf.mxu0
    %v3843 = vadd.f32 %v2854, %v3842
    %3844 = vmatprep.mubr.bf16.mxu0 %v2766
    %3845 = vmatmul.mubr.bf16.gmra.mxu0 %v2765
    %v3846 = vpop.f32.mrf.mxu0
    %v3847 = vadd.f32 %v2850, %v3846
    %v3848 = vpop.f32.mrf.mxu0
    %v3849 = vadd.f32 %v2854, %v3848
    %v3850 = vpop.f32.mrf.mxu0
    %v3851 = vadd.f32 %v2850, %v3850
    %v3852 = vpop.f32.mrf.mxu0
    %v3853 = vadd.f32 %v2854, %v3852
    %3854 = vmatprep.mubr.bf16.mxu0 %v2768
    %3855 = vmatmul.mubr.bf16.gmra.mxu0 %v2767
    %v3856 = vpop.f32.mrf.mxu0
    %v3857 = vadd.f32 %v2850, %v3856
    %v3858 = vpop.f32.mrf.mxu0
    %v3859 = vadd.f32 %v2854, %v3858
    %v3860 = vpop.f32.mrf.mxu0
    %v3861 = vadd.f32 %v2850, %v3860
    %v3862 = vpop.f32.mrf.mxu0
    %v3863 = vadd.f32 %v2854, %v3862
    %3864 = vmatprep.mubr.bf16.mxu0 %v2770
    %3865 = vmatmul.mubr.bf16.gmra.mxu0 %v2769
    %v3866 = vpop.f32.mrf.mxu0
    %v3867 = vadd.f32 %v2850, %v3866
    %v3868 = vpop.f32.mrf.mxu0
    %v3869 = vadd.f32 %v2854, %v3868
    %v3870 = vpop.f32.mrf.mxu0
    %v3871 = vadd.f32 %v2850, %v3870
    %v3872 = vpop.f32.mrf.mxu0
    %v3873 = vadd.f32 %v2854, %v3872
    %3874 = vmatprep.mubr.bf16.mxu0 %v2772
    %3875 = vmatmul.mubr.bf16.gmra.mxu0 %v2771
    %v3876 = vpop.f32.mrf.mxu0
    %v3877 = vadd.f32 %v2850, %v3876
    %v3878 = vpop.f32.mrf.mxu0
    %v3879 = vadd.f32 %v2854, %v3878
    %v3880 = vpop.f32.mrf.mxu0
    %v3881 = vadd.f32 %v2850, %v3880
    %v3882 = vpop.f32.mrf.mxu0
    %v3883 = vadd.f32 %v2854, %v3882
    %3884 = vdwg.mxu0
    %v3885 = vmax.f32 %v3214, 0.0
    %v3886 = vmax.f32 %v3216, 0.0
    %v3887 = vmax.f32 %v3567, 0.0
    %v3888 = vmax.f32 %v3569, 0.0
    %v3889 = vmax.f32 %v3218, 0.0
    %v3890 = vmax.f32 %v3220, 0.0
    %v3891 = vmax.f32 %v3571, 0.0
    %v3892 = vmax.f32 %v3573, 0.0
    %v3893 = vmax.f32 %v3224, 0.0
    %v3894 = vmax.f32 %v3226, 0.0
    %v3895 = vmax.f32 %v3577, 0.0
    %v3896 = vmax.f32 %v3579, 0.0
    %v3897 = vmax.f32 %v3228, 0.0
    %v3898 = vmax.f32 %v3230, 0.0
    %v3899 = vmax.f32 %v3581, 0.0
    %v3900 = vmax.f32 %v3583, 0.0
    %v3901 = vmax.f32 %v3234, 0.0
    %v3902 = vmax.f32 %v3236, 0.0
    %v3903 = vmax.f32 %v3587, 0.0
    %v3904 = vmax.f32 %v3589, 0.0
    %v3905 = vmax.f32 %v3238, 0.0
    %v3906 = vmax.f32 %v3240, 0.0
    %v3907 = vmax.f32 %v3591, 0.0
    %v3908 = vmax.f32 %v3593, 0.0
    %v3909 = vmax.f32 %v3244, 0.0
    %v3910 = vmax.f32 %v3246, 0.0
    %v3911 = vmax.f32 %v3597, 0.0
    %v3912 = vmax.f32 %v3599, 0.0
    %v3913 = vmax.f32 %v3248, 0.0
    %v3914 = vmax.f32 %v3250, 0.0
    %v3915 = vmax.f32 %v3601, 0.0
    %v3916 = vmax.f32 %v3603, 0.0
    %v3917 = vmax.f32 %v3254, 0.0
    %v3918 = vmax.f32 %v3256, 0.0
    %v3919 = vmax.f32 %v3607, 0.0
    %v3920 = vmax.f32 %v3609, 0.0
    %v3921 = vmax.f32 %v3258, 0.0
    %v3922 = vmax.f32 %v3260, 0.0
    %v3923 = vmax.f32 %v3611, 0.0
    %v3924 = vmax.f32 %v3613, 0.0
    %v3925 = vmax.f32 %v3264, 0.0
    %v3926 = vmax.f32 %v3266, 0.0
    %v3927 = vmax.f32 %v3617, 0.0
    %v3928 = vmax.f32 %v3619, 0.0
    %v3929 = vmax.f32 %v3268, 0.0
    %v3930 = vmax.f32 %v3270, 0.0
    %v3931 = vmax.f32 %v3621, 0.0
    %v3932 = vmax.f32 %v3623, 0.0
    %v3933 = vmax.f32 %v3274, 0.0
    %v3934 = vmax.f32 %v3276, 0.0
    %v3935 = vmax.f32 %v3627, 0.0
    %v3936 = vmax.f32 %v3629, 0.0
    %v3937 = vmax.f32 %v3278, 0.0
    %v3938 = vmax.f32 %v3280, 0.0
    %v3939 = vmax.f32 %v3631, 0.0
    %v3940 = vmax.f32 %v3633, 0.0
    %v3941 = vmax.f32 %v3284, 0.0
    %v3942 = vmax.f32 %v3286, 0.0
    %v3943 = vmax.f32 %v3637, 0.0
    %v3944 = vmax.f32 %v3639, 0.0
    %v3945 = vmax.f32 %v3288, 0.0
    %v3946 = vmax.f32 %v3290, 0.0
    %v3947 = vmax.f32 %v3641, 0.0
    %v3948 = vmax.f32 %v3643, 0.0
    %v3949 = vmax.f32 %v3294, 0.0
    %v3950 = vmax.f32 %v3296, 0.0
    %v3951 = vmax.f32 %v3647, 0.0
    %v3952 = vmax.f32 %v3649, 0.0
    %v3953 = vmax.f32 %v3298, 0.0
    %v3954 = vmax.f32 %v3300, 0.0
    %v3955 = vmax.f32 %v3651, 0.0
    %v3956 = vmax.f32 %v3653, 0.0
    %v3957 = vmax.f32 %v3304, 0.0
    %v3958 = vmax.f32 %v3306, 0.0
    %v3959 = vmax.f32 %v3657, 0.0
    %v3960 = vmax.f32 %v3659, 0.0
    %v3961 = vmax.f32 %v3308, 0.0
    %v3962 = vmax.f32 %v3310, 0.0
    %v3963 = vmax.f32 %v3661, 0.0
    %v3964 = vmax.f32 %v3663, 0.0
    %v3965 = vmax.f32 %v3314, 0.0
    %v3966 = vmax.f32 %v3316, 0.0
    %v3967 = vmax.f32 %v3667, 0.0
    %v3968 = vmax.f32 %v3669, 0.0
    %v3969 = vmax.f32 %v3318, 0.0
    %v3970 = vmax.f32 %v3320, 0.0
    %v3971 = vmax.f32 %v3671, 0.0
    %v3972 = vmax.f32 %v3673, 0.0
    %v3973 = vmax.f32 %v3324, 0.0
    %v3974 = vmax.f32 %v3326, 0.0
    %v3975 = vmax.f32 %v3677, 0.0
    %v3976 = vmax.f32 %v3679, 0.0
    %v3977 = vmax.f32 %v3328, 0.0
    %v3978 = vmax.f32 %v3330, 0.0
    %v3979 = vmax.f32 %v3681, 0.0
    %v3980 = vmax.f32 %v3683, 0.0
    %v3981 = vmax.f32 %v3334, 0.0
    %v3982 = vmax.f32 %v3336, 0.0
    %v3983 = vmax.f32 %v3687, 0.0
    %v3984 = vmax.f32 %v3689, 0.0
    %v3985 = vmax.f32 %v3338, 0.0
    %v3986 = vmax.f32 %v3340, 0.0
    %v3987 = vmax.f32 %v3691, 0.0
    %v3988 = vmax.f32 %v3693, 0.0
    %v3989 = vmax.f32 %v3344, 0.0
    %v3990 = vmax.f32 %v3346, 0.0
    %v3991 = vmax.f32 %v3697, 0.0
    %v3992 = vmax.f32 %v3699, 0.0
    %v3993 = vmax.f32 %v3348, 0.0
    %v3994 = vmax.f32 %v3350, 0.0
    %v3995 = vmax.f32 %v3701, 0.0
    %v3996 = vmax.f32 %v3703, 0.0
    %v3997 = vmax.f32 %v3354, 0.0
    %v3998 = vmax.f32 %v3356, 0.0
    %v3999 = vmax.f32 %v3707, 0.0
    %v4000 = vmax.f32 %v3709, 0.0
    %v4001 = vmax.f32 %v3358, 0.0
    %v4002 = vmax.f32 %v3360, 0.0
    %v4003 = vmax.f32 %v3711, 0.0
    %v4004 = vmax.f32 %v3713, 0.0
    %v4005 = vmax.f32 %v3364, 0.0
    %v4006 = vmax.f32 %v3366, 0.0
    %v4007 = vmax.f32 %v3717, 0.0
    %v4008 = vmax.f32 %v3719, 0.0
    %v4009 = vmax.f32 %v3368, 0.0
    %v4010 = vmax.f32 %v3370, 0.0
    %v4011 = vmax.f32 %v3721, 0.0
    %v4012 = vmax.f32 %v3723, 0.0
    %v4013 = vmax.f32 %v3374, 0.0
    %v4014 = vmax.f32 %v3376, 0.0
    %v4015 = vmax.f32 %v3727, 0.0
    %v4016 = vmax.f32 %v3729, 0.0
    %v4017 = vmax.f32 %v3378, 0.0
    %v4018 = vmax.f32 %v3380, 0.0
    %v4019 = vmax.f32 %v3731, 0.0
    %v4020 = vmax.f32 %v3733, 0.0
    %v4021 = vmax.f32 %v3384, 0.0
    %v4022 = vmax.f32 %v3386, 0.0
    %v4023 = vmax.f32 %v3737, 0.0
    %v4024 = vmax.f32 %v3739, 0.0
    %v4025 = vmax.f32 %v3388, 0.0
    %v4026 = vmax.f32 %v3390, 0.0
    %v4027 = vmax.f32 %v3741, 0.0
    %v4028 = vmax.f32 %v3743, 0.0
    %v4029 = vmax.f32 %v3394, 0.0
    %v4030 = vmax.f32 %v3396, 0.0
    %v4031 = vmax.f32 %v3747, 0.0
    %v4032 = vmax.f32 %v3749, 0.0
    %v4033 = vmax.f32 %v3398, 0.0
    %v4034 = vmax.f32 %v3400, 0.0
    %v4035 = vmax.f32 %v3751, 0.0
    %v4036 = vmax.f32 %v3753, 0.0
    %v4037 = vmax.f32 %v3404, 0.0
    %v4038 = vmax.f32 %v3406, 0.0
    %v4039 = vmax.f32 %v3757, 0.0
    %v4040 = vmax.f32 %v3759, 0.0
    %v4041 = vmax.f32 %v3408, 0.0
    %v4042 = vmax.f32 %v3410, 0.0
    %v4043 = vmax.f32 %v3761, 0.0
    %v4044 = vmax.f32 %v3763, 0.0
    %v4045 = vmax.f32 %v3414, 0.0
    %v4046 = vmax.f32 %v3416, 0.0
    %v4047 = vmax.f32 %v3767, 0.0
    %v4048 = vmax.f32 %v3769, 0.0
    %v4049 = vmax.f32 %v3418, 0.0
    %v4050 = vmax.f32 %v3420, 0.0
    %v4051 = vmax.f32 %v3771, 0.0
    %v4052 = vmax.f32 %v3773, 0.0
    %v4053 = vmax.f32 %v3424, 0.0
    %v4054 = vmax.f32 %v3426, 0.0
    %v4055 = vmax.f32 %v3777, 0.0
    %v4056 = vmax.f32 %v3779, 0.0
    %v4057 = vmax.f32 %v3428, 0.0
    %v4058 = vmax.f32 %v3430, 0.0
    %v4059 = vmax.f32 %v3781, 0.0
    %v4060 = vmax.f32 %v3783, 0.0
    %v4061 = vmax.f32 %v3434, 0.0
    %v4062 = vmax.f32 %v3436, 0.0
    %v4063 = vmax.f32 %v3787, 0.0
    %v4064 = vmax.f32 %v3789, 0.0
    %v4065 = vmax.f32 %v3438, 0.0
    %v4066 = vmax.f32 %v3440, 0.0
    %v4067 = vmax.f32 %v3791, 0.0
    %v4068 = vmax.f32 %v3793, 0.0
    %v4069 = vmax.f32 %v3444, 0.0
    %v4070 = vmax.f32 %v3446, 0.0
    %v4071 = vmax.f32 %v3797, 0.0
    %v4072 = vmax.f32 %v3799, 0.0
    %v4073 = vmax.f32 %v3448, 0.0
    %v4074 = vmax.f32 %v3450, 0.0
    %v4075 = vmax.f32 %v3801, 0.0
    %v4076 = vmax.f32 %v3803, 0.0
    %v4077 = vmax.f32 %v3454, 0.0
    %v4078 = vmax.f32 %v3456, 0.0
    %v4079 = vmax.f32 %v3807, 0.0
    %v4080 = vmax.f32 %v3809, 0.0
    %v4081 = vmax.f32 %v3458, 0.0
    %v4082 = vmax.f32 %v3460, 0.0
    %v4083 = vmax.f32 %v3811, 0.0
    %v4084 = vmax.f32 %v3813, 0.0
    %v4085 = vmax.f32 %v3464, 0.0
    %v4086 = vmax.f32 %v3466, 0.0
    %v4087 = vmax.f32 %v3817, 0.0
    %v4088 = vmax.f32 %v3819, 0.0
    %v4089 = vmax.f32 %v3468, 0.0
    %v4090 = vmax.f32 %v3470, 0.0
    %v4091 = vmax.f32 %v3821, 0.0
    %v4092 = vmax.f32 %v3823, 0.0
    %v4093 = vmax.f32 %v3474, 0.0
    %v4094 = vmax.f32 %v3476, 0.0
    %v4095 = vmax.f32 %v3827, 0.0
    %v4096 = vmax.f32 %v3829, 0.0
    %v4097 = vmax.f32 %v3478, 0.0
    %v4098 = vmax.f32 %v3480, 0.0
    %v4099 = vmax.f32 %v3831, 0.0
    %v4100 = vmax.f32 %v3833, 0.0
    %v4101 = vmax.f32 %v3484, 0.0
    %v4102 = vmax.f32 %v3486, 0.0
    %v4103 = vmax.f32 %v3837, 0.0
    %v4104 = vmax.f32 %v3839, 0.0
    %v4105 = vmax.f32 %v3488, 0.0
    %v4106 = vmax.f32 %v3490, 0.0
    %v4107 = vmax.f32 %v3841, 0.0
    %v4108 = vmax.f32 %v3843, 0.0
    %v4109 = vmax.f32 %v3494, 0.0
    %v4110 = vmax.f32 %v3496, 0.0
    %v4111 = vmax.f32 %v3847, 0.0
    %v4112 = vmax.f32 %v3849, 0.0
    %v4113 = vmax.f32 %v3498, 0.0
    %v4114 = vmax.f32 %v3500, 0.0
    %v4115 = vmax.f32 %v3851, 0.0
    %v4116 = vmax.f32 %v3853, 0.0
    %v4117 = vmax.f32 %v3504, 0.0
    %v4118 = vmax.f32 %v3506, 0.0
    %v4119 = vmax.f32 %v3857, 0.0
    %v4120 = vmax.f32 %v3859, 0.0
    %v4121 = vmax.f32 %v3508, 0.0
    %v4122 = vmax.f32 %v3510, 0.0
    %v4123 = vmax.f32 %v3861, 0.0
    %v4124 = vmax.f32 %v3863, 0.0
    %v4125 = vmax.f32 %v3514, 0.0
    %v4126 = vmax.f32 %v3516, 0.0
    %v4127 = vmax.f32 %v3867, 0.0
    %v4128 = vmax.f32 %v3869, 0.0
    %v4129 = vmax.f32 %v3518, 0.0
    %v4130 = vmax.f32 %v3520, 0.0
    %v4131 = vmax.f32 %v3871, 0.0
    %v4132 = vmax.f32 %v3873, 0.0
    %v4133 = vmax.f32 %v3524, 0.0
    %v4134 = vmax.f32 %v3526, 0.0
    %v4135 = vmax.f32 %v3877, 0.0
    %v4136 = vmax.f32 %v3879, 0.0
    %v4137 = vmax.f32 %v3528, 0.0
    %v4138 = vmax.f32 %v3530, 0.0
    %v4139 = vmax.f32 %v3881, 0.0
    %v4140 = vmax.f32 %v3883, 0.0
    %v4141 = vpack.c.bf16 %v3889, %v3885
    %v4142 = vpack.c.bf16 %v3890, %v3886
    %v4143 = vpack.c.bf16 %v3891, %v3887
    %v4144 = vpack.c.bf16 %v3892, %v3888
    %v4145 = vpack.c.bf16 %v3897, %v3893
    %v4146 = vpack.c.bf16 %v3898, %v3894
    %v4147 = vpack.c.bf16 %v3899, %v3895
    %v4148 = vpack.c.bf16 %v3900, %v3896
    %v4149 = vpack.c.bf16 %v3905, %v3901
    %v4150 = vpack.c.bf16 %v3906, %v3902
    %v4151 = vpack.c.bf16 %v3907, %v3903
    %v4152 = vpack.c.bf16 %v3908, %v3904
    %v4153 = vpack.c.bf16 %v3913, %v3909
    %v4154 = vpack.c.bf16 %v3914, %v3910
    %v4155 = vpack.c.bf16 %v3915, %v3911
    %v4156 = vpack.c.bf16 %v3916, %v3912
    %v4157 = vpack.c.bf16 %v3921, %v3917
    %v4158 = vpack.c.bf16 %v3922, %v3918
    %v4159 = vpack.c.bf16 %v3923, %v3919
    %v4160 = vpack.c.bf16 %v3924, %v3920
    %v4161 = vpack.c.bf16 %v3929, %v3925
    %v4162 = vpack.c.bf16 %v3930, %v3926
    %v4163 = vpack.c.bf16 %v3931, %v3927
    %v4164 = vpack.c.bf16 %v3932, %v3928
    %v4165 = vpack.c.bf16 %v3937, %v3933
    %v4166 = vpack.c.bf16 %v3938, %v3934
    %v4167 = vpack.c.bf16 %v3939, %v3935
    %v4168 = vpack.c.bf16 %v3940, %v3936
    %v4169 = vpack.c.bf16 %v3945, %v3941
    %v4170 = vpack.c.bf16 %v3946, %v3942
    %v4171 = vpack.c.bf16 %v3947, %v3943
    %v4172 = vpack.c.bf16 %v3948, %v3944
    %v4173 = vpack.c.bf16 %v3953, %v3949
    %v4174 = vpack.c.bf16 %v3954, %v3950
    %v4175 = vpack.c.bf16 %v3955, %v3951
    %v4176 = vpack.c.bf16 %v3956, %v3952
    %v4177 = vpack.c.bf16 %v3961, %v3957
    %v4178 = vpack.c.bf16 %v3962, %v3958
    %v4179 = vpack.c.bf16 %v3963, %v3959
    %v4180 = vpack.c.bf16 %v3964, %v3960
    %v4181 = vpack.c.bf16 %v3969, %v3965
    %v4182 = vpack.c.bf16 %v3970, %v3966
    %v4183 = vpack.c.bf16 %v3971, %v3967
    %v4184 = vpack.c.bf16 %v3972, %v3968
    %v4185 = vpack.c.bf16 %v3977, %v3973
    %v4186 = vpack.c.bf16 %v3978, %v3974
    %v4187 = vpack.c.bf16 %v3979, %v3975
    %v4188 = vpack.c.bf16 %v3980, %v3976
    %v4189 = vpack.c.bf16 %v3985, %v3981
    %v4190 = vpack.c.bf16 %v3986, %v3982
    %v4191 = vpack.c.bf16 %v3987, %v3983
    %v4192 = vpack.c.bf16 %v3988, %v3984
    %v4193 = vpack.c.bf16 %v3993, %v3989
    %v4194 = vpack.c.bf16 %v3994, %v3990
    %v4195 = vpack.c.bf16 %v3995, %v3991
    %v4196 = vpack.c.bf16 %v3996, %v3992
    %v4197 = vpack.c.bf16 %v4001, %v3997
    %v4198 = vpack.c.bf16 %v4002, %v3998
    %v4199 = vpack.c.bf16 %v4003, %v3999
    %v4200 = vpack.c.bf16 %v4004, %v4000
    %v4201 = vpack.c.bf16 %v4009, %v4005
    %v4202 = vpack.c.bf16 %v4010, %v4006
    %v4203 = vpack.c.bf16 %v4011, %v4007
    %v4204 = vpack.c.bf16 %v4012, %v4008
    %v4205 = vpack.c.bf16 %v4017, %v4013
    %v4206 = vpack.c.bf16 %v4018, %v4014
    %v4207 = vpack.c.bf16 %v4019, %v4015
    %v4208 = vpack.c.bf16 %v4020, %v4016
    %v4209 = vpack.c.bf16 %v4025, %v4021
    %v4210 = vpack.c.bf16 %v4026, %v4022
    %v4211 = vpack.c.bf16 %v4027, %v4023
    %v4212 = vpack.c.bf16 %v4028, %v4024
    %v4213 = vpack.c.bf16 %v4033, %v4029
    %v4214 = vpack.c.bf16 %v4034, %v4030
    %v4215 = vpack.c.bf16 %v4035, %v4031
    %v4216 = vpack.c.bf16 %v4036, %v4032
    %v4217 = vpack.c.bf16 %v4041, %v4037
    %v4218 = vpack.c.bf16 %v4042, %v4038
    %v4219 = vpack.c.bf16 %v4043, %v4039
    %v4220 = vpack.c.bf16 %v4044, %v4040
    %v4221 = vpack.c.bf16 %v4049, %v4045
    %v4222 = vpack.c.bf16 %v4050, %v4046
    %v4223 = vpack.c.bf16 %v4051, %v4047
    %v4224 = vpack.c.bf16 %v4052, %v4048
    %v4225 = vpack.c.bf16 %v4057, %v4053
    %v4226 = vpack.c.bf16 %v4058, %v4054
    %v4227 = vpack.c.bf16 %v4059, %v4055
    %v4228 = vpack.c.bf16 %v4060, %v4056
    %v4229 = vpack.c.bf16 %v4065, %v4061
    %v4230 = vpack.c.bf16 %v4066, %v4062
    %v4231 = vpack.c.bf16 %v4067, %v4063
    %v4232 = vpack.c.bf16 %v4068, %v4064
    %v4233 = vpack.c.bf16 %v4073, %v4069
    %v4234 = vpack.c.bf16 %v4074, %v4070
    %v4235 = vpack.c.bf16 %v4075, %v4071
    %v4236 = vpack.c.bf16 %v4076, %v4072
    %v4237 = vpack.c.bf16 %v4081, %v4077
    %v4238 = vpack.c.bf16 %v4082, %v4078
    %v4239 = vpack.c.bf16 %v4083, %v4079
    %v4240 = vpack.c.bf16 %v4084, %v4080
    %v4241 = vpack.c.bf16 %v4089, %v4085
    %v4242 = vpack.c.bf16 %v4090, %v4086
    %v4243 = vpack.c.bf16 %v4091, %v4087
    %v4244 = vpack.c.bf16 %v4092, %v4088
    %v4245 = vpack.c.bf16 %v4097, %v4093
    %v4246 = vpack.c.bf16 %v4098, %v4094
    %v4247 = vpack.c.bf16 %v4099, %v4095
    %v4248 = vpack.c.bf16 %v4100, %v4096
    %v4249 = vpack.c.bf16 %v4105, %v4101
    %v4250 = vpack.c.bf16 %v4106, %v4102
    %v4251 = vpack.c.bf16 %v4107, %v4103
    %v4252 = vpack.c.bf16 %v4108, %v4104
    %v4253 = vpack.c.bf16 %v4113, %v4109
    %v4254 = vpack.c.bf16 %v4114, %v4110
    %v4255 = vpack.c.bf16 %v4115, %v4111
    %v4256 = vpack.c.bf16 %v4116, %v4112
    %v4257 = vpack.c.bf16 %v4121, %v4117
    %v4258 = vpack.c.bf16 %v4122, %v4118
    %v4259 = vpack.c.bf16 %v4123, %v4119
    %v4260 = vpack.c.bf16 %v4124, %v4120
    %v4261 = vpack.c.bf16 %v4129, %v4125
    %v4262 = vpack.c.bf16 %v4130, %v4126
    %v4263 = vpack.c.bf16 %v4131, %v4127
    %v4264 = vpack.c.bf16 %v4132, %v4128
    %v4265 = vpack.c.bf16 %v4137, %v4133
    %v4266 = vpack.c.bf16 %v4138, %v4134
    %v4267 = vpack.c.bf16 %v4139, %v4135
    %v4268 = vpack.c.bf16 %v4140, %v4136
    %v4269 = vld [vmem:[#allocation12] sm:$0xf]
    %v4270 = vld [vmem:[#allocation12 + $0x4] sm:$0xf]
    %v4271 = vld [vmem:[#allocation12 + $0x8] sm:$0xf]
    %v4272 = vld [vmem:[#allocation12 + $0xc] sm:$0xf]
    %v4273 = vld [vmem:[#allocation12 + $0x10] sm:$0xf]
    %v4274 = vld [vmem:[#allocation12 + $0x14] sm:$0xf]
    %v4275 = vld [vmem:[#allocation12 + $0x18] sm:$0xf]
    %v4276 = vld [vmem:[#allocation12 + $0x1c] sm:$0xf]
    %v4277 = vld [vmem:[#allocation12 + $0x20] sm:$0xf]
    %v4278 = vld [vmem:[#allocation12 + $0x24] sm:$0xf]
    %v4279 = vld [vmem:[#allocation12 + $0x28] sm:$0xf]
    %v4280 = vld [vmem:[#allocation12 + $0x2c] sm:$0xf]
    %v4281 = vld [vmem:[#allocation12 + $0x30] sm:$0xf]
    %v4282 = vld [vmem:[#allocation12 + $0x34] sm:$0xf]
    %v4283 = vld [vmem:[#allocation12 + $0x38] sm:$0xf]
    %v4284 = vld [vmem:[#allocation12 + $0x3c] sm:$0xf]
    %v4285 = vld [vmem:[#allocation12 + $0x40] sm:$0xf]
    %v4286 = vld [vmem:[#allocation12 + $0x44] sm:$0xf]
    %v4287 = vld [vmem:[#allocation12 + $0x48] sm:$0xf]
    %v4288 = vld [vmem:[#allocation12 + $0x4c] sm:$0xf]
    %v4289 = vld [vmem:[#allocation12 + $0x50] sm:$0xf]
    %v4290 = vld [vmem:[#allocation12 + $0x54] sm:$0xf]
    %v4291 = vld [vmem:[#allocation12 + $0x58] sm:$0xf]
    %v4292 = vld [vmem:[#allocation12 + $0x5c] sm:$0xf]
    %v4293 = vld [vmem:[#allocation12 + $0x60] sm:$0xf]
    %v4294 = vld [vmem:[#allocation12 + $0x64] sm:$0xf]
    %v4295 = vld [vmem:[#allocation12 + $0x68] sm:$0xf]
    %v4296 = vld [vmem:[#allocation12 + $0x6c] sm:$0xf]
    %v4297 = vld [vmem:[#allocation12 + $0x70] sm:$0xf]
    %v4298 = vld [vmem:[#allocation12 + $0x74] sm:$0xf]
    %v4299 = vld [vmem:[#allocation12 + $0x78] sm:$0xf]
    %v4300 = vld [vmem:[#allocation12 + $0x7c] sm:$0xf]
    %v4301 = vld [vmem:[#allocation12 + $0x80] sm:$0xf]
    %v4302 = vld [vmem:[#allocation12 + $0x84] sm:$0xf]
    %v4303 = vld [vmem:[#allocation12 + $0x88] sm:$0xf]
    %v4304 = vld [vmem:[#allocation12 + $0x8c] sm:$0xf]
    %v4305 = vld [vmem:[#allocation12 + $0x90] sm:$0xf]
    %v4306 = vld [vmem:[#allocation12 + $0x94] sm:$0xf]
    %v4307 = vld [vmem:[#allocation12 + $0x98] sm:$0xf]
    %v4308 = vld [vmem:[#allocation12 + $0x9c] sm:$0xf]
    %v4309 = vld [vmem:[#allocation12 + $0xa0] sm:$0xf]
    %v4310 = vld [vmem:[#allocation12 + $0xa4] sm:$0xf]
    %v4311 = vld [vmem:[#allocation12 + $0xa8] sm:$0xf]
    %v4312 = vld [vmem:[#allocation12 + $0xac] sm:$0xf]
    %v4313 = vld [vmem:[#allocation12 + $0xb0] sm:$0xf]
    %v4314 = vld [vmem:[#allocation12 + $0xb4] sm:$0xf]
    %v4315 = vld [vmem:[#allocation12 + $0xb8] sm:$0xf]
    %v4316 = vld [vmem:[#allocation12 + $0xbc] sm:$0xf]
    %v4317 = vld [vmem:[#allocation12 + $0xc0] sm:$0xf]
    %v4318 = vld [vmem:[#allocation12 + $0xc4] sm:$0xf]
    %v4319 = vld [vmem:[#allocation12 + $0xc8] sm:$0xf]
    %v4320 = vld [vmem:[#allocation12 + $0xcc] sm:$0xf]
    %v4321 = vld [vmem:[#allocation12 + $0xd0] sm:$0xf]
    %v4322 = vld [vmem:[#allocation12 + $0xd4] sm:$0xf]
    %v4323 = vld [vmem:[#allocation12 + $0xd8] sm:$0xf]
    %v4324 = vld [vmem:[#allocation12 + $0xdc] sm:$0xf]
    %v4325 = vld [vmem:[#allocation12 + $0xe0] sm:$0xf]
    %v4326 = vld [vmem:[#allocation12 + $0xe4] sm:$0xf]
    %v4327 = vld [vmem:[#allocation12 + $0xe8] sm:$0xf]
    %v4328 = vld [vmem:[#allocation12 + $0xec] sm:$0xf]
    %v4329 = vld [vmem:[#allocation12 + $0xf0] sm:$0xf]
    %v4330 = vld [vmem:[#allocation12 + $0xf4] sm:$0xf]
    %v4331 = vld [vmem:[#allocation12 + $0xf8] sm:$0xf]
    %v4332 = vld [vmem:[#allocation12 + $0xfc] sm:$0xf]
    %v4333 = vld [vmem:[#allocation14] sm:$0x1]
    %v4335 = vlaneseq
    %v4336 = vshrl.u32 %v4335, 7
    %v4337 = vsub.s32 0, %v4336
    %v4338 = vrot.slane %v4333, %v4337
    %v4404 = vunpack.c.l.b16 %v4269
    %v4405 = vunpack.c.l.b16 %v4270
    %v4406 = vunpack.c.l.b16 %v4271
    %v4407 = vunpack.c.l.b16 %v4272
    %v4408 = vunpack.c.l.b16 %v4273
    %v4409 = vunpack.c.l.b16 %v4274
    %v4410 = vunpack.c.l.b16 %v4275
    %v4411 = vunpack.c.l.b16 %v4276
    %v4412 = vunpack.c.l.b16 %v4277
    %v4413 = vunpack.c.l.b16 %v4278
    %v4414 = vunpack.c.l.b16 %v4279
    %v4415 = vunpack.c.l.b16 %v4280
    %v4416 = vunpack.c.l.b16 %v4281
    %v4417 = vunpack.c.l.b16 %v4282
    %v4418 = vunpack.c.l.b16 %v4283
    %v4419 = vunpack.c.l.b16 %v4284
    %v4420 = vunpack.c.l.b16 %v4285
    %v4421 = vunpack.c.l.b16 %v4286
    %v4422 = vunpack.c.l.b16 %v4287
    %v4423 = vunpack.c.l.b16 %v4288
    %v4424 = vunpack.c.l.b16 %v4289
    %v4425 = vunpack.c.l.b16 %v4290
    %v4426 = vunpack.c.l.b16 %v4291
    %v4427 = vunpack.c.l.b16 %v4292
    %v4428 = vunpack.c.l.b16 %v4293
    %v4429 = vunpack.c.l.b16 %v4294
    %v4430 = vunpack.c.l.b16 %v4295
    %v4431 = vunpack.c.l.b16 %v4296
    %v4432 = vunpack.c.l.b16 %v4297
    %v4433 = vunpack.c.l.b16 %v4298
    %v4434 = vunpack.c.l.b16 %v4299
    %v4435 = vunpack.c.l.b16 %v4300
    %v4436 = vunpack.c.l.b16 %v4301
    %v4437 = vunpack.c.l.b16 %v4302
    %v4438 = vunpack.c.l.b16 %v4303
    %v4439 = vunpack.c.l.b16 %v4304
    %v4440 = vunpack.c.l.b16 %v4305
    %v4441 = vunpack.c.l.b16 %v4306
    %v4442 = vunpack.c.l.b16 %v4307
    %v4443 = vunpack.c.l.b16 %v4308
    %v4444 = vunpack.c.l.b16 %v4309
    %v4445 = vunpack.c.l.b16 %v4310
    %v4446 = vunpack.c.l.b16 %v4311
    %v4447 = vunpack.c.l.b16 %v4312
    %v4448 = vunpack.c.l.b16 %v4313
    %v4449 = vunpack.c.l.b16 %v4314
    %v4450 = vunpack.c.l.b16 %v4315
    %v4451 = vunpack.c.l.b16 %v4316
    %v4452 = vunpack.c.l.b16 %v4317
    %v4453 = vunpack.c.l.b16 %v4318
    %v4454 = vunpack.c.l.b16 %v4319
    %v4455 = vunpack.c.l.b16 %v4320
    %v4456 = vunpack.c.l.b16 %v4321
    %v4457 = vunpack.c.l.b16 %v4322
    %v4458 = vunpack.c.l.b16 %v4323
    %v4459 = vunpack.c.l.b16 %v4324
    %v4460 = vunpack.c.l.b16 %v4325
    %v4461 = vunpack.c.l.b16 %v4326
    %v4462 = vunpack.c.l.b16 %v4327
    %v4463 = vunpack.c.l.b16 %v4328
    %v4464 = vunpack.c.l.b16 %v4329
    %v4465 = vunpack.c.l.b16 %v4330
    %v4466 = vunpack.c.l.b16 %v4331
    %v4467 = vunpack.c.l.b16 %v4332
    %v4468 = vpack.c.b16 %v4405, %v4404
    %v4469 = vpack.c.b16 %v4407, %v4406
    %v4470 = vpack.c.b16 %v4409, %v4408
    %v4471 = vpack.c.b16 %v4411, %v4410
    %v4472 = vpack.c.b16 %v4413, %v4412
    %v4473 = vpack.c.b16 %v4415, %v4414
    %v4474 = vpack.c.b16 %v4417, %v4416
    %v4475 = vpack.c.b16 %v4419, %v4418
    %v4476 = vpack.c.b16 %v4421, %v4420
    %v4477 = vpack.c.b16 %v4423, %v4422
    %v4478 = vpack.c.b16 %v4425, %v4424
    %v4479 = vpack.c.b16 %v4427, %v4426
    %v4480 = vpack.c.b16 %v4429, %v4428
    %v4481 = vpack.c.b16 %v4431, %v4430
    %v4482 = vpack.c.b16 %v4433, %v4432
    %v4483 = vpack.c.b16 %v4435, %v4434
    %v4484 = vpack.c.b16 %v4437, %v4436
    %v4485 = vpack.c.b16 %v4439, %v4438
    %v4486 = vpack.c.b16 %v4441, %v4440
    %v4487 = vpack.c.b16 %v4443, %v4442
    %v4488 = vpack.c.b16 %v4445, %v4444
    %v4489 = vpack.c.b16 %v4447, %v4446
    %v4490 = vpack.c.b16 %v4449, %v4448
    %v4491 = vpack.c.b16 %v4451, %v4450
    %v4492 = vpack.c.b16 %v4453, %v4452
    %v4493 = vpack.c.b16 %v4455, %v4454
    %v4494 = vpack.c.b16 %v4457, %v4456
    %v4495 = vpack.c.b16 %v4459, %v4458
    %v4496 = vpack.c.b16 %v4461, %v4460
    %v4497 = vpack.c.b16 %v4463, %v4462
    %v4498 = vpack.c.b16 %v4465, %v4464
    %v4499 = vpack.c.b16 %v4467, %v4466
    %4532 = vmatprep.subr.bf16.mxu0 0
    %4533 = vmatpush1.bf16.msra.mxu0 %v4475
    %4534 = vmatprep.subr.bf16.mxu0 0
    %4535 = vmatpush1.bf16.msra.mxu0 %v4474
    %4536 = vmatprep.subr.bf16.mxu0 0
    %4537 = vmatpush1.bf16.msra.mxu0 %v4473
    %4538 = vmatprep.subr.bf16.mxu0 0
    %4539 = vmatpush1.bf16.msra.mxu0 %v4472
    %4540 = vmatprep.subr.bf16.mxu0 0
    %4541 = vmatpush1.bf16.msra.mxu0 %v4471
    %4542 = vmatprep.subr.bf16.mxu0 0
    %4543 = vmatpush1.bf16.msra.mxu0 %v4470
    %4544 = vmatprep.subr.bf16.mxu0 0
    %4545 = vmatpush1.bf16.msra.mxu0 %v4469
    %4546 = vmatprep.subr.bf16.mxu0 0
    %4547 = vmatpush1.bf16.msra.mxu0 %v4468
    %4548 = vmatprep.subr.bf16.mxu0 0
    %4549 = vmatpush2.bf16.msra.mxu0 %v4483
    %4550 = vmatprep.subr.bf16.mxu0 0
    %4551 = vmatpush2.bf16.msra.mxu0 %v4482
    %4552 = vmatprep.subr.bf16.mxu0 0
    %4553 = vmatpush2.bf16.msra.mxu0 %v4481
    %4554 = vmatprep.subr.bf16.mxu0 0
    %4555 = vmatpush2.bf16.msra.mxu0 %v4480
    %4556 = vmatprep.subr.bf16.mxu0 0
    %4557 = vmatpush2.bf16.msra.mxu0 %v4479
    %4558 = vmatprep.subr.bf16.mxu0 0
    %4559 = vmatpush2.bf16.msra.mxu0 %v4478
    %4560 = vmatprep.subr.bf16.mxu0 0
    %4561 = vmatpush2.bf16.msra.mxu0 %v4477
    %4562 = vmatprep.subr.bf16.mxu0 0
    %4563 = vmatpush2.bf16.msra.mxu0 %v4476
    %4564 = vmatprep.mubr.bf16.mxu0 %v4142
    %4565 = vmatmul.mubr.bf16.gmra.mxu0 %v4141
    %v4566 = vpop.f32.mrf.mxu0
    %v4567 = vadd.f32 %v4338, %v4566
    %v4568 = vpop.f32.mrf.mxu0
    %v4569 = vpop.f32.mrf.mxu0
    %v4570 = vadd.f32 %v4338, %v4569
    %v4571 = vpop.f32.mrf.mxu0
    %4572 = vmatprep.mubr.bf16.mxu0 %v4146
    %4573 = vmatmul.mubr.bf16.gmra.mxu0 %v4145
    %v4574 = vpop.f32.mrf.mxu0
    %v4575 = vadd.f32 %v4338, %v4574
    %v4576 = vpop.f32.mrf.mxu0
    %v4577 = vpop.f32.mrf.mxu0
    %v4578 = vadd.f32 %v4338, %v4577
    %v4579 = vpop.f32.mrf.mxu0
    %4580 = vmatprep.mubr.bf16.mxu0 %v4150
    %4581 = vmatmul.mubr.bf16.gmra.mxu0 %v4149
    %v4582 = vpop.f32.mrf.mxu0
    %v4583 = vadd.f32 %v4338, %v4582
    %v4584 = vpop.f32.mrf.mxu0
    %v4585 = vpop.f32.mrf.mxu0
    %v4586 = vadd.f32 %v4338, %v4585
    %v4587 = vpop.f32.mrf.mxu0
    %4588 = vmatprep.mubr.bf16.mxu0 %v4154
    %4589 = vmatmul.mubr.bf16.gmra.mxu0 %v4153
    %v4590 = vpop.f32.mrf.mxu0
    %v4591 = vadd.f32 %v4338, %v4590
    %v4592 = vpop.f32.mrf.mxu0
    %v4593 = vpop.f32.mrf.mxu0
    %v4594 = vadd.f32 %v4338, %v4593
    %v4595 = vpop.f32.mrf.mxu0
    %4596 = vmatprep.mubr.bf16.mxu0 %v4158
    %4597 = vmatmul.mubr.bf16.gmra.mxu0 %v4157
    %v4598 = vpop.f32.mrf.mxu0
    %v4599 = vadd.f32 %v4338, %v4598
    %v4600 = vpop.f32.mrf.mxu0
    %v4601 = vpop.f32.mrf.mxu0
    %v4602 = vadd.f32 %v4338, %v4601
    %v4603 = vpop.f32.mrf.mxu0
    %4604 = vmatprep.mubr.bf16.mxu0 %v4162
    %4605 = vmatmul.mubr.bf16.gmra.mxu0 %v4161
    %v4606 = vpop.f32.mrf.mxu0
    %v4607 = vadd.f32 %v4338, %v4606
    %v4608 = vpop.f32.mrf.mxu0
    %v4609 = vpop.f32.mrf.mxu0
    %v4610 = vadd.f32 %v4338, %v4609
    %v4611 = vpop.f32.mrf.mxu0
    %4612 = vmatprep.mubr.bf16.mxu0 %v4166
    %4613 = vmatmul.mubr.bf16.gmra.mxu0 %v4165
    %v4614 = vpop.f32.mrf.mxu0
    %v4615 = vadd.f32 %v4338, %v4614
    %v4616 = vpop.f32.mrf.mxu0
    %v4617 = vpop.f32.mrf.mxu0
    %v4618 = vadd.f32 %v4338, %v4617
    %v4619 = vpop.f32.mrf.mxu0
    %4620 = vmatprep.mubr.bf16.mxu0 %v4170
    %4621 = vmatmul.mubr.bf16.gmra.mxu0 %v4169
    %v4622 = vpop.f32.mrf.mxu0
    %v4623 = vadd.f32 %v4338, %v4622
    %v4624 = vpop.f32.mrf.mxu0
    %v4625 = vpop.f32.mrf.mxu0
    %v4626 = vadd.f32 %v4338, %v4625
    %v4627 = vpop.f32.mrf.mxu0
    %4628 = vmatprep.mubr.bf16.mxu0 %v4174
    %4629 = vmatmul.mubr.bf16.gmra.mxu0 %v4173
    %v4630 = vpop.f32.mrf.mxu0
    %v4631 = vadd.f32 %v4338, %v4630
    %v4632 = vpop.f32.mrf.mxu0
    %v4633 = vpop.f32.mrf.mxu0
    %v4634 = vadd.f32 %v4338, %v4633
    %v4635 = vpop.f32.mrf.mxu0
    %4636 = vmatprep.mubr.bf16.mxu0 %v4178
    %4637 = vmatmul.mubr.bf16.gmra.mxu0 %v4177
    %v4638 = vpop.f32.mrf.mxu0
    %v4639 = vadd.f32 %v4338, %v4638
    %v4640 = vpop.f32.mrf.mxu0
    %v4641 = vpop.f32.mrf.mxu0
    %v4642 = vadd.f32 %v4338, %v4641
    %v4643 = vpop.f32.mrf.mxu0
    %4644 = vmatprep.mubr.bf16.mxu0 %v4182
    %4645 = vmatmul.mubr.bf16.gmra.mxu0 %v4181
    %v4646 = vpop.f32.mrf.mxu0
    %v4647 = vadd.f32 %v4338, %v4646
    %v4648 = vpop.f32.mrf.mxu0
    %v4649 = vpop.f32.mrf.mxu0
    %v4650 = vadd.f32 %v4338, %v4649
    %v4651 = vpop.f32.mrf.mxu0
    %4652 = vmatprep.mubr.bf16.mxu0 %v4186
    %4653 = vmatmul.mubr.bf16.gmra.mxu0 %v4185
    %v4654 = vpop.f32.mrf.mxu0
    %v4655 = vadd.f32 %v4338, %v4654
    %v4656 = vpop.f32.mrf.mxu0
    %v4657 = vpop.f32.mrf.mxu0
    %v4658 = vadd.f32 %v4338, %v4657
    %v4659 = vpop.f32.mrf.mxu0
    %4660 = vmatprep.mubr.bf16.mxu0 %v4190
    %4661 = vmatmul.mubr.bf16.gmra.mxu0 %v4189
    %v4662 = vpop.f32.mrf.mxu0
    %v4663 = vadd.f32 %v4338, %v4662
    %v4664 = vpop.f32.mrf.mxu0
    %v4665 = vpop.f32.mrf.mxu0
    %v4666 = vadd.f32 %v4338, %v4665
    %v4667 = vpop.f32.mrf.mxu0
    %4668 = vmatprep.mubr.bf16.mxu0 %v4194
    %4669 = vmatmul.mubr.bf16.gmra.mxu0 %v4193
    %v4670 = vpop.f32.mrf.mxu0
    %v4671 = vadd.f32 %v4338, %v4670
    %v4672 = vpop.f32.mrf.mxu0
    %v4673 = vpop.f32.mrf.mxu0
    %v4674 = vadd.f32 %v4338, %v4673
    %v4675 = vpop.f32.mrf.mxu0
    %4676 = vmatprep.mubr.bf16.mxu0 %v4198
    %4677 = vmatmul.mubr.bf16.gmra.mxu0 %v4197
    %v4678 = vpop.f32.mrf.mxu0
    %v4679 = vadd.f32 %v4338, %v4678
    %v4680 = vpop.f32.mrf.mxu0
    %v4681 = vpop.f32.mrf.mxu0
    %v4682 = vadd.f32 %v4338, %v4681
    %v4683 = vpop.f32.mrf.mxu0
    %4684 = vmatprep.mubr.bf16.mxu0 %v4202
    %4685 = vmatmul.mubr.bf16.gmra.mxu0 %v4201
    %v4686 = vpop.f32.mrf.mxu0
    %v4687 = vadd.f32 %v4338, %v4686
    %v4688 = vpop.f32.mrf.mxu0
    %v4689 = vpop.f32.mrf.mxu0
    %v4690 = vadd.f32 %v4338, %v4689
    %v4691 = vpop.f32.mrf.mxu0
    %4692 = vmatprep.mubr.bf16.mxu0 %v4206
    %4693 = vmatmul.mubr.bf16.gmra.mxu0 %v4205
    %v4694 = vpop.f32.mrf.mxu0
    %v4695 = vadd.f32 %v4338, %v4694
    %v4696 = vpop.f32.mrf.mxu0
    %v4697 = vpop.f32.mrf.mxu0
    %v4698 = vadd.f32 %v4338, %v4697
    %v4699 = vpop.f32.mrf.mxu0
    %4700 = vmatprep.mubr.bf16.mxu0 %v4210
    %4701 = vmatmul.mubr.bf16.gmra.mxu0 %v4209
    %v4702 = vpop.f32.mrf.mxu0
    %v4703 = vadd.f32 %v4338, %v4702
    %v4704 = vpop.f32.mrf.mxu0
    %v4705 = vpop.f32.mrf.mxu0
    %v4706 = vadd.f32 %v4338, %v4705
    %v4707 = vpop.f32.mrf.mxu0
    %4708 = vmatprep.mubr.bf16.mxu0 %v4214
    %4709 = vmatmul.mubr.bf16.gmra.mxu0 %v4213
    %v4710 = vpop.f32.mrf.mxu0
    %v4711 = vadd.f32 %v4338, %v4710
    %v4712 = vpop.f32.mrf.mxu0
    %v4713 = vpop.f32.mrf.mxu0
    %v4714 = vadd.f32 %v4338, %v4713
    %v4715 = vpop.f32.mrf.mxu0
    %4716 = vmatprep.mubr.bf16.mxu0 %v4218
    %4717 = vmatmul.mubr.bf16.gmra.mxu0 %v4217
    %v4718 = vpop.f32.mrf.mxu0
    %v4719 = vadd.f32 %v4338, %v4718
    %v4720 = vpop.f32.mrf.mxu0
    %v4721 = vpop.f32.mrf.mxu0
    %v4722 = vadd.f32 %v4338, %v4721
    %v4723 = vpop.f32.mrf.mxu0
    %4724 = vmatprep.mubr.bf16.mxu0 %v4222
    %4725 = vmatmul.mubr.bf16.gmra.mxu0 %v4221
    %v4726 = vpop.f32.mrf.mxu0
    %v4727 = vadd.f32 %v4338, %v4726
    %v4728 = vpop.f32.mrf.mxu0
    %v4729 = vpop.f32.mrf.mxu0
    %v4730 = vadd.f32 %v4338, %v4729
    %v4731 = vpop.f32.mrf.mxu0
    %4732 = vmatprep.mubr.bf16.mxu0 %v4226
    %4733 = vmatmul.mubr.bf16.gmra.mxu0 %v4225
    %v4734 = vpop.f32.mrf.mxu0
    %v4735 = vadd.f32 %v4338, %v4734
    %v4736 = vpop.f32.mrf.mxu0
    %v4737 = vpop.f32.mrf.mxu0
    %v4738 = vadd.f32 %v4338, %v4737
    %v4739 = vpop.f32.mrf.mxu0
    %4740 = vmatprep.mubr.bf16.mxu0 %v4230
    %4741 = vmatmul.mubr.bf16.gmra.mxu0 %v4229
    %v4742 = vpop.f32.mrf.mxu0
    %v4743 = vadd.f32 %v4338, %v4742
    %v4744 = vpop.f32.mrf.mxu0
    %v4745 = vpop.f32.mrf.mxu0
    %v4746 = vadd.f32 %v4338, %v4745
    %v4747 = vpop.f32.mrf.mxu0
    %4748 = vmatprep.mubr.bf16.mxu0 %v4234
    %4749 = vmatmul.mubr.bf16.gmra.mxu0 %v4233
    %v4750 = vpop.f32.mrf.mxu0
    %v4751 = vadd.f32 %v4338, %v4750
    %v4752 = vpop.f32.mrf.mxu0
    %v4753 = vpop.f32.mrf.mxu0
    %v4754 = vadd.f32 %v4338, %v4753
    %v4755 = vpop.f32.mrf.mxu0
    %4756 = vmatprep.mubr.bf16.mxu0 %v4238
    %4757 = vmatmul.mubr.bf16.gmra.mxu0 %v4237
    %v4758 = vpop.f32.mrf.mxu0
    %v4759 = vadd.f32 %v4338, %v4758
    %v4760 = vpop.f32.mrf.mxu0
    %v4761 = vpop.f32.mrf.mxu0
    %v4762 = vadd.f32 %v4338, %v4761
    %v4763 = vpop.f32.mrf.mxu0
    %4764 = vmatprep.mubr.bf16.mxu0 %v4242
    %4765 = vmatmul.mubr.bf16.gmra.mxu0 %v4241
    %v4766 = vpop.f32.mrf.mxu0
    %v4767 = vadd.f32 %v4338, %v4766
    %v4768 = vpop.f32.mrf.mxu0
    %v4769 = vpop.f32.mrf.mxu0
    %v4770 = vadd.f32 %v4338, %v4769
    %v4771 = vpop.f32.mrf.mxu0
    %4772 = vmatprep.mubr.bf16.mxu0 %v4246
    %4773 = vmatmul.mubr.bf16.gmra.mxu0 %v4245
    %v4774 = vpop.f32.mrf.mxu0
    %v4775 = vadd.f32 %v4338, %v4774
    %v4776 = vpop.f32.mrf.mxu0
    %v4777 = vpop.f32.mrf.mxu0
    %v4778 = vadd.f32 %v4338, %v4777
    %v4779 = vpop.f32.mrf.mxu0
    %4780 = vmatprep.mubr.bf16.mxu0 %v4250
    %4781 = vmatmul.mubr.bf16.gmra.mxu0 %v4249
    %v4782 = vpop.f32.mrf.mxu0
    %v4783 = vadd.f32 %v4338, %v4782
    %v4784 = vpop.f32.mrf.mxu0
    %v4785 = vpop.f32.mrf.mxu0
    %v4786 = vadd.f32 %v4338, %v4785
    %v4787 = vpop.f32.mrf.mxu0
    %4788 = vmatprep.mubr.bf16.mxu0 %v4254
    %4789 = vmatmul.mubr.bf16.gmra.mxu0 %v4253
    %v4790 = vpop.f32.mrf.mxu0
    %v4791 = vadd.f32 %v4338, %v4790
    %v4792 = vpop.f32.mrf.mxu0
    %v4793 = vpop.f32.mrf.mxu0
    %v4794 = vadd.f32 %v4338, %v4793
    %v4795 = vpop.f32.mrf.mxu0
    %4796 = vmatprep.mubr.bf16.mxu0 %v4258
    %4797 = vmatmul.mubr.bf16.gmra.mxu0 %v4257
    %v4798 = vpop.f32.mrf.mxu0
    %v4799 = vadd.f32 %v4338, %v4798
    %v4800 = vpop.f32.mrf.mxu0
    %v4801 = vpop.f32.mrf.mxu0
    %v4802 = vadd.f32 %v4338, %v4801
    %v4803 = vpop.f32.mrf.mxu0
    %4804 = vmatprep.mubr.bf16.mxu0 %v4262
    %4805 = vmatmul.mubr.bf16.gmra.mxu0 %v4261
    %v4806 = vpop.f32.mrf.mxu0
    %v4807 = vadd.f32 %v4338, %v4806
    %v4808 = vpop.f32.mrf.mxu0
    %v4809 = vpop.f32.mrf.mxu0
    %v4810 = vadd.f32 %v4338, %v4809
    %v4811 = vpop.f32.mrf.mxu0
    %4812 = vmatprep.mubr.bf16.mxu0 %v4266
    %4813 = vmatmul.mubr.bf16.gmra.mxu0 %v4265
    %v4814 = vpop.f32.mrf.mxu0
    %v4815 = vadd.f32 %v4338, %v4814
    %v4816 = vpop.f32.mrf.mxu0
    %v4817 = vpop.f32.mrf.mxu0
    %v4818 = vadd.f32 %v4338, %v4817
    %v4819 = vpop.f32.mrf.mxu0
    %4820 = vdwg.mxu0
    %4821 = vmatprep.subr.bf16.mxu0 0
    %4822 = vmatpush1.bf16.msra.mxu0 %v4491
    %4823 = vmatprep.subr.bf16.mxu0 0
    %4824 = vmatpush1.bf16.msra.mxu0 %v4490
    %4825 = vmatprep.subr.bf16.mxu0 0
    %4826 = vmatpush1.bf16.msra.mxu0 %v4489
    %4827 = vmatprep.subr.bf16.mxu0 0
    %4828 = vmatpush1.bf16.msra.mxu0 %v4488
    %4829 = vmatprep.subr.bf16.mxu0 0
    %4830 = vmatpush1.bf16.msra.mxu0 %v4487
    %4831 = vmatprep.subr.bf16.mxu0 0
    %4832 = vmatpush1.bf16.msra.mxu0 %v4486
    %4833 = vmatprep.subr.bf16.mxu0 0
    %4834 = vmatpush1.bf16.msra.mxu0 %v4485
    %4835 = vmatprep.subr.bf16.mxu0 0
    %4836 = vmatpush1.bf16.msra.mxu0 %v4484
    %4837 = vmatprep.subr.bf16.mxu0 0
    %4838 = vmatpush2.bf16.msra.mxu0 %v4499
    %4839 = vmatprep.subr.bf16.mxu0 0
    %4840 = vmatpush2.bf16.msra.mxu0 %v4498
    %4841 = vmatprep.subr.bf16.mxu0 0
    %4842 = vmatpush2.bf16.msra.mxu0 %v4497
    %4843 = vmatprep.subr.bf16.mxu0 0
    %4844 = vmatpush2.bf16.msra.mxu0 %v4496
    %4845 = vmatprep.subr.bf16.mxu0 0
    %4846 = vmatpush2.bf16.msra.mxu0 %v4495
    %4847 = vmatprep.subr.bf16.mxu0 0
    %4848 = vmatpush2.bf16.msra.mxu0 %v4494
    %4849 = vmatprep.subr.bf16.mxu0 0
    %4850 = vmatpush2.bf16.msra.mxu0 %v4493
    %4851 = vmatprep.subr.bf16.mxu0 0
    %4852 = vmatpush2.bf16.msra.mxu0 %v4492
    %4853 = vmatprep.mubr.bf16.mxu0 %v4144
    %4854 = vmatmul.mubr.bf16.gmra.mxu0 %v4143
    %v4855 = vpop.f32.mrf.mxu0
    %v4856 = vadd.f32 %v4567, %v4855
    %v4857 = vpop.f32.mrf.mxu0
    %v4858 = vpop.f32.mrf.mxu0
    %v4859 = vadd.f32 %v4570, %v4858
    %v4860 = vpop.f32.mrf.mxu0
    %4861 = vmatprep.mubr.bf16.mxu0 %v4148
    %4862 = vmatmul.mubr.bf16.gmra.mxu0 %v4147
    %v4863 = vpop.f32.mrf.mxu0
    %v4864 = vadd.f32 %v4575, %v4863
    %v4865 = vpop.f32.mrf.mxu0
    %v4866 = vpop.f32.mrf.mxu0
    %v4867 = vadd.f32 %v4578, %v4866
    %v4868 = vpop.f32.mrf.mxu0
    %4869 = vmatprep.mubr.bf16.mxu0 %v4152
    %4870 = vmatmul.mubr.bf16.gmra.mxu0 %v4151
    %v4871 = vpop.f32.mrf.mxu0
    %v4872 = vadd.f32 %v4583, %v4871
    %v4873 = vpop.f32.mrf.mxu0
    %v4874 = vpop.f32.mrf.mxu0
    %v4875 = vadd.f32 %v4586, %v4874
    %v4876 = vpop.f32.mrf.mxu0
    %4877 = vmatprep.mubr.bf16.mxu0 %v4156
    %4878 = vmatmul.mubr.bf16.gmra.mxu0 %v4155
    %v4879 = vpop.f32.mrf.mxu0
    %v4880 = vadd.f32 %v4591, %v4879
    %v4881 = vpop.f32.mrf.mxu0
    %v4882 = vpop.f32.mrf.mxu0
    %v4883 = vadd.f32 %v4594, %v4882
    %v4884 = vpop.f32.mrf.mxu0
    %4885 = vmatprep.mubr.bf16.mxu0 %v4160
    %4886 = vmatmul.mubr.bf16.gmra.mxu0 %v4159
    %v4887 = vpop.f32.mrf.mxu0
    %v4888 = vadd.f32 %v4599, %v4887
    %v4889 = vpop.f32.mrf.mxu0
    %v4890 = vpop.f32.mrf.mxu0
    %v4891 = vadd.f32 %v4602, %v4890
    %v4892 = vpop.f32.mrf.mxu0
    %4893 = vmatprep.mubr.bf16.mxu0 %v4164
    %4894 = vmatmul.mubr.bf16.gmra.mxu0 %v4163
    %v4895 = vpop.f32.mrf.mxu0
    %v4896 = vadd.f32 %v4607, %v4895
    %v4897 = vpop.f32.mrf.mxu0
    %v4898 = vpop.f32.mrf.mxu0
    %v4899 = vadd.f32 %v4610, %v4898
    %v4900 = vpop.f32.mrf.mxu0
    %4901 = vmatprep.mubr.bf16.mxu0 %v4168
    %4902 = vmatmul.mubr.bf16.gmra.mxu0 %v4167
    %v4903 = vpop.f32.mrf.mxu0
    %v4904 = vadd.f32 %v4615, %v4903
    %v4905 = vpop.f32.mrf.mxu0
    %v4906 = vpop.f32.mrf.mxu0
    %v4907 = vadd.f32 %v4618, %v4906
    %v4908 = vpop.f32.mrf.mxu0
    %4909 = vmatprep.mubr.bf16.mxu0 %v4172
    %4910 = vmatmul.mubr.bf16.gmra.mxu0 %v4171
    %v4911 = vpop.f32.mrf.mxu0
    %v4912 = vadd.f32 %v4623, %v4911
    %v4913 = vpop.f32.mrf.mxu0
    %v4914 = vpop.f32.mrf.mxu0
    %v4915 = vadd.f32 %v4626, %v4914
    %v4916 = vpop.f32.mrf.mxu0
    %4917 = vmatprep.mubr.bf16.mxu0 %v4176
    %4918 = vmatmul.mubr.bf16.gmra.mxu0 %v4175
    %v4919 = vpop.f32.mrf.mxu0
    %v4920 = vadd.f32 %v4631, %v4919
    %v4921 = vpop.f32.mrf.mxu0
    %v4922 = vpop.f32.mrf.mxu0
    %v4923 = vadd.f32 %v4634, %v4922
    %v4924 = vpop.f32.mrf.mxu0
    %4925 = vmatprep.mubr.bf16.mxu0 %v4180
    %4926 = vmatmul.mubr.bf16.gmra.mxu0 %v4179
    %v4927 = vpop.f32.mrf.mxu0
    %v4928 = vadd.f32 %v4639, %v4927
    %v4929 = vpop.f32.mrf.mxu0
    %v4930 = vpop.f32.mrf.mxu0
    %v4931 = vadd.f32 %v4642, %v4930
    %v4932 = vpop.f32.mrf.mxu0
    %4933 = vmatprep.mubr.bf16.mxu0 %v4184
    %4934 = vmatmul.mubr.bf16.gmra.mxu0 %v4183
    %v4935 = vpop.f32.mrf.mxu0
    %v4936 = vadd.f32 %v4647, %v4935
    %v4937 = vpop.f32.mrf.mxu0
    %v4938 = vpop.f32.mrf.mxu0
    %v4939 = vadd.f32 %v4650, %v4938
    %v4940 = vpop.f32.mrf.mxu0
    %4941 = vmatprep.mubr.bf16.mxu0 %v4188
    %4942 = vmatmul.mubr.bf16.gmra.mxu0 %v4187
    %v4943 = vpop.f32.mrf.mxu0
    %v4944 = vadd.f32 %v4655, %v4943
    %v4945 = vpop.f32.mrf.mxu0
    %v4946 = vpop.f32.mrf.mxu0
    %v4947 = vadd.f32 %v4658, %v4946
    %v4948 = vpop.f32.mrf.mxu0
    %4949 = vmatprep.mubr.bf16.mxu0 %v4192
    %4950 = vmatmul.mubr.bf16.gmra.mxu0 %v4191
    %v4951 = vpop.f32.mrf.mxu0
    %v4952 = vadd.f32 %v4663, %v4951
    %v4953 = vpop.f32.mrf.mxu0
    %v4954 = vpop.f32.mrf.mxu0
    %v4955 = vadd.f32 %v4666, %v4954
    %v4956 = vpop.f32.mrf.mxu0
    %4957 = vmatprep.mubr.bf16.mxu0 %v4196
    %4958 = vmatmul.mubr.bf16.gmra.mxu0 %v4195
    %v4959 = vpop.f32.mrf.mxu0
    %v4960 = vadd.f32 %v4671, %v4959
    %v4961 = vpop.f32.mrf.mxu0
    %v4962 = vpop.f32.mrf.mxu0
    %v4963 = vadd.f32 %v4674, %v4962
    %v4964 = vpop.f32.mrf.mxu0
    %4965 = vmatprep.mubr.bf16.mxu0 %v4200
    %4966 = vmatmul.mubr.bf16.gmra.mxu0 %v4199
    %v4967 = vpop.f32.mrf.mxu0
    %v4968 = vadd.f32 %v4679, %v4967
    %v4969 = vpop.f32.mrf.mxu0
    %v4970 = vpop.f32.mrf.mxu0
    %v4971 = vadd.f32 %v4682, %v4970
    %v4972 = vpop.f32.mrf.mxu0
    %4973 = vmatprep.mubr.bf16.mxu0 %v4204
    %4974 = vmatmul.mubr.bf16.gmra.mxu0 %v4203
    %v4975 = vpop.f32.mrf.mxu0
    %v4976 = vadd.f32 %v4687, %v4975
    %v4977 = vpop.f32.mrf.mxu0
    %v4978 = vpop.f32.mrf.mxu0
    %v4979 = vadd.f32 %v4690, %v4978
    %v4980 = vpop.f32.mrf.mxu0
    %4981 = vmatprep.mubr.bf16.mxu0 %v4208
    %4982 = vmatmul.mubr.bf16.gmra.mxu0 %v4207
    %v4983 = vpop.f32.mrf.mxu0
    %v4984 = vadd.f32 %v4695, %v4983
    %v4985 = vpop.f32.mrf.mxu0
    %v4986 = vpop.f32.mrf.mxu0
    %v4987 = vadd.f32 %v4698, %v4986
    %v4988 = vpop.f32.mrf.mxu0
    %4989 = vmatprep.mubr.bf16.mxu0 %v4212
    %4990 = vmatmul.mubr.bf16.gmra.mxu0 %v4211
    %v4991 = vpop.f32.mrf.mxu0
    %v4992 = vadd.f32 %v4703, %v4991
    %v4993 = vpop.f32.mrf.mxu0
    %v4994 = vpop.f32.mrf.mxu0
    %v4995 = vadd.f32 %v4706, %v4994
    %v4996 = vpop.f32.mrf.mxu0
    %4997 = vmatprep.mubr.bf16.mxu0 %v4216
    %4998 = vmatmul.mubr.bf16.gmra.mxu0 %v4215
    %v4999 = vpop.f32.mrf.mxu0
    %v5000 = vadd.f32 %v4711, %v4999
    %v5001 = vpop.f32.mrf.mxu0
    %v5002 = vpop.f32.mrf.mxu0
    %v5003 = vadd.f32 %v4714, %v5002
    %v5004 = vpop.f32.mrf.mxu0
    %5005 = vmatprep.mubr.bf16.mxu0 %v4220
    %5006 = vmatmul.mubr.bf16.gmra.mxu0 %v4219
    %v5007 = vpop.f32.mrf.mxu0
    %v5008 = vadd.f32 %v4719, %v5007
    %v5009 = vpop.f32.mrf.mxu0
    %v5010 = vpop.f32.mrf.mxu0
    %v5011 = vadd.f32 %v4722, %v5010
    %v5012 = vpop.f32.mrf.mxu0
    %5013 = vmatprep.mubr.bf16.mxu0 %v4224
    %5014 = vmatmul.mubr.bf16.gmra.mxu0 %v4223
    %v5015 = vpop.f32.mrf.mxu0
    %v5016 = vadd.f32 %v4727, %v5015
    %v5017 = vpop.f32.mrf.mxu0
    %v5018 = vpop.f32.mrf.mxu0
    %v5019 = vadd.f32 %v4730, %v5018
    %v5020 = vpop.f32.mrf.mxu0
    %5021 = vmatprep.mubr.bf16.mxu0 %v4228
    %5022 = vmatmul.mubr.bf16.gmra.mxu0 %v4227
    %v5023 = vpop.f32.mrf.mxu0
    %v5024 = vadd.f32 %v4735, %v5023
    %v5025 = vpop.f32.mrf.mxu0
    %v5026 = vpop.f32.mrf.mxu0
    %v5027 = vadd.f32 %v4738, %v5026
    %v5028 = vpop.f32.mrf.mxu0
    %5029 = vmatprep.mubr.bf16.mxu0 %v4232
    %5030 = vmatmul.mubr.bf16.gmra.mxu0 %v4231
    %v5031 = vpop.f32.mrf.mxu0
    %v5032 = vadd.f32 %v4743, %v5031
    %v5033 = vpop.f32.mrf.mxu0
    %v5034 = vpop.f32.mrf.mxu0
    %v5035 = vadd.f32 %v4746, %v5034
    %v5036 = vpop.f32.mrf.mxu0
    %5037 = vmatprep.mubr.bf16.mxu0 %v4236
    %5038 = vmatmul.mubr.bf16.gmra.mxu0 %v4235
    %v5039 = vpop.f32.mrf.mxu0
    %v5040 = vadd.f32 %v4751, %v5039
    %v5041 = vpop.f32.mrf.mxu0
    %v5042 = vpop.f32.mrf.mxu0
    %v5043 = vadd.f32 %v4754, %v5042
    %v5044 = vpop.f32.mrf.mxu0
    %5045 = vmatprep.mubr.bf16.mxu0 %v4240
    %5046 = vmatmul.mubr.bf16.gmra.mxu0 %v4239
    %v5047 = vpop.f32.mrf.mxu0
    %v5048 = vadd.f32 %v4759, %v5047
    %v5049 = vpop.f32.mrf.mxu0
    %v5050 = vpop.f32.mrf.mxu0
    %v5051 = vadd.f32 %v4762, %v5050
    %v5052 = vpop.f32.mrf.mxu0
    %5053 = vmatprep.mubr.bf16.mxu0 %v4244
    %5054 = vmatmul.mubr.bf16.gmra.mxu0 %v4243
    %v5055 = vpop.f32.mrf.mxu0
    %v5056 = vadd.f32 %v4767, %v5055
    %v5057 = vpop.f32.mrf.mxu0
    %v5058 = vpop.f32.mrf.mxu0
    %v5059 = vadd.f32 %v4770, %v5058
    %v5060 = vpop.f32.mrf.mxu0
    %5061 = vmatprep.mubr.bf16.mxu0 %v4248
    %5062 = vmatmul.mubr.bf16.gmra.mxu0 %v4247
    %v5063 = vpop.f32.mrf.mxu0
    %v5064 = vadd.f32 %v4775, %v5063
    %v5065 = vpop.f32.mrf.mxu0
    %v5066 = vpop.f32.mrf.mxu0
    %v5067 = vadd.f32 %v4778, %v5066
    %v5068 = vpop.f32.mrf.mxu0
    %5069 = vmatprep.mubr.bf16.mxu0 %v4252
    %5070 = vmatmul.mubr.bf16.gmra.mxu0 %v4251
    %v5071 = vpop.f32.mrf.mxu0
    %v5072 = vadd.f32 %v4783, %v5071
    %v5073 = vpop.f32.mrf.mxu0
    %v5074 = vpop.f32.mrf.mxu0
    %v5075 = vadd.f32 %v4786, %v5074
    %v5076 = vpop.f32.mrf.mxu0
    %5077 = vmatprep.mubr.bf16.mxu0 %v4256
    %5078 = vmatmul.mubr.bf16.gmra.mxu0 %v4255
    %v5079 = vpop.f32.mrf.mxu0
    %v5080 = vadd.f32 %v4791, %v5079
    %v5081 = vpop.f32.mrf.mxu0
    %v5082 = vpop.f32.mrf.mxu0
    %v5083 = vadd.f32 %v4794, %v5082
    %v5084 = vpop.f32.mrf.mxu0
    %5085 = vmatprep.mubr.bf16.mxu0 %v4260
    %5086 = vmatmul.mubr.bf16.gmra.mxu0 %v4259
    %v5087 = vpop.f32.mrf.mxu0
    %v5088 = vadd.f32 %v4799, %v5087
    %v5089 = vpop.f32.mrf.mxu0
    %v5090 = vpop.f32.mrf.mxu0
    %v5091 = vadd.f32 %v4802, %v5090
    %v5092 = vpop.f32.mrf.mxu0
    %5093 = vmatprep.mubr.bf16.mxu0 %v4264
    %5094 = vmatmul.mubr.bf16.gmra.mxu0 %v4263
    %v5095 = vpop.f32.mrf.mxu0
    %v5096 = vadd.f32 %v4807, %v5095
    %v5097 = vpop.f32.mrf.mxu0
    %v5098 = vpop.f32.mrf.mxu0
    %v5099 = vadd.f32 %v4810, %v5098
    %v5100 = vpop.f32.mrf.mxu0
    %5101 = vmatprep.mubr.bf16.mxu0 %v4268
    %5102 = vmatmul.mubr.bf16.gmra.mxu0 %v4267
    %v5103 = vpop.f32.mrf.mxu0
    %v5104 = vadd.f32 %v4815, %v5103
    %v5105 = vpop.f32.mrf.mxu0
    %v5106 = vpop.f32.mrf.mxu0
    %v5107 = vadd.f32 %v4818, %v5106
    %v5108 = vpop.f32.mrf.mxu0
    %5109 = vdwg.mxu0
    %v5110 = vmax.f32 %v4856, 0.0
    %v5111 = vmax.f32 %v4859, 0.0
    %v5112 = vmax.f32 %v4864, 0.0
    %v5113 = vmax.f32 %v4867, 0.0
    %v5114 = vmax.f32 %v4872, 0.0
    %v5115 = vmax.f32 %v4875, 0.0
    %v5116 = vmax.f32 %v4880, 0.0
    %v5117 = vmax.f32 %v4883, 0.0
    %v5118 = vmax.f32 %v4888, 0.0
    %v5119 = vmax.f32 %v4891, 0.0
    %v5120 = vmax.f32 %v4896, 0.0
    %v5121 = vmax.f32 %v4899, 0.0
    %v5122 = vmax.f32 %v4904, 0.0
    %v5123 = vmax.f32 %v4907, 0.0
    %v5124 = vmax.f32 %v4912, 0.0
    %v5125 = vmax.f32 %v4915, 0.0
    %v5126 = vmax.f32 %v4920, 0.0
    %v5127 = vmax.f32 %v4923, 0.0
    %v5128 = vmax.f32 %v4928, 0.0
    %v5129 = vmax.f32 %v4931, 0.0
    %v5130 = vmax.f32 %v4936, 0.0
    %v5131 = vmax.f32 %v4939, 0.0
    %v5132 = vmax.f32 %v4944, 0.0
    %v5133 = vmax.f32 %v4947, 0.0
    %v5134 = vmax.f32 %v4952, 0.0
    %v5135 = vmax.f32 %v4955, 0.0
    %v5136 = vmax.f32 %v4960, 0.0
    %v5137 = vmax.f32 %v4963, 0.0
    %v5138 = vmax.f32 %v4968, 0.0
    %v5139 = vmax.f32 %v4971, 0.0
    %v5140 = vmax.f32 %v4976, 0.0
    %v5141 = vmax.f32 %v4979, 0.0
    %v5142 = vmax.f32 %v4984, 0.0
    %v5143 = vmax.f32 %v4987, 0.0
    %v5144 = vmax.f32 %v4992, 0.0
    %v5145 = vmax.f32 %v4995, 0.0
    %v5146 = vmax.f32 %v5000, 0.0
    %v5147 = vmax.f32 %v5003, 0.0
    %v5148 = vmax.f32 %v5008, 0.0
    %v5149 = vmax.f32 %v5011, 0.0
    %v5150 = vmax.f32 %v5016, 0.0
    %v5151 = vmax.f32 %v5019, 0.0
    %v5152 = vmax.f32 %v5024, 0.0
    %v5153 = vmax.f32 %v5027, 0.0
    %v5154 = vmax.f32 %v5032, 0.0
    %v5155 = vmax.f32 %v5035, 0.0
    %v5156 = vmax.f32 %v5040, 0.0
    %v5157 = vmax.f32 %v5043, 0.0
    %v5158 = vmax.f32 %v5048, 0.0
    %v5159 = vmax.f32 %v5051, 0.0
    %v5160 = vmax.f32 %v5056, 0.0
    %v5161 = vmax.f32 %v5059, 0.0
    %v5162 = vmax.f32 %v5064, 0.0
    %v5163 = vmax.f32 %v5067, 0.0
    %v5164 = vmax.f32 %v5072, 0.0
    %v5165 = vmax.f32 %v5075, 0.0
    %v5166 = vmax.f32 %v5080, 0.0
    %v5167 = vmax.f32 %v5083, 0.0
    %v5168 = vmax.f32 %v5088, 0.0
    %v5169 = vmax.f32 %v5091, 0.0
    %v5170 = vmax.f32 %v5096, 0.0
    %v5171 = vmax.f32 %v5099, 0.0
    %v5172 = vmax.f32 %v5104, 0.0
    %v5173 = vmax.f32 %v5107, 0.0
    %v5174 = vpack.c.bf16 %v5111, %v5110
    %v5175 = vpack.c.bf16 %v5113, %v5112
    %v5176 = vpack.c.bf16 %v5115, %v5114
    %v5177 = vpack.c.bf16 %v5117, %v5116
    %v5178 = vpack.c.bf16 %v5119, %v5118
    %v5179 = vpack.c.bf16 %v5121, %v5120
    %v5180 = vpack.c.bf16 %v5123, %v5122
    %v5181 = vpack.c.bf16 %v5125, %v5124
    %v5182 = vpack.c.bf16 %v5127, %v5126
    %v5183 = vpack.c.bf16 %v5129, %v5128
    %v5184 = vpack.c.bf16 %v5131, %v5130
    %v5185 = vpack.c.bf16 %v5133, %v5132
    %v5186 = vpack.c.bf16 %v5135, %v5134
    %v5187 = vpack.c.bf16 %v5137, %v5136
    %v5188 = vpack.c.bf16 %v5139, %v5138
    %v5189 = vpack.c.bf16 %v5141, %v5140
    %v5190 = vpack.c.bf16 %v5143, %v5142
    %v5191 = vpack.c.bf16 %v5145, %v5144
    %v5192 = vpack.c.bf16 %v5147, %v5146
    %v5193 = vpack.c.bf16 %v5149, %v5148
    %v5194 = vpack.c.bf16 %v5151, %v5150
    %v5195 = vpack.c.bf16 %v5153, %v5152
    %v5196 = vpack.c.bf16 %v5155, %v5154
    %v5197 = vpack.c.bf16 %v5157, %v5156
    %v5198 = vpack.c.bf16 %v5159, %v5158
    %v5199 = vpack.c.bf16 %v5161, %v5160
    %v5200 = vpack.c.bf16 %v5163, %v5162
    %v5201 = vpack.c.bf16 %v5165, %v5164
    %v5202 = vpack.c.bf16 %v5167, %v5166
    %v5203 = vpack.c.bf16 %v5169, %v5168
    %v5204 = vpack.c.bf16 %v5171, %v5170
    %v5205 = vpack.c.bf16 %v5173, %v5172
    %v5206 = vmax.bf16 %v5174, %v5175
    %v5207 = vmax.bf16 %v5206, %v5176
    %v5208 = vmax.bf16 %v5207, %v5177
    %v5209 = vunpack.i.l.bf16 %v5208
    %v5210 = vunpack.i.h.bf16 %v5208
    %v5211 = vmax.f32 %v5209, %v5210
    %v5212 = vrot.slane %v5211, 4
    %v5213 = vmax.f32 %v5211, %v5212
    %v5214 = vrot.slane %v5213, 2
    %v5215 = vmax.f32 %v5213, %v5214
    %v5216 = vrot.slane %v5215, 1
    %v5217 = vmax.f32 %v5215, %v5216
    %v5218 = vpack.i.bf16 %v5217, %v5217
    %v5219 = vmax.bf16 %v5178, %v5179
    %v5220 = vmax.bf16 %v5219, %v5180
    %v5221 = vmax.bf16 %v5220, %v5181
    %v5222 = vunpack.i.l.bf16 %v5221
    %v5223 = vunpack.i.h.bf16 %v5221
    %v5224 = vmax.f32 %v5222, %v5223
    %v5225 = vrot.slane %v5224, 4
    %v5226 = vmax.f32 %v5224, %v5225
    %v5227 = vrot.slane %v5226, 2
    %v5228 = vmax.f32 %v5226, %v5227
    %v5229 = vrot.slane %v5228, 1
    %v5230 = vmax.f32 %v5228, %v5229
    %v5231 = vpack.i.bf16 %v5230, %v5230
    %v5232 = vmax.bf16 %v5182, %v5183
    %v5233 = vmax.bf16 %v5232, %v5184
    %v5234 = vmax.bf16 %v5233, %v5185
    %v5235 = vunpack.i.l.bf16 %v5234
    %v5236 = vunpack.i.h.bf16 %v5234
    %v5237 = vmax.f32 %v5235, %v5236
    %v5238 = vrot.slane %v5237, 4
    %v5239 = vmax.f32 %v5237, %v5238
    %v5240 = vrot.slane %v5239, 2
    %v5241 = vmax.f32 %v5239, %v5240
    %v5242 = vrot.slane %v5241, 1
    %v5243 = vmax.f32 %v5241, %v5242
    %v5244 = vpack.i.bf16 %v5243, %v5243
    %v5245 = vmax.bf16 %v5186, %v5187
    %v5246 = vmax.bf16 %v5245, %v5188
    %v5247 = vmax.bf16 %v5246, %v5189
    %v5248 = vunpack.i.l.bf16 %v5247
    %v5249 = vunpack.i.h.bf16 %v5247
    %v5250 = vmax.f32 %v5248, %v5249
    %v5251 = vrot.slane %v5250, 4
    %v5252 = vmax.f32 %v5250, %v5251
    %v5253 = vrot.slane %v5252, 2
    %v5254 = vmax.f32 %v5252, %v5253
    %v5255 = vrot.slane %v5254, 1
    %v5256 = vmax.f32 %v5254, %v5255
    %v5257 = vpack.i.bf16 %v5256, %v5256
    %v5258 = vmax.bf16 %v5190, %v5191
    %v5259 = vmax.bf16 %v5258, %v5192
    %v5260 = vmax.bf16 %v5259, %v5193
    %v5261 = vunpack.i.l.bf16 %v5260
    %v5262 = vunpack.i.h.bf16 %v5260
    %v5263 = vmax.f32 %v5261, %v5262
    %v5264 = vrot.slane %v5263, 4
    %v5265 = vmax.f32 %v5263, %v5264
    %v5266 = vrot.slane %v5265, 2
    %v5267 = vmax.f32 %v5265, %v5266
    %v5268 = vrot.slane %v5267, 1
    %v5269 = vmax.f32 %v5267, %v5268
    %v5270 = vpack.i.bf16 %v5269, %v5269
    %v5271 = vmax.bf16 %v5194, %v5195
    %v5272 = vmax.bf16 %v5271, %v5196
    %v5273 = vmax.bf16 %v5272, %v5197
    %v5274 = vunpack.i.l.bf16 %v5273
    %v5275 = vunpack.i.h.bf16 %v5273
    %v5276 = vmax.f32 %v5274, %v5275
    %v5277 = vrot.slane %v5276, 4
    %v5278 = vmax.f32 %v5276, %v5277
    %v5279 = vrot.slane %v5278, 2
    %v5280 = vmax.f32 %v5278, %v5279
    %v5281 = vrot.slane %v5280, 1
    %v5282 = vmax.f32 %v5280, %v5281
    %v5283 = vpack.i.bf16 %v5282, %v5282
    %v5284 = vmax.bf16 %v5198, %v5199
    %v5285 = vmax.bf16 %v5284, %v5200
    %v5286 = vmax.bf16 %v5285, %v5201
    %v5287 = vunpack.i.l.bf16 %v5286
    %v5288 = vunpack.i.h.bf16 %v5286
    %v5289 = vmax.f32 %v5287, %v5288
    %v5290 = vrot.slane %v5289, 4
    %v5291 = vmax.f32 %v5289, %v5290
    %v5292 = vrot.slane %v5291, 2
    %v5293 = vmax.f32 %v5291, %v5292
    %v5294 = vrot.slane %v5293, 1
    %v5295 = vmax.f32 %v5293, %v5294
    %v5296 = vpack.i.bf16 %v5295, %v5295
    %v5297 = vmax.bf16 %v5202, %v5203
    %v5298 = vmax.bf16 %v5297, %v5204
    %v5299 = vmax.bf16 %v5298, %v5205
    %v5300 = vunpack.i.l.bf16 %v5299
    %v5301 = vunpack.i.h.bf16 %v5299
    %v5302 = vmax.f32 %v5300, %v5301
    %v5303 = vrot.slane %v5302, 4
    %v5304 = vmax.f32 %v5302, %v5303
    %v5305 = vrot.slane %v5304, 2
    %v5306 = vmax.f32 %v5304, %v5305
    %v5307 = vrot.slane %v5306, 1
    %v5308 = vmax.f32 %v5306, %v5307
    %v5309 = vpack.i.bf16 %v5308, %v5308
    %v5310 = vld [vmem:[#allocation15] sm:$0xf]
    %v5311 = vld [vmem:[#allocation15 + $0x4] sm:$0xf]
    %v5312 = vld [vmem:[#allocation15 + $0x8] sm:$0xf]
    %v5313 = vld [vmem:[#allocation15 + $0xc] sm:$0xf]
    %v5314 = vld [vmem:[#allocation15 + $0x10] sm:$0xf]
    %v5315 = vld [vmem:[#allocation15 + $0x14] sm:$0xf]
    %v5316 = vld [vmem:[#allocation15 + $0x18] sm:$0xf]
    %v5317 = vld [vmem:[#allocation15 + $0x1c] sm:$0xf]
    %v5318 = vld [vmem:[#allocation15 + $0x20] sm:$0xf]
    %v5319 = vld [vmem:[#allocation15 + $0x24] sm:$0xf]
    %v5320 = vld [vmem:[#allocation15 + $0x28] sm:$0xf]
    %v5321 = vld [vmem:[#allocation15 + $0x2c] sm:$0xf]
    %v5322 = vld [vmem:[#allocation15 + $0x30] sm:$0xf]
    %v5323 = vld [vmem:[#allocation15 + $0x34] sm:$0xf]
    %v5324 = vld [vmem:[#allocation15 + $0x38] sm:$0xf]
    %v5325 = vld [vmem:[#allocation15 + $0x3c] sm:$0xf]
    %v5326 = vld [vmem:[%s12] sm:$0x1]
    %v5328 = vlaneseq
    %v5329 = vshrl.u32 %v5328, 7
    %v5330 = vsub.s32 0, %v5329
    %v5331 = vrot.slane %v5326, %v5330
    %v5341 = vunpack.c.l.b16 %v5218
    %v5342 = vunpack.c.l.b16 %v5231
    %v5343 = vunpack.c.l.b16 %v5244
    %v5344 = vunpack.c.l.b16 %v5257
    %v5345 = vunpack.c.l.b16 %v5270
    %v5346 = vunpack.c.l.b16 %v5283
    %v5347 = vunpack.c.l.b16 %v5296
    %v5348 = vunpack.c.l.b16 %v5309
    %vm5349 = vcmask 1041409
    %v5350 = vsel %vm5349, %v5342, %v5341
    %vm5351 = vcmask 1042434
    %v5352 = vsel %vm5351, %v5343, %v5350
    %vm5353 = vcmask 1043459
    %v5354 = vsel %vm5353, %v5344, %v5352
    %vm5355 = vcmask 1044484
    %v5356 = vsel %vm5355, %v5345, %v5354
    %vm5357 = vcmask 1045509
    %v5358 = vsel %vm5357, %v5346, %v5356
    %vm5359 = vcmask 1046534
    %v5360 = vsel %vm5359, %v5347, %v5358
    %vm5361 = vcmask 1047559
    %v5362 = vsel %vm5361, %v5348, %v5360
    %v5363 = vpack.c.b16 %v5362, %v5362
    %v5381 = vunpack.c.l.b16 %v5310
    %v5382 = vunpack.c.l.b16 %v5311
    %v5383 = vunpack.c.l.b16 %v5312
    %v5384 = vunpack.c.l.b16 %v5313
    %v5385 = vunpack.c.l.b16 %v5314
    %v5386 = vunpack.c.l.b16 %v5315
    %v5387 = vunpack.c.l.b16 %v5316
    %v5388 = vunpack.c.l.b16 %v5317
    %v5389 = vunpack.c.l.b16 %v5318
    %v5390 = vunpack.c.l.b16 %v5319
    %v5391 = vunpack.c.l.b16 %v5320
    %v5392 = vunpack.c.l.b16 %v5321
    %v5393 = vunpack.c.l.b16 %v5322
    %v5394 = vunpack.c.l.b16 %v5323
    %v5395 = vunpack.c.l.b16 %v5324
    %v5396 = vunpack.c.l.b16 %v5325
    %v5397 = vpack.c.b16 %v5382, %v5381
    %v5398 = vpack.c.b16 %v5384, %v5383
    %v5399 = vpack.c.b16 %v5386, %v5385
    %v5400 = vpack.c.b16 %v5388, %v5387
    %v5401 = vpack.c.b16 %v5390, %v5389
    %v5402 = vpack.c.b16 %v5392, %v5391
    %v5403 = vpack.c.b16 %v5394, %v5393
    %v5404 = vpack.c.b16 %v5396, %v5395
    %5413 = vmatprep.subr.bf16.mxu0 0
    %5414 = vmatpush1.bf16.msra.mxu0 %v5404
    %5415 = vmatprep.subr.bf16.mxu0 0
    %5416 = vmatpush1.bf16.msra.mxu0 %v5403
    %5417 = vmatprep.subr.bf16.mxu0 0
    %5418 = vmatpush1.bf16.msra.mxu0 %v5402
    %5419 = vmatprep.subr.bf16.mxu0 0
    %5420 = vmatpush1.bf16.msra.mxu0 %v5401
    %5421 = vmatprep.subr.bf16.mxu0 0
    %5422 = vmatpush1.bf16.msra.mxu0 %v5400
    %5423 = vmatprep.subr.bf16.mxu0 0
    %5424 = vmatpush1.bf16.msra.mxu0 %v5399
    %5425 = vmatprep.subr.bf16.mxu0 0
    %5426 = vmatpush1.bf16.msra.mxu0 %v5398
    %5427 = vmatprep.subr.bf16.mxu0 0
    %5428 = vmatpush1.bf16.msra.mxu0 %v5397
    %5429 = vmatprep.subr.bf16.mxu0 0
    %5430 = vmatpush2.bf16.msra.mxu0 0
    %5431 = vmatprep.subr.bf16.mxu0 0
    %5432 = vmatpush2.bf16.msra.mxu0 0
    %5433 = vmatprep.subr.bf16.mxu0 0
    %5434 = vmatpush2.bf16.msra.mxu0 0
    %5435 = vmatprep.subr.bf16.mxu0 0
    %5436 = vmatpush2.bf16.msra.mxu0 0
    %5437 = vmatprep.subr.bf16.mxu0 0
    %5438 = vmatpush2.bf16.msra.mxu0 0
    %5439 = vmatprep.subr.bf16.mxu0 0
    %5440 = vmatpush2.bf16.msra.mxu0 0
    %5441 = vmatprep.subr.bf16.mxu0 0
    %5442 = vmatpush2.bf16.msra.mxu0 0
    %5443 = vmatprep.subr.bf16.mxu0 0
    %5444 = vmatpush2.bf16.msra.mxu0 0
    %5445 = vmatprep.mubr.bf16.mxu0 0
    %5446 = vmatmul.mubr.bf16.gmra.mxu0 %v5363
    %v5447 = vpop.f32.mrf.mxu0
    %v5448 = vadd.f32 %v5331, %v5447
    %v5449 = vpop.f32.mrf.mxu0
    %v5450 = vpop.f32.mrf.mxu0
    %v5451 = vpop.f32.mrf.mxu0
    %5452 = vdwg.mxu0
    %v5453 = vmax.f32 %v5448, 0.0
    %v5454 = vpack.c.bf16 %v5453, %v5453
    %v5455 = vld [vmem:[#allocation17] sm:$0xf]
    %v5456 = vld [vmem:[#allocation17 + $0x4] sm:$0xf]
    %v5457 = vld [vmem:[#allocation17 + $0x8] sm:$0xf]
    %v5458 = vld [vmem:[#allocation17 + $0xc] sm:$0xf]
    %v5459 = vld [vmem:[#allocation17 + $0x10] sm:$0xf]
    %v5460 = vld [vmem:[#allocation17 + $0x14] sm:$0xf]
    %v5461 = vld [vmem:[#allocation17 + $0x18] sm:$0xf]
    %v5462 = vld [vmem:[#allocation17 + $0x1c] sm:$0xf]
    %v5463 = vld [vmem:[#allocation17 + $0x20] sm:$0xf]
    %v5464 = vld [vmem:[#allocation17 + $0x24] sm:$0xf]
    %v5465 = vld [vmem:[#allocation17 + $0x28] sm:$0xf]
    %v5466 = vld [vmem:[#allocation17 + $0x2c] sm:$0xf]
    %v5467 = vld [vmem:[#allocation17 + $0x30] sm:$0xf]
    %v5468 = vld [vmem:[#allocation17 + $0x34] sm:$0xf]
    %v5469 = vld [vmem:[#allocation17 + $0x38] sm:$0xf]
    %v5470 = vld [vmem:[#allocation17 + $0x3c] sm:$0xf]
    %v5471 = vld [vmem:[%s14] sm:$0x1]
    %v5473 = vlaneseq
    %v5474 = vshrl.u32 %v5473, 7
    %v5475 = vsub.s32 0, %v5474
    %v5476 = vrot.slane %v5471, %v5475
    %v5494 = vunpack.c.l.b16 %v5455
    %v5495 = vunpack.c.l.b16 %v5456
    %v5496 = vunpack.c.l.b16 %v5457
    %v5497 = vunpack.c.l.b16 %v5458
    %v5498 = vunpack.c.l.b16 %v5459
    %v5499 = vunpack.c.l.b16 %v5460
    %v5500 = vunpack.c.l.b16 %v5461
    %v5501 = vunpack.c.l.b16 %v5462
    %v5502 = vunpack.c.l.b16 %v5463
    %v5503 = vunpack.c.l.b16 %v5464
    %v5504 = vunpack.c.l.b16 %v5465
    %v5505 = vunpack.c.l.b16 %v5466
    %v5506 = vunpack.c.l.b16 %v5467
    %v5507 = vunpack.c.l.b16 %v5468
    %v5508 = vunpack.c.l.b16 %v5469
    %v5509 = vunpack.c.l.b16 %v5470
    %v5510 = vpack.c.b16 %v5495, %v5494
    %v5511 = vpack.c.b16 %v5497, %v5496
    %v5512 = vpack.c.b16 %v5499, %v5498
    %v5513 = vpack.c.b16 %v5501, %v5500
    %v5514 = vpack.c.b16 %v5503, %v5502
    %v5515 = vpack.c.b16 %v5505, %v5504
    %v5516 = vpack.c.b16 %v5507, %v5506
    %v5517 = vpack.c.b16 %v5509, %v5508
    %5526 = vmatprep.subr.bf16.mxu0 0
    %5527 = vmatpush1.bf16.msra.mxu0 %v5517
    %5528 = vmatprep.subr.bf16.mxu0 0
    %5529 = vmatpush1.bf16.msra.mxu0 %v5516
    %5530 = vmatprep.subr.bf16.mxu0 0
    %5531 = vmatpush1.bf16.msra.mxu0 %v5515
    %5532 = vmatprep.subr.bf16.mxu0 0
    %5533 = vmatpush1.bf16.msra.mxu0 %v5514
    %5534 = vmatprep.subr.bf16.mxu0 0
    %5535 = vmatpush1.bf16.msra.mxu0 %v5513
    %5536 = vmatprep.subr.bf16.mxu0 0
    %5537 = vmatpush1.bf16.msra.mxu0 %v5512
    %5538 = vmatprep.subr.bf16.mxu0 0
    %5539 = vmatpush1.bf16.msra.mxu0 %v5511
    %5540 = vmatprep.subr.bf16.mxu0 0
    %5541 = vmatpush1.bf16.msra.mxu0 %v5510
    %5542 = vmatprep.subr.bf16.mxu0 0
    %5543 = vmatpush2.bf16.msra.mxu0 0
    %5544 = vmatprep.subr.bf16.mxu0 0
    %5545 = vmatpush2.bf16.msra.mxu0 0
    %5546 = vmatprep.subr.bf16.mxu0 0
    %5547 = vmatpush2.bf16.msra.mxu0 0
    %5548 = vmatprep.subr.bf16.mxu0 0
    %5549 = vmatpush2.bf16.msra.mxu0 0
    %5550 = vmatprep.subr.bf16.mxu0 0
    %5551 = vmatpush2.bf16.msra.mxu0 0
    %5552 = vmatprep.subr.bf16.mxu0 0
    %5553 = vmatpush2.bf16.msra.mxu0 0
    %5554 = vmatprep.subr.bf16.mxu0 0
    %5555 = vmatpush2.bf16.msra.mxu0 0
    %5556 = vmatprep.subr.bf16.mxu0 0
    %5557 = vmatpush2.bf16.msra.mxu0 0
    %5558 = vmatprep.mubr.bf16.mxu0 0
    %5559 = vmatmul.mubr.bf16.gmra.mxu0 %v5454
    %v5560 = vpop.f32.mrf.mxu0
    %v5561 = vadd.f32 %v5476, %v5560
    %v5562 = vpop.f32.mrf.mxu0
    %v5563 = vpop.f32.mrf.mxu0
    %v5564 = vpop.f32.mrf.mxu0
    %5565 = vdwg.mxu0
    %v5566 = vmax.f32 %v5561, 0.0
    %v5567 = vpack.c.bf16 %v5566, %v5566
    %v5568 = vld [vmem:[#allocation18] sm:$0xf]
    %v5569 = vld [vmem:[#allocation18 + $0x4] sm:$0xf]
    %v5570 = vld [vmem:[#allocation18 + $0x8] sm:$0xf]
    %v5571 = vld [vmem:[#allocation18 + $0xc] sm:$0xf]
    %v5572 = vld [vmem:[#allocation18 + $0x10] sm:$0xf]
    %v5573 = vld [vmem:[#allocation18 + $0x14] sm:$0xf]
    %v5574 = vld [vmem:[#allocation18 + $0x18] sm:$0xf]
    %v5575 = vld [vmem:[#allocation18 + $0x1c] sm:$0xf]
    %v5576 = vld [vmem:[#allocation18 + $0x20] sm:$0xf]
    %v5577 = vld [vmem:[#allocation18 + $0x24] sm:$0xf]
    %v5578 = vld [vmem:[#allocation18 + $0x28] sm:$0xf]
    %v5579 = vld [vmem:[#allocation18 + $0x2c] sm:$0xf]
    %v5580 = vld [vmem:[#allocation18 + $0x30] sm:$0xf]
    %v5581 = vld [vmem:[#allocation18 + $0x34] sm:$0xf]
    %v5582 = vld [vmem:[#allocation18 + $0x38] sm:$0xf]
    %v5583 = vld [vmem:[#allocation18 + $0x3c] sm:$0xf]
    %v5584 = vld [vmem:[%s16] sm:$0x1]
    %v5586 = vlaneseq
    %v5587 = vshrl.u32 %v5586, 7
    %v5588 = vsub.s32 0, %v5587
    %v5589 = vrot.slane %v5584, %v5588
    %v5607 = vunpack.c.l.b16 %v5568
    %v5608 = vunpack.c.l.b16 %v5569
    %v5609 = vunpack.c.l.b16 %v5570
    %v5610 = vunpack.c.l.b16 %v5571
    %v5611 = vunpack.c.l.b16 %v5572
    %v5612 = vunpack.c.l.b16 %v5573
    %v5613 = vunpack.c.l.b16 %v5574
    %v5614 = vunpack.c.l.b16 %v5575
    %v5615 = vunpack.c.l.b16 %v5576
    %v5616 = vunpack.c.l.b16 %v5577
    %v5617 = vunpack.c.l.b16 %v5578
    %v5618 = vunpack.c.l.b16 %v5579
    %v5619 = vunpack.c.l.b16 %v5580
    %v5620 = vunpack.c.l.b16 %v5581
    %v5621 = vunpack.c.l.b16 %v5582
    %v5622 = vunpack.c.l.b16 %v5583
    %v5623 = vpack.c.b16 %v5608, %v5607
    %v5624 = vpack.c.b16 %v5610, %v5609
    %v5625 = vpack.c.b16 %v5612, %v5611
    %v5626 = vpack.c.b16 %v5614, %v5613
    %v5627 = vpack.c.b16 %v5616, %v5615
    %v5628 = vpack.c.b16 %v5618, %v5617
    %v5629 = vpack.c.b16 %v5620, %v5619
    %v5630 = vpack.c.b16 %v5622, %v5621
    %5639 = vmatprep.subr.bf16.mxu0 0
    %5640 = vmatpush1.bf16.msra.mxu0 %v5630
    %5641 = vmatprep.subr.bf16.mxu0 0
    %5642 = vmatpush1.bf16.msra.mxu0 %v5629
    %5643 = vmatprep.subr.bf16.mxu0 0
    %5644 = vmatpush1.bf16.msra.mxu0 %v5628
    %5645 = vmatprep.subr.bf16.mxu0 0
    %5646 = vmatpush1.bf16.msra.mxu0 %v5627
    %5647 = vmatprep.subr.bf16.mxu0 0
    %5648 = vmatpush1.bf16.msra.mxu0 %v5626
    %5649 = vmatprep.subr.bf16.mxu0 0
    %5650 = vmatpush1.bf16.msra.mxu0 %v5625
    %5651 = vmatprep.subr.bf16.mxu0 0
    %5652 = vmatpush1.bf16.msra.mxu0 %v5624
    %5653 = vmatprep.subr.bf16.mxu0 0
    %5654 = vmatpush1.bf16.msra.mxu0 %v5623
    %5655 = vmatprep.subr.bf16.mxu0 0
    %5656 = vmatpush2.bf16.msra.mxu0 0
    %5657 = vmatprep.subr.bf16.mxu0 0
    %5658 = vmatpush2.bf16.msra.mxu0 0
    %5659 = vmatprep.subr.bf16.mxu0 0
    %5660 = vmatpush2.bf16.msra.mxu0 0
    %5661 = vmatprep.subr.bf16.mxu0 0
    %5662 = vmatpush2.bf16.msra.mxu0 0
    %5663 = vmatprep.subr.bf16.mxu0 0
    %5664 = vmatpush2.bf16.msra.mxu0 0
    %5665 = vmatprep.subr.bf16.mxu0 0
    %5666 = vmatpush2.bf16.msra.mxu0 0
    %5667 = vmatprep.subr.bf16.mxu0 0
    %5668 = vmatpush2.bf16.msra.mxu0 0
    %5669 = vmatprep.subr.bf16.mxu0 0
    %5670 = vmatpush2.bf16.msra.mxu0 0
    %5671 = vmatprep.mubr.bf16.mxu0 0
    %5672 = vmatmul.mubr.bf16.gmra.mxu0 %v5567
    %v5673 = vpop.f32.mrf.mxu0
    %v5674 = vadd.f32 %v5589, %v5673
    %v5675 = vpop.f32.mrf.mxu0
    %v5676 = vpop.f32.mrf.mxu0
    %v5677 = vpop.f32.mrf.mxu0
    %5678 = vdwg.mxu0
    %v5679 = vmax.f32 %v5674, 0.0
    %v5680 = vpack.c.bf16 %v5679, %v5679
    %v5681 = vld [vmem:[#allocation20] sm:$0xff]
    %v5682 = vld [vmem:[#allocation20 + $0x8] sm:$0xff]
    %v5683 = vld [vmem:[#allocation20 + $0x10] sm:$0xff]
    %v5684 = vld [vmem:[#allocation20 + $0x18] sm:$0xff]
    %v5685 = vld [vmem:[#allocation20 + $0x20] sm:$0xff]
    %v5686 = vld [vmem:[#allocation20 + $0x28] sm:$0xff]
    %v5687 = vld [vmem:[#allocation20 + $0x30] sm:$0xff]
    %v5688 = vld [vmem:[#allocation20 + $0x38] sm:$0xff]
    %v5689 = vld [vmem:[#allocation20 + $0x40] sm:$0xff]
    %v5690 = vld [vmem:[#allocation20 + $0x48] sm:$0xff]
    %v5691 = vld [vmem:[#allocation20 + $0x50] sm:$0xff]
    %v5692 = vld [vmem:[#allocation20 + $0x58] sm:$0xff]
    %v5693 = vld [vmem:[#allocation20 + $0x60] sm:$0xff]
    %v5694 = vld [vmem:[#allocation20 + $0x68] sm:$0xff]
    %v5695 = vld [vmem:[#allocation20 + $0x70] sm:$0xff]
    %v5696 = vld [vmem:[#allocation20 + $0x78] sm:$0xff]
    %v5697 = vld [vmem:[%s18] sm:$0x3]
    %v5699 = vlaneseq
    %v5700 = vshrl.u32 %v5699, 7
    %v5701 = vsub.s32 0, %v5700
    %v5702 = vrot.slane %v5697, %v5701
    %v5703 = vlaneseq
    %v5704 = vshrl.u32 %v5703, 7
    %v5705 = vsub.s32 1, %v5704
    %v5706 = vrot.slane %v5697, %v5705
    %v5725 = vunpack.c.l.b16 %v5681
    %v5726 = vunpack.c.h.b16 %v5681
    %v5727 = vunpack.c.l.b16 %v5682
    %v5728 = vunpack.c.h.b16 %v5682
    %v5729 = vunpack.c.l.b16 %v5683
    %v5730 = vunpack.c.h.b16 %v5683
    %v5731 = vunpack.c.l.b16 %v5684
    %v5732 = vunpack.c.h.b16 %v5684
    %v5733 = vunpack.c.l.b16 %v5685
    %v5734 = vunpack.c.h.b16 %v5685
    %v5735 = vunpack.c.l.b16 %v5686
    %v5736 = vunpack.c.h.b16 %v5686
    %v5737 = vunpack.c.l.b16 %v5687
    %v5738 = vunpack.c.h.b16 %v5687
    %v5739 = vunpack.c.l.b16 %v5688
    %v5740 = vunpack.c.h.b16 %v5688
    %v5741 = vunpack.c.l.b16 %v5689
    %v5742 = vunpack.c.h.b16 %v5689
    %v5743 = vunpack.c.l.b16 %v5690
    %v5744 = vunpack.c.h.b16 %v5690
    %v5745 = vunpack.c.l.b16 %v5691
    %v5746 = vunpack.c.h.b16 %v5691
    %v5747 = vunpack.c.l.b16 %v5692
    %v5748 = vunpack.c.h.b16 %v5692
    %v5749 = vunpack.c.l.b16 %v5693
    %v5750 = vunpack.c.h.b16 %v5693
    %v5751 = vunpack.c.l.b16 %v5694
    %v5752 = vunpack.c.h.b16 %v5694
    %v5753 = vunpack.c.l.b16 %v5695
    %v5754 = vunpack.c.h.b16 %v5695
    %v5755 = vunpack.c.l.b16 %v5696
    %v5756 = vunpack.c.h.b16 %v5696
    %v5757 = vpack.c.b16 %v5727, %v5725
    %v5758 = vpack.c.b16 %v5728, %v5726
    %v5759 = vpack.c.b16 %v5731, %v5729
    %v5760 = vpack.c.b16 %v5732, %v5730
    %v5761 = vpack.c.b16 %v5735, %v5733
    %v5762 = vpack.c.b16 %v5736, %v5734
    %v5763 = vpack.c.b16 %v5739, %v5737
    %v5764 = vpack.c.b16 %v5740, %v5738
    %v5765 = vpack.c.b16 %v5743, %v5741
    %v5766 = vpack.c.b16 %v5744, %v5742
    %v5767 = vpack.c.b16 %v5747, %v5745
    %v5768 = vpack.c.b16 %v5748, %v5746
    %v5769 = vpack.c.b16 %v5751, %v5749
    %v5770 = vpack.c.b16 %v5752, %v5750
    %v5771 = vpack.c.b16 %v5755, %v5753
    %v5772 = vpack.c.b16 %v5756, %v5754
    %5789 = vmatprep.subr.bf16.mxu0 %v5772
    %5790 = vmatpush1.bf16.msra.mxu0 %v5771
    %5791 = vmatprep.subr.bf16.mxu0 %v5770
    %5792 = vmatpush1.bf16.msra.mxu0 %v5769
    %5793 = vmatprep.subr.bf16.mxu0 %v5768
    %5794 = vmatpush1.bf16.msra.mxu0 %v5767
    %5795 = vmatprep.subr.bf16.mxu0 %v5766
    %5796 = vmatpush1.bf16.msra.mxu0 %v5765
    %5797 = vmatprep.subr.bf16.mxu0 %v5764
    %5798 = vmatpush1.bf16.msra.mxu0 %v5763
    %5799 = vmatprep.subr.bf16.mxu0 %v5762
    %5800 = vmatpush1.bf16.msra.mxu0 %v5761
    %5801 = vmatprep.subr.bf16.mxu0 %v5760
    %5802 = vmatpush1.bf16.msra.mxu0 %v5759
    %5803 = vmatprep.subr.bf16.mxu0 %v5758
    %5804 = vmatpush1.bf16.msra.mxu0 %v5757
    %5805 = vmatprep.subr.bf16.mxu0 0
    %5806 = vmatpush2.bf16.msra.mxu0 0
    %5807 = vmatprep.subr.bf16.mxu0 0
    %5808 = vmatpush2.bf16.msra.mxu0 0
    %5809 = vmatprep.subr.bf16.mxu0 0
    %5810 = vmatpush2.bf16.msra.mxu0 0
    %5811 = vmatprep.subr.bf16.mxu0 0
    %5812 = vmatpush2.bf16.msra.mxu0 0
    %5813 = vmatprep.subr.bf16.mxu0 0
    %5814 = vmatpush2.bf16.msra.mxu0 0
    %5815 = vmatprep.subr.bf16.mxu0 0
    %5816 = vmatpush2.bf16.msra.mxu0 0
    %5817 = vmatprep.subr.bf16.mxu0 0
    %5818 = vmatpush2.bf16.msra.mxu0 0
    %5819 = vmatprep.subr.bf16.mxu0 0
    %5820 = vmatpush2.bf16.msra.mxu0 0
    %5821 = vmatprep.mubr.bf16.mxu0 0
    %5822 = vmatmul.mubr.bf16.gmra.mxu0 %v5680
    %v5823 = vpop.f32.mrf.mxu0
    %v5824 = vadd.f32 %v5702, %v5823
    %v5825 = vpop.f32.mrf.mxu0
    %v5826 = vadd.f32 %v5706, %v5825
    %v5827 = vpop.f32.mrf.mxu0
    %v5828 = vpop.f32.mrf.mxu0
    %5829 = vdwg.mxu0
    %5830 = vst [vmem:[#allocation21] sm:$0xff] %v5824
    %5831 = vst [vmem:[#allocation21 + $0x8] sm:$0xff] %v5826
    // Predicated region
    $region122: #{tpu_custom_call.1} parent=1 // pred_check
      _
    $region123: #{tpu_custom_call.1} parent=1 // pred_check_branch
      %5833 = sbr.rel (0) target = $region125
    $region124: #{tpu_custom_call.1} parent=1 // pred_region
      %s5835 = ssub.s32 256, 256
      %5836 = vsyncadd [#allocation5], %s5835
      %s5838 = sshll.u32 [#allocation21], 4
      %s5839 = int_to_ptr.vmem [resolvable:$true] %s5838
      %5841 = dma.vmem_to_hbm [thread:$0]  %s5839, 256, %s19, [#allocation5]
    $region125: #{tpu_custom_call.1} parent=1 // pred_fallthru
      _
    // Predicated region
    $region126: #{tpu_custom_call.1} parent=1 // pred_check
      _
    $region127: #{tpu_custom_call.1} parent=1 // pred_check_branch
      %5843 = sbr.rel (0) target = $region129
    $region128: #{tpu_custom_call.1} parent=1 // pred_region
      %5844 = dma.done [#allocation5], 256
    $region129: #{tpu_custom_call.1} parent=1 // pred_fallthru
      _
    %5845 = vsyncpa [#allocation4], 1
    %5846 = vsyncpa [#allocation7], 1
    %5847 = vsyncpa [#allocation10], 1
    %5848 = vsyncpa [#allocation13], 1
    %5849 = vsyncpa [#allocation16], 1
    %5850 = vsyncpa [#allocation19], 1
    %5851 = vsyncpa [#allocation5], 1

</llo_original>
